<compile_context>
chip_gen: v5e
topology: v5e:2x2
jax: 0.10.0
libtpu: 0.0.40
codegen_flags: <defaults>
</compile_context>

<pallas_src>
import functools
import math

import jax
import jax.numpy as jnp
from jax import lax
from jax.experimental import pallas as pl
from jax.experimental.pallas import tpu as pltpu

D = 768              # hidden size (hard-coded in the PyTorch module)
NUM_HEADS = 4        # Encoder(dim_inp=768, dim_out=768) default attention_heads
VOCAB = 30522
NUM_CLASSES = 8
LN_EPS = 1e-5
NEG_INF = -1e9       # matches masked_fill(-1000000000.0)


# --------------------------------------------------------------------------
# Kernels
# --------------------------------------------------------------------------
def _attn_head_kernel(x_ref, mask_ref, w_ref, b_ref, o_ref, *, seq_len, d):
    """One attention head for one batch element. grid = (H, B), heads outer."""
    x = x_ref[0]                                   # (S, D)   bf16
    w = w_ref[0]                                   # (D, 3D)  bf16 [Wq.T|Wk.T|Wv.T]
    qkv = jnp.dot(x, w, preferred_element_type=jnp.float32) + b_ref[0]
    q = qkv[:, :d]
    k = qkv[:, d:2 * d]
    v = qkv[:, 2 * d:]
    # NOTE: PyTorch code scales by query.size(1)**0.5 == sqrt(seq_len) (not dim).
    inv_scale = 1.0 / (float(seq_len) ** 0.5)
    scores = lax.dot_general(
        q.astype(jnp.bfloat16), k.astype(jnp.bfloat16),
        (((1,), (1,)), ((), ())),
        preferred_element_type=jnp.float32) * inv_scale
    mask = mask_ref[0]                             # (1, S) -> broadcast over rows
    scores = jnp.where(mask == 0.0, NEG_INF, scores)
    m = jnp.max(scores, axis=-1, keepdims=True)
    e = jnp.exp(scores - m)
    attn = e * pl.reciprocal(jnp.sum(e, axis=-1, keepdims=True), approx=True)
    ctx = jnp.dot(attn.astype(jnp.bfloat16), v.astype(jnp.bfloat16),
                  preferred_element_type=jnp.float32)
    o_ref[0] = ctx.astype(o_ref.dtype)


def _encoder_tail_kernel(x_ref, wo_ref, bo_ref, g1_ref, be1_ref,
                         w1_ref, b1_ref, w2_ref, b2_ref, g2_ref, be2_ref,
                         o_ref):
    """MHA output linear + LN1 + FFN(GELU) + LN2 on flattened (B*S, .) rows."""
    # TODO(synk): nn.Dropout layers are treated as identity (inference mode).
    x = x_ref[...]                                 # (B*S, H*D) bf16
    y = jnp.dot(x, wo_ref[...], preferred_element_type=jnp.float32) + bo_ref[...]
    mu = jnp.mean(y, axis=-1, keepdims=True)
    var = jnp.mean((y - mu) ** 2, axis=-1, keepdims=True)
    ctx = (y - mu) * lax.rsqrt(var + LN_EPS) * g1_ref[...] + be1_ref[...]

    h = jnp.dot(ctx.astype(jnp.bfloat16), w1_ref[...],
                preferred_element_type=jnp.float32) + b1_ref[...]
    # exact (erf-based) GELU, matching torch.nn.GELU() default
    h = 0.5 * h * (1.0 + lax.erf(h * (1.0 / math.sqrt(2.0))))
    y2 = jnp.dot(h.astype(jnp.bfloat16), w2_ref[...],
                 preferred_element_type=jnp.float32) + b2_ref[...]
    mu2 = jnp.mean(y2, axis=-1, keepdims=True)
    var2 = jnp.mean((y2 - mu2) ** 2, axis=-1, keepdims=True)
    enc = (y2 - mu2) * lax.rsqrt(var2 + LN_EPS) * g2_ref[...] + be2_ref[...]
    o_ref[...] = enc.astype(o_ref.dtype)


def _cnn_fc_kernel(*refs, kernel_sizes, num_filters, seq_len):
    """All Conv1d(valid)+ReLU+max-over-time branches + final fc, one batch elem."""
    # TODO(synk): dropout before fc is identity (inference mode).
    n_conv = len(kernel_sizes)
    x_ref = refs[0]
    conv_refs = refs[1:1 + 2 * n_conv]
    wfc_ref = refs[1 + 2 * n_conv]
    bfc_ref = refs[2 + 2 * n_conv]
    o_ref = refs[3 + 2 * n_conv]

    x = x_ref[0]                                   # (S, D) bf16
    row = lax.broadcasted_iota(jnp.int32, (seq_len, seq_len), 0)
    col = lax.broadcasted_iota(jnp.int32, (seq_len, seq_len), 1)
    t_idx = lax.broadcasted_iota(jnp.int32, (seq_len, num_filters), 0)

    logits = bfc_ref[...]                          # (1, NUM_CLASSES) f32
    for i, ksz in enumerate(kernel_sizes):
        w = conv_refs[2 * i]                       # (k, D, F) bf16
        b = conv_refs[2 * i + 1]                   # (1, F)    f32
        acc = jnp.zeros((seq_len, num_filters), jnp.float32)
        for j in range(ksz):                       # static tap loop
            yj = jnp.dot(x, w[j], preferred_element_type=jnp.float32)   # (S, F)
            # aligned shift-by-j via a tiny (S,S) 0/1 matrix (no misaligned slices)
            shift_j = (col == row + j).astype(jnp.float32)
            acc = acc + jnp.dot(shift_j, yj, preferred_element_type=jnp.float32)
        acc = acc + b[...]
        # rows >= S-k+1 are not valid conv outputs; mask them, ReLU maps them to 0
        # which cannot change the max since valid ReLU outputs are >= 0.
        acc = jnp.where(t_idx < (seq_len - ksz + 1), acc, NEG_INF)
        acc = jnp.maximum(acc, 0.0)                # ReLU
        pooled = jnp.max(acc, axis=0, keepdims=True)          # (1, F)
        wfc_i = wfc_ref[i * num_filters:(i + 1) * num_filters, :]
        logits = logits + jnp.dot(pooled.astype(jnp.bfloat16), wfc_i,
                                  preferred_element_type=jnp.float32)
    o_ref[0] = logits


# --------------------------------------------------------------------------
# Pallas-call wrappers
# --------------------------------------------------------------------------
def attention_heads(x, mask, w_qkv_t, b_qkv):
    B, S, d = x.shape
    H = w_qkv_t.shape[0]
    return pl.pallas_call(
        functools.partial(_attn_head_kernel, seq_len=S, d=d),
        out_shape=jax.ShapeDtypeStruct((B, S, H * d), jnp.bfloat16),
        grid=(H, B),                                # heads OUTER: weight fetched once per head
        in_specs=[
            pl.BlockSpec((1, S, d), lambda h, b: (b, 0, 0)),
            pl.BlockSpec((1, 1, S), lambda h, b: (b, 0, 0)),
            pl.BlockSpec((1, d, 3 * d), lambda h, b: (h, 0, 0)),
            pl.BlockSpec((1, 1, 3 * d), lambda h, b: (h, 0, 0)),
        ],
        out_specs=pl.BlockSpec((1, S, d), lambda h, b: (b, 0, h)),
        compiler_params=pltpu.CompilerParams(
            dimension_semantics=("parallel", "arbitrary")),
    )(x, mask, w_qkv_t, b_qkv)


def encoder_tail(head_cat_2d, wo_t, bo, g1, be1, w1_t, b1, w2_t, b2, g2, be2):
    rows, hd = head_cat_2d.shape
    d = wo_t.shape[1]
    return pl.pallas_call(
        _encoder_tail_kernel,
        out_shape=jax.ShapeDtypeStruct((rows, d), jnp.bfloat16),
        grid=(1,),
        in_specs=[
            pl.BlockSpec((rows, hd), lambda i: (0, 0)),
            pl.BlockSpec((hd, d), lambda i: (0, 0)),
            pl.BlockSpec((1, d), lambda i: (0, 0)),
            pl.BlockSpec((1, d), lambda i: (0, 0)),
            pl.BlockSpec((1, d), lambda i: (0, 0)),
            pl.BlockSpec((d, d), lambda i: (0, 0)),
            pl.BlockSpec((1, d), lambda i: (0, 0)),
            pl.BlockSpec((d, d), lambda i: (0, 0)),
            pl.BlockSpec((1, d), lambda i: (0, 0)),
            pl.BlockSpec((1, d), lambda i: (0, 0)),
            pl.BlockSpec((1, d), lambda i: (0, 0)),
        ],
        out_specs=pl.BlockSpec((rows, d), lambda i: (0, 0)),
        compiler_params=pltpu.CompilerParams(
            dimension_semantics=("arbitrary",),
            vmem_limit_bytes=32 * 1024 * 1024),
    )(head_cat_2d, wo_t, bo, g1, be1, w1_t, b1, w2_t, b2, g2, be2)


def cnn_fc_head(x, conv_ws, conv_bs, w_fc_t, b_fc, kernel_sizes, num_filters):
    B, S, d = x.shape
    n_conv = len(kernel_sizes)
    in_specs = [pl.BlockSpec((1, S, d), lambda b: (b, 0, 0))]
    conv_args = []
    for w_t, bias in zip(conv_ws, conv_bs):
        k = w_t.shape[0]
        in_specs.append(pl.BlockSpec((k, d, num_filters), lambda b: (0, 0, 0)))
        in_specs.append(pl.BlockSpec((1, num_filters), lambda b: (0, 0)))
        conv_args.extend([w_t, bias])
    in_specs.append(pl.BlockSpec((n_conv * num_filters, NUM_CLASSES),
                                 lambda b: (0, 0)))
    in_specs.append(pl.BlockSpec((1, NUM_CLASSES), lambda b: (0, 0)))

    out = pl.pallas_call(
        functools.partial(_cnn_fc_kernel, kernel_sizes=tuple(kernel_sizes),
                          num_filters=num_filters, seq_len=S),
        out_shape=jax.ShapeDtypeStruct((B, 1, NUM_CLASSES), jnp.float32),
        grid=(B,),
        in_specs=in_specs,
        out_specs=pl.BlockSpec((1, 1, NUM_CLASSES), lambda b: (b, 0, 0)),
        compiler_params=pltpu.CompilerParams(dimension_semantics=("parallel",)),
    )(x, *conv_args, w_fc_t, b_fc)
    return out.reshape(B, NUM_CLASSES)


# --------------------------------------------------------------------------
# Full BERTCNN forward
# --------------------------------------------------------------------------
def bert_cnn_forward(params, input_ids, attention_mask, *, kernel_sizes,
                     num_filters):
    B, S = input_ids.shape
    # TODO(synk): embedding row-gather stays in plain JAX (XLA gather).
    x = jnp.take(params["embedding"], input_ids, axis=0)          # (B, S, 768) bf16
    mask = attention_mask.astype(jnp.float32).reshape(B, 1, S)

    head_cat = attention_heads(x, mask, params["w_qkv_t"], params["b_qkv"])
    enc2d = encoder_tail(head_cat.reshape(B * S, NUM_HEADS * D),
                         params["w_mha_t"], params["b_mha"],
                         params["ln1_g"], params["ln1_b"],
                         params["w_ff1_t"], params["b_ff1"],
                         params["w_ff2_t"], params["b_ff2"],
                         params["ln2_g"], params["ln2_b"])        # (B*S, 768) bf16
    enc = enc2d.reshape(B, S, D)

    logits = cnn_fc_head(enc, params["conv_w_t"], params["conv_b"],
                         params["w_fc_t"], params["b_fc"],
                         kernel_sizes, num_filters)               # (B, 8)
    return logits


# --------------------------------------------------------------------------
# Deterministic parameter construction (shapes match the nn.Module __init__)
# --------------------------------------------------------------------------
def init_params(key, num_filters, kernel_sizes):
    ks = jax.random.split(key, 20)

    def normal(k, shape, scale=0.02, dtype=jnp.float32):
        return (scale * jax.random.normal(k, shape, dtype=jnp.float32)).astype(dtype)

    p = {}
    p["embedding"] = normal(ks[0], (VOCAB, D), scale=1.0,
                            dtype=jnp.bfloat16)                   # nn.Embedding(30522, 768)

    # AttentionHead q/k/v: Linear(768, 768) each, per head.  Packed as
    # transposed weights (H, D, 3D) bf16 and biases (H, 1, 3D) f32.
    wq = normal(ks[1], (NUM_HEADS, D, D)); bq = normal(ks[2], (NUM_HEADS, D))
    wk = normal(ks[3], (NUM_HEADS, D, D)); bk = normal(ks[4], (NUM_HEADS, D))
    wv = normal(ks[5], (NUM_HEADS, D, D)); bv = normal(ks[6], (NUM_HEADS, D))
    p["w_qkv_t"] = jnp.concatenate(
        [jnp.swapaxes(wq, 1, 2), jnp.swapaxes(wk, 1, 2), jnp.swapaxes(wv, 1, 2)],
        axis=2).astype(jnp.bfloat16)
    p["b_qkv"] = jnp.concatenate([bq, bk, bv], axis=1)[:, None, :]

    # MultiHeadAttention.linear: Linear(4*768, 768) + LayerNorm(768)
    w_mha = normal(ks[7], (D, NUM_HEADS * D))
    p["w_mha_t"] = w_mha.T.astype(jnp.bfloat16)
    p["b_mha"] = normal(ks[8], (1, D))
    p["ln1_g"] = jnp.ones((1, D), jnp.float32)
    p["ln1_b"] = jnp.zeros((1, D), jnp.float32)

    # Encoder.feed_forward: Linear(768,768) -> GELU -> Linear(768,768); LayerNorm
    w1 = normal(ks[9], (D, D));  p["w_ff1_t"] = w1.T.astype(jnp.bfloat16)
    p["b_ff1"] = normal(ks[10], (1, D))
    w2 = normal(ks[11], (D, D)); p["w_ff2_t"] = w2.T.astype(jnp.bfloat16)
    p["b_ff2"] = normal(ks[12], (1, D))
    p["ln2_g"] = jnp.ones((1, D), jnp.float32)
    p["ln2_b"] = jnp.zeros((1, D), jnp.float32)

    # Conv1d(768, num_filters, k): torch weight (F, C, k) -> transposed (k, C, F)
    p["conv_w_t"] = []
    p["conv_b"] = []
    ck = jax.random.split(ks[13], 2 * len(kernel_sizes))
    for i, k_sz in enumerate(kernel_sizes):
        w = normal(ck[2 * i], (num_filters, D, k_sz))
        p["conv_w_t"].append(jnp.transpose(w, (2, 1, 0)).astype(jnp.bfloat16))
        p["conv_b"].append(normal(ck[2 * i + 1], (1, num_filters)))

    # fc: Linear(len(kernel_sizes) * num_filters, 8)
    w_fc = normal(ks[14], (NUM_CLASSES, len(kernel_sizes) * num_filters))
    p["w_fc_t"] = w_fc.T.astype(jnp.bfloat16)
    p["b_fc"] = normal(ks[15], (1, NUM_CLASSES))
    return p


# --------------------------------------------------------------------------
if __name__ == "__main__":
    key = jax.random.PRNGKey(0)
    pkey, ikey = jax.random.split(key, 2)

    B, S = 2, 8
    num_filters = 128
    kernel_sizes = (2, 3, 4)

    params = init_params(pkey, num_filters, kernel_sizes)
    input_ids = jax.random.randint(ikey, (B, S), 0, VOCAB, dtype=jnp.int32)
    # second sequence has 3 padded (masked-out) positions
    lengths = jnp.array([S, S - 3])
    attention_mask = (jnp.arange(S)[None, :] < lengths[:, None]).astype(jnp.int32)

    logits = bert_cnn_forward(params, input_ids, attention_mask,
                              kernel_sizes=kernel_sizes, num_filters=num_filters)
    logits = jax.block_until_ready(logits)

    assert logits.shape == (B, NUM_CLASSES), logits.shape
    assert bool(jnp.all(jnp.isfinite(logits)))
    print("KERNEL_OK")
</pallas_src>

<mosaic_0001>
module attributes {stable_mosaic.version = 11 : i64} {
  func.func @_attn_head_kernel(%arg0: i32, %arg1: i32, %arg2: memref<1x8x768xbf16, #tpu.memory_space<vmem>>, %arg3: memref<1x1x8xf32, #tpu.memory_space<vmem>>, %arg4: memref<1x768x2304xbf16, #tpu.memory_space<vmem>>, %arg5: memref<1x1x2304xf32, #tpu.memory_space<vmem>>, %arg6: memref<1x8x768xbf16, #tpu.memory_space<vmem>>) attributes {dimension_semantics = [#tpu.dimension_semantics<parallel>, #tpu.dimension_semantics<arbitrary>], iteration_bounds = array<i64: 4, 2>, scalar_prefetch = 0 : i64, scratch_operands = 0 : i64, tpu.core_type = #tpu.core_type<tc>, window_params = [{transform_indices = @transform_0, window_bounds = array<i64: 1, 8, 768>}, {transform_indices = @transform_1, window_bounds = array<i64: 1, 1, 8>}, {transform_indices = @transform_2, window_bounds = array<i64: 1, 768, 2304>}, {transform_indices = @transform_3, window_bounds = array<i64: 1, 1, 2304>}, {transform_indices = @transform_4, window_bounds = array<i64: 1, 8, 768>}]} {
    %c0 = arith.constant 0 : index
    %c0_0 = arith.constant 0 : index
    %c0_1 = arith.constant 0 : index
    %0 = vector.load %arg2[%c0, %c0_0, %c0_1] : memref<1x8x768xbf16, #tpu.memory_space<vmem>>, vector<1x8x768xbf16>
    %1 = vector.shape_cast %0 : vector<1x8x768xbf16> to vector<8x768xbf16>
    %c0_2 = arith.constant 0 : index
    %c0_3 = arith.constant 0 : index
    %c0_4 = arith.constant 0 : index
    %2 = vector.load %arg4[%c0_2, %c0_3, %c0_4] : memref<1x768x2304xbf16, #tpu.memory_space<vmem>>, vector<1x768x2304xbf16>
    %3 = vector.shape_cast %2 : vector<1x768x2304xbf16> to vector<768x2304xbf16>
    %cst = arith.constant dense<0.000000e+00> : vector<8x2304xf32>
    %4 = tpu.matmul %1, %3, %cst {dimension_numbers = #tpu.dot_dimension_numbers<[1], [0], [0], [1], [0, 0, 1, 1], [], []>} : vector<8x768xbf16>, vector<768x2304xbf16>, vector<8x2304xf32> -> vector<8x2304xf32>
    %c0_5 = arith.constant 0 : index
    %c0_6 = arith.constant 0 : index
    %c0_7 = arith.constant 0 : index
    %5 = vector.load %arg5[%c0_5, %c0_6, %c0_7] : memref<1x1x2304xf32, #tpu.memory_space<vmem>>, vector<1x1x2304xf32>
    %6 = vector.shape_cast %5 : vector<1x1x2304xf32> to vector<1x2304xf32>
    %7 = vector.broadcast %6 : vector<1x2304xf32> to vector<8x2304xf32>
    %8 = arith.addf %4, %7 : vector<8x2304xf32>
    %9 = vector.extract_strided_slice %8 {offsets = [0, 0], sizes = [8, 768], strides = [1, 1]} : vector<8x2304xf32> to vector<8x768xf32>
    %10 = vector.extract_strided_slice %8 {offsets = [0, 768], sizes = [8, 768], strides = [1, 1]} : vector<8x2304xf32> to vector<8x768xf32>
    %11 = vector.extract_strided_slice %8 {offsets = [0, 1536], sizes = [8, 768], strides = [1, 1]} : vector<8x2304xf32> to vector<8x768xf32>
    %12 = arith.truncf %9 : vector<8x768xf32> to vector<8x768xbf16>
    %13 = arith.truncf %10 : vector<8x768xf32> to vector<8x768xbf16>
    %cst_8 = arith.constant dense<0.000000e+00> : vector<8x8xf32>
    %14 = tpu.matmul %12, %13, %cst_8 {dimension_numbers = #tpu.dot_dimension_numbers<[1], [1], [0], [0], [0, 0, 1, 0], [], []>} : vector<8x768xbf16>, vector<8x768xbf16>, vector<8x8xf32> -> vector<8x8xf32>
    %cst_9 = arith.constant 0.353553385 : f32
    %15 = vector.broadcast %cst_9 : f32 to vector<8x8xf32>
    %16 = arith.mulf %14, %15 : vector<8x8xf32>
    %c0_10 = arith.constant 0 : index
    %c0_11 = arith.constant 0 : index
    %c0_12 = arith.constant 0 : index
    %17 = vector.load %arg3[%c0_10, %c0_11, %c0_12] : memref<1x1x8xf32, #tpu.memory_space<vmem>>, vector<1x1x8xf32>
    %18 = vector.shape_cast %17 : vector<1x1x8xf32> to vector<1x8xf32>
    %cst_13 = arith.constant 0.000000e+00 : f32
    %19 = vector.broadcast %cst_13 : f32 to vector<1x8xf32>
    %20 = arith.cmpf oeq, %18, %19 : vector<1x8xf32>
    %cst_14 = arith.constant -1.000000e+09 : f32
    %21 = vector.shape_cast %20 : vector<1x8xi1> to vector<1x8xi1>
    %22 = vector.broadcast %21 : vector<1x8xi1> to vector<8x8xi1>
    %23 = vector.broadcast %cst_14 : f32 to vector<8x8xf32>
    %24 = arith.select %22, %23, %16 : vector<8x8xi1>, vector<8x8xf32>
    %cst_15 = arith.constant dense<0xFF800000> : vector<8xf32>
    %25 = vector.multi_reduction <maximumf>, %24, %cst_15 [1] : vector<8x8xf32> to vector<8xf32>
    %26 = vector.shape_cast %25 : vector<8xf32> to vector<8x1xf32>
    %27 = vector.broadcast %26 : vector<8x1xf32> to vector<8x8xf32>
    %28 = arith.subf %24, %27 : vector<8x8xf32>
    %29 = math.exp %28 : vector<8x8xf32>
    %cst_16 = arith.constant dense<0.000000e+00> : vector<8xf32>
    %30 = vector.multi_reduction <add>, %29, %cst_16 [1] : vector<8x8xf32> to vector<8xf32>
    %31 = vector.shape_cast %30 : vector<8xf32> to vector<8x1xf32>
    %32 = tpu.reciprocal %31 {approx = true} : vector<8x1xf32> -> vector<8x1xf32>
    %33 = vector.broadcast %32 : vector<8x1xf32> to vector<8x8xf32>
    %34 = arith.mulf %29, %33 : vector<8x8xf32>
    %35 = arith.truncf %34 : vector<8x8xf32> to vector<8x8xbf16>
    %36 = arith.truncf %11 : vector<8x768xf32> to vector<8x768xbf16>
    %cst_17 = arith.constant dense<0.000000e+00> : vector<8x768xf32>
    %37 = tpu.matmul %35, %36, %cst_17 {dimension_numbers = #tpu.dot_dimension_numbers<[1], [0], [0], [1], [0, 0, 1, 1], [], []>} : vector<8x8xbf16>, vector<8x768xbf16>, vector<8x768xf32> -> vector<8x768xf32>
    %38 = arith.truncf %37 : vector<8x768xf32> to vector<8x768xbf16>
    %c0_18 = arith.constant 0 : index
    %c0_19 = arith.constant 0 : index
    %c0_20 = arith.constant 0 : index
    %39 = vector.load %arg6[%c0_18, %c0_19, %c0_20] : memref<1x8x768xbf16, #tpu.memory_space<vmem>>, vector<1x8x768xbf16>
    %40 = vector.shape_cast %39 : vector<1x8x768xbf16> to vector<8x768xbf16>
    %41 = vector.shape_cast %38 : vector<8x768xbf16> to vector<1x8x768xbf16>
    tpu.vector_store %arg6[%c0_18, %c0_19, %c0_20], %41 {strides = array<i32>} : memref<1x8x768xbf16, #tpu.memory_space<vmem>>, vector<1x8x768xbf16>,
    return
  }
  func.func @transform_0(%arg0: i32, %arg1: i32) -> (i32, i32, i32) {
    %c0_i32 = arith.constant 0 : i32
    %c0_i32_0 = arith.constant 0 : i32
    %c0_i32_1 = arith.constant 0 : i32
    return %arg1, %c0_i32, %c0_i32_0 : i32, i32, i32
  }
  func.func @transform_1(%arg0: i32, %arg1: i32) -> (i32, i32, i32) {
    %c0_i32 = arith.constant 0 : i32
    %c0_i32_0 = arith.constant 0 : i32
    %c0_i32_1 = arith.constant 0 : i32
    return %arg1, %c0_i32, %c0_i32_0 : i32, i32, i32
  }
  func.func @transform_2(%arg0: i32, %arg1: i32) -> (i32, i32, i32) {
    %c0_i32 = arith.constant 0 : i32
    %c0_i32_0 = arith.constant 0 : i32
    %c0_i32_1 = arith.constant 0 : i32
    return %arg0, %c0_i32, %c0_i32_0 : i32, i32, i32
  }
  func.func @transform_3(%arg0: i32, %arg1: i32) -> (i32, i32, i32) {
    %c0_i32 = arith.constant 0 : i32
    %c0_i32_0 = arith.constant 0 : i32
    %c0_i32_1 = arith.constant 0 : i32
    return %arg0, %c0_i32, %c0_i32_0 : i32, i32, i32
  }
  func.func @transform_4(%arg0: i32, %arg1: i32) -> (i32, i32, i32) {
    %c0_i32 = arith.constant 0 : i32
    %c0_i32_0 = arith.constant 0 : i32
    return %arg1, %c0_i32, %arg0 : i32, i32, i32
  }
}

</mosaic_0001>

<llo_original>
// kernel: tpu_custom_call.1
$region0: #{tpu_custom_call.1}
  #allocation0 [shape = 'u32[]', space=smem, size = 0x4, offset = 0x4, fixed_abs, tag = 'smem constant byte address 0x4 - core index']
  #allocation1 [shape = 'u32[72,128]{1,0:T(1,128)}', space=vmem, size = 0x9000, scoped, tag = 'internal scratch']
  %s0 = inlined_call_operand.hbm [shape: bf16[2,8,768], index: 0, kind: input, shape index: {}]
  %s1 = inlined_call_operand.hbm [shape: f32[2,1,8], index: 1, kind: input, shape index: {}]
  %s2 = inlined_call_operand.hbm [shape: bf16[4,768,2304], index: 2, kind: input, shape index: {}]
  %s3 = inlined_call_operand.hbm [shape: f32[4,1,2304], index: 3, kind: input, shape index: {}]
  %s4 = inlined_call_operand.hbm [shape: bf16[2,8,3072], index: 4, kind: output, shape index: {}]
  %s5 = sld [smem:[#allocation0]]
  $region65: #{tpu_custom_call.1} parent=0
    _
  %s7 = ssub.s32 1, %s5
  %s8 = scalar_select 0, %s7, %s5
  $region1: #{tpu_custom_call.1} parent=0
    #allocation2 [shape = 'u8[24576]{0}', space=vmem, size = 0x6000, scoped, tag = 'input window, operand 0']
    #allocation3 [shape = 's32[2]{0}', space=sflag, size = 0x8, scoped, tag = 'scoped memory for tpu_custom_call.1']
    #allocation4 [shape = 's32[2]{0}', space=sflag, size = 0x8, scoped, tag = 'scoped memory for tpu_custom_call.1']
    #allocation5 [shape = 'u8[1024]{0}', space=vmem, size = 0x400, scoped, tag = 'input window, operand 1']
    #allocation6 [shape = 's32[2]{0}', space=sflag, size = 0x8, scoped, tag = 'scoped memory for tpu_custom_call.1']
    #allocation7 [shape = 'u8[7077888]{0}', space=vmem, size = 0x6c0000, scoped, tag = 'input window, operand 2']
    #allocation8 [shape = 'u8[18432]{0}', space=vmem, size = 0x4800, scoped, tag = 'input window, operand 3']
    #allocation9 [shape = 's32[2]{0}', space=sflag, size = 0x8, scoped, tag = 'scoped memory for tpu_custom_call.1']
    #allocation10 [shape = 'u8[24576]{0}', space=vmem, size = 0x6000, scoped, tag = 'output window, operand 0']
    %9 = vsyncpa [#allocation3], 0
    %s10 = scalar_lea.sflag [#allocation3], 1
    %11 = vsyncpa %s10, 0
    %12 = vsyncpa [#allocation6], 0
    %s13 = scalar_lea.sflag [#allocation6], 1
    %14 = vsyncpa %s13, 0
    %15 = vsyncpa [#allocation9], 0
    %s16 = scalar_lea.sflag [#allocation9], 1
    %17 = vsyncpa %s16, 0
    %18 = vsyncpa [#allocation4], 0
    %s19 = scalar_lea.sflag [#allocation4], 1
    %20 = vsyncpa %s19, 0
    loop: start=0, step=1, limit=10
    $region2: #{tpu_custom_call.1} parent=1 // loop_pre_header
      _
    $region3: #{tpu_custom_call.1} parent=1 // loop_header
      %s22 = sphi 0, %s26
      %p23 = scmp.ge.s32.totalorder %s22, 10
      %s29 = sphi 0, %s41
      %s30 = sphi 0, %s37
      %s31 = sphi 0, %s29
      %s32 = sphi 0, %s30
      %s33 = sphi 0, %s31
      %s34 = sphi 0, %s32
      %s44 = sphi 0, %s46
      %s47 = sphi 0, %s44
      %s48 = sphi 0, %s47
      %s64 = sphi 0, %s48
      %s70 = sphi 0, %s72
      %s73 = sphi 0, %s70
      %s74 = sphi 0, %s73
      %s90 = sphi 0, %s74
      %s96 = sphi 0, %s98
      %s99 = sphi 0, %s96
      %s100 = sphi 0, %s99
      %s116 = sphi 0, %s100
      %s122 = sphi 0, %s124
      %s125 = sphi 0, %s122
      %s126 = sphi 0, %s125
      %s142 = sphi 0, %s126
      %s150 = sphi 0, %s152
      %s153 = sphi 0, %s150
      %s154 = sphi 0, %s153
      %s170 = sphi 0, %s154
    $region4: #{tpu_custom_call.1} parent=1 // loop_header_branch
      %25 = sbr.rel (%p23) target = $region8
    $region5: #{tpu_custom_call.1} parent=1 // loop_body
      %s27 = ssub.s32 %s22, 1
      %s28 = ssub.s32 %s22, 2
      %s35 = sadd.s32 1, %s30
      %p36 = scmp.ge.s32.totalorder %s35, 2
      %s37 = scalar_select %p36, 0, %s35
      %s38 = sadd.s32 1, %s29
      %s39 = scalar_select %p36, %s38, %s29
      %p40 = scmp.ge.s32.totalorder %s39, 4
      %s41 = scalar_select %p40, 0, %s39
      %s42 = ssub.s32 %s30, %s37
      %p43 = scmp.eq.s32.totalorder %s42, 0
      %s45 = sadd.s32 %s44, 1
      %s46 = scalar_select %p43, %s44, %s45
      %p49 = pneg %p43
      %p50 = scmp.eq.s32.totalorder %s22, 7
      %p51 = por %p49, %p50
      %p52 = scmp.ne.s32.totalorder %s44, %s47
      %p53 = scmp.eq.s32.totalorder %s22, 0
      %p54 = por %p52, %p53
      %p55 = scmp.ne.s32.totalorder %s44, %s47
      %p56 = scmp.eq.s32.totalorder %s27, 7
      %p57 = por %p55, %p56
      %p58 = scmp.ne.s32.totalorder %s47, %s48
      %p59 = scmp.eq.s32.totalorder %s27, 0
      %p60 = por %p58, %p59
      %p61 = scmp.ne.s32.totalorder %s47, %s48
      %p62 = scmp.eq.s32.totalorder %s28, 7
      %p63 = por %p61, %p62
      %p65 = scmp.ne.s32.totalorder %s48, %s64
      %p66 = scmp.eq.s32.totalorder %s28, 0
      %p67 = por %p65, %p66
      %s68 = ssub.s32 %s30, %s37
      %p69 = scmp.eq.s32.totalorder %s68, 0
      %s71 = sadd.s32 %s70, 1
      %s72 = scalar_select %p69, %s70, %s71
      %p75 = pneg %p69
      %p76 = scmp.eq.s32.totalorder %s22, 7
      %p77 = por %p75, %p76
      %p78 = scmp.ne.s32.totalorder %s70, %s73
      %p79 = scmp.eq.s32.totalorder %s22, 0
      %p80 = por %p78, %p79
      %p81 = scmp.ne.s32.totalorder %s70, %s73
      %p82 = scmp.eq.s32.totalorder %s27, 7
      %p83 = por %p81, %p82
      %p84 = scmp.ne.s32.totalorder %s73, %s74
      %p85 = scmp.eq.s32.totalorder %s27, 0
      %p86 = por %p84, %p85
      %p87 = scmp.ne.s32.totalorder %s73, %s74
      %p88 = scmp.eq.s32.totalorder %s28, 7
      %p89 = por %p87, %p88
      %p91 = scmp.ne.s32.totalorder %s74, %s90
      %p92 = scmp.eq.s32.totalorder %s28, 0
      %p93 = por %p91, %p92
      %s94 = ssub.s32 %s29, %s41
      %p95 = scmp.eq.s32.totalorder %s94, 0
      %s97 = sadd.s32 %s96, 1
      %s98 = scalar_select %p95, %s96, %s97
      %p101 = pneg %p95
      %p102 = scmp.eq.s32.totalorder %s22, 7
      %p103 = por %p101, %p102
      %p104 = scmp.ne.s32.totalorder %s96, %s99
      %p105 = scmp.eq.s32.totalorder %s22, 0
      %p106 = por %p104, %p105
      %p107 = scmp.ne.s32.totalorder %s96, %s99
      %p108 = scmp.eq.s32.totalorder %s27, 7
      %p109 = por %p107, %p108
      %p110 = scmp.ne.s32.totalorder %s99, %s100
      %p111 = scmp.eq.s32.totalorder %s27, 0
      %p112 = por %p110, %p111
      %p113 = scmp.ne.s32.totalorder %s99, %s100
      %p114 = scmp.eq.s32.totalorder %s28, 7
      %p115 = por %p113, %p114
      %p117 = scmp.ne.s32.totalorder %s100, %s116
      %p118 = scmp.eq.s32.totalorder %s28, 0
      %p119 = por %p117, %p118
      %s120 = ssub.s32 %s29, %s41
      %p121 = scmp.eq.s32.totalorder %s120, 0
      %s123 = sadd.s32 %s122, 1
      %s124 = scalar_select %p121, %s122, %s123
      %p127 = pneg %p121
      %p128 = scmp.eq.s32.totalorder %s22, 7
      %p129 = por %p127, %p128
      %p130 = scmp.ne.s32.totalorder %s122, %s125
      %p131 = scmp.eq.s32.totalorder %s22, 0
      %p132 = por %p130, %p131
      %p133 = scmp.ne.s32.totalorder %s122, %s125
      %p134 = scmp.eq.s32.totalorder %s27, 7
      %p135 = por %p133, %p134
      %p136 = scmp.ne.s32.totalorder %s125, %s126
      %p137 = scmp.eq.s32.totalorder %s27, 0
      %p138 = por %p136, %p137
      %p139 = scmp.ne.s32.totalorder %s125, %s126
      %p140 = scmp.eq.s32.totalorder %s28, 7
      %p141 = por %p139, %p140
      %p143 = scmp.ne.s32.totalorder %s126, %s142
      %p144 = scmp.eq.s32.totalorder %s28, 0
      %p145 = por %p143, %p144
      %s146 = ssub.s32 %s30, %s37
      %s147 = ssub.s32 %s29, %s41
      %s148 = sor.u32 %s146, %s147
      %p149 = scmp.eq.s32.totalorder %s148, 0
      %s151 = sadd.s32 %s150, 1
      %s152 = scalar_select %p149, %s150, %s151
      %p155 = pneg %p149
      %p156 = scmp.eq.s32.totalorder %s22, 7
      %p157 = por %p155, %p156
      %p158 = scmp.ne.s32.totalorder %s150, %s153
      %p159 = scmp.eq.s32.totalorder %s22, 0
      %p160 = por %p158, %p159
      %p161 = scmp.ne.s32.totalorder %s150, %s153
      %p162 = scmp.eq.s32.totalorder %s27, 7
      %p163 = por %p161, %p162
      %p164 = scmp.ne.s32.totalorder %s153, %s154
      %p165 = scmp.eq.s32.totalorder %s27, 0
      %p166 = por %p164, %p165
      %p167 = scmp.ne.s32.totalorder %s153, %s154
      %p168 = scmp.eq.s32.totalorder %s28, 7
      %p169 = por %p167, %p168
      %p171 = scmp.ne.s32.totalorder %s154, %s170
      %p172 = scmp.eq.s32.totalorder %s28, 0
      %p173 = por %p171, %p172
      %p174 = scmp.le.s32.totalorder 1, %s22
      %p175 = scmp.lt.s32.totalorder %s22, 9
      %p176 = pnand %p174, %p175
      %p177 = pneg %p176
      // Predicated region
      $region9: #{tpu_custom_call.1} parent=5 // pred_check
        _
      $region10: #{tpu_custom_call.1} parent=5 // pred_check_branch
        %179 = sbr.rel (%p176) target = $region12
      $region11: #{tpu_custom_call.1} parent=5 // pred_region
        %s180 = ssub.s32 %s22, 1
      $region12: #{tpu_custom_call.1} parent=5 // pred_fallthru
        _
      %p181 = scmp.lt.s32.totalorder %s22, 8
      // Predicated region
      $region13: #{tpu_custom_call.1} parent=5 // pred_check
        %p182 = pneg %p181
      $region14: #{tpu_custom_call.1} parent=5 // pred_check_branch
        %184 = sbr.rel (%p182) target = $region16
      $region15: #{tpu_custom_call.1} parent=5 // pred_region
        // Predicated region
        $region17: #{tpu_custom_call.1} parent=15 // pred_check
          %p185 = pneg %p54
        $region18: #{tpu_custom_call.1} parent=15 // pred_check_branch
          %187 = sbr.rel (%p185) target = $region20
        $region19: #{tpu_custom_call.1} parent=15 // pred_region
          %s188 = sand.u32 %s44, 1
          %s189 = scalar_lea.sflag [#allocation3], %s188
          %s190 = sand.u32 %s44, 1
          %s191 = smul.addr %s190, 24
          %s192 = scalar_lea.vmem [#allocation2], %s191
          %194 = vsyncadd %s189, 0
          %s195 = smul.addr %s30, 6
          %s196 = smul.addr %s195, 4
          %s197 = scalar_lea.hbm %s0, %s196
          %s199 = sshll.u32 %s197, 4
          %s200 = int_to_ptr.hbm [resolvable:$true] %s199
          %s201 = sshll.u32 %s192, 4
          %s202 = int_to_ptr.vmem [resolvable:$true] %s201
          %204 = dma.hbm_to_vmem [thread:$0]  %s200, 384, %s202, %s189
        $region20: #{tpu_custom_call.1} parent=15 // pred_fallthru
          _
        // Predicated region
        $region21: #{tpu_custom_call.1} parent=15 // pred_check
          %p205 = pneg %p80
        $region22: #{tpu_custom_call.1} parent=15 // pred_check_branch
          %207 = sbr.rel (%p205) target = $region24
        $region23: #{tpu_custom_call.1} parent=15 // pred_region
          %s208 = sand.u32 %s22, 1
          %s209 = scalar_lea.sflag [#allocation6], %s208
          %s210 = sand.u32 %s70, 1
          %s211 = scalar_lea.vmem [#allocation5], %s210
          %213 = vsyncadd %s209, 0
          %s214 = scalar_lea.hbm %s1, %s30
          %s216 = sshll.u32 %s214, 4
          %s217 = int_to_ptr.hbm [resolvable:$true] %s216
          %s218 = sshll.u32 %s211, 4
          %s219 = int_to_ptr.vmem [resolvable:$true] %s218
          %221 = dma.hbm_to_vmem [thread:$0]  %s217, 16, %s219, %s209
        $region24: #{tpu_custom_call.1} parent=15 // pred_fallthru
          _
        // Predicated region
        $region25: #{tpu_custom_call.1} parent=15 // pred_check
          %p222 = pneg %p106
        $region26: #{tpu_custom_call.1} parent=15 // pred_check_branch
          %224 = sbr.rel (%p222) target = $region28
        $region27: #{tpu_custom_call.1} parent=15 // pred_region
          %s225 = sand.u32 %s22, 1
          %s226 = scalar_lea.sflag [#allocation6], %s225
          %s227 = sand.u32 %s96, 1
          %s228 = smul.addr %s227, 6912
          %s229 = scalar_lea.vmem [#allocation7], %s228
          %231 = vsyncadd %s226, 0
          %s232 = smul.addr %s29, 1728
          %s233 = smul.addr %s232, 4
          %s234 = scalar_lea.hbm %s2, %s233
          %s235 = sshll.u32 %s234, 4
          %s236 = int_to_ptr.hbm [resolvable:$true] %s235
          %s237 = sshll.u32 %s229, 4
          %s238 = int_to_ptr.vmem [resolvable:$true] %s237
          %243 = dma.hbm_to_vmem [thread:$0]  %s236, 110592, %s238, %s226, 1152, 1152, 72
        $region28: #{tpu_custom_call.1} parent=15 // pred_fallthru
          _
        // Predicated region
        $region29: #{tpu_custom_call.1} parent=15 // pred_check
          %p244 = pneg %p132
        $region30: #{tpu_custom_call.1} parent=15 // pred_check_branch
          %246 = sbr.rel (%p244) target = $region32
        $region31: #{tpu_custom_call.1} parent=15 // pred_region
          %s247 = sand.u32 %s122, 1
          %s248 = scalar_lea.sflag [#allocation9], %s247
          %s249 = sand.u32 %s122, 1
          %s250 = smul.addr %s249, 18
          %s251 = scalar_lea.vmem [#allocation8], %s250
          %253 = vsyncadd %s248, 0
          %s254 = smul.addr %s29, 18
          %s255 = scalar_lea.hbm %s3, %s254
          %s257 = sshll.u32 %s255, 4
          %s258 = int_to_ptr.hbm [resolvable:$true] %s257
          %s259 = sshll.u32 %s251, 4
          %s260 = int_to_ptr.vmem [resolvable:$true] %s259
          %262 = dma.hbm_to_vmem [thread:$0]  %s258, 288, %s260, %s248
        $region32: #{tpu_custom_call.1} parent=15 // pred_fallthru
          _
      $region16: #{tpu_custom_call.1} parent=5 // pred_fallthru
        _
      %p263 = scmp.le.s32.totalorder 1, %s22
      %p264 = scmp.lt.s32.totalorder %s22, 9
      %p265 = pnand %p263, %p264
      %p266 = pneg %p265
      // Predicated region
      $region33: #{tpu_custom_call.1} parent=5 // pred_check
        _
      $region34: #{tpu_custom_call.1} parent=5 // pred_check_branch
        %268 = sbr.rel (%p265) target = $region36
      $region35: #{tpu_custom_call.1} parent=5 // pred_region
        %s269 = ssub.s32 %s22, 1
        %s270 = sand.u32 %s47, 1
        %s271 = scalar_lea.sflag [#allocation3], %s270
        %s272 = sand.u32 %s47, 1
        %s273 = smul.addr %s272, 24
        %s274 = scalar_lea.vmem [#allocation2], %s273
        // Predicated region
        $region37: #{tpu_custom_call.1} parent=35 // pred_check
          %p275 = pneg %p60
        $region38: #{tpu_custom_call.1} parent=35 // pred_check_branch
          %277 = sbr.rel (%p275) target = $region40
        $region39: #{tpu_custom_call.1} parent=35 // pred_region
          %279 = dma.done %s271, 384
        $region40: #{tpu_custom_call.1} parent=35 // pred_fallthru
          _
        %s280 = sand.u32 %s27, 1
        %s281 = scalar_lea.sflag [#allocation6], %s280
        %s282 = sand.u32 %s73, 1
        %s283 = scalar_lea.vmem [#allocation5], %s282
        // Predicated region
        $region41: #{tpu_custom_call.1} parent=35 // pred_check
          %p284 = pneg %p86
        $region42: #{tpu_custom_call.1} parent=35 // pred_check_branch
          %286 = sbr.rel (%p284) target = $region44
        $region43: #{tpu_custom_call.1} parent=35 // pred_region
          %288 = dma.done %s281, 16
        $region44: #{tpu_custom_call.1} parent=35 // pred_fallthru
          _
        %s289 = sand.u32 %s27, 1
        %s290 = scalar_lea.sflag [#allocation6], %s289
        %s291 = sand.u32 %s99, 1
        %s292 = smul.addr %s291, 6912
        %s293 = scalar_lea.vmem [#allocation7], %s292
        // Predicated region
        $region45: #{tpu_custom_call.1} parent=35 // pred_check
          %p294 = pneg %p112
        $region46: #{tpu_custom_call.1} parent=35 // pred_check_branch
          %296 = sbr.rel (%p294) target = $region48
        $region47: #{tpu_custom_call.1} parent=35 // pred_region
          %298 = dma.done %s290, 110592
        $region48: #{tpu_custom_call.1} parent=35 // pred_fallthru
          _
        %s299 = sand.u32 %s125, 1
        %s300 = scalar_lea.sflag [#allocation9], %s299
        %s301 = sand.u32 %s125, 1
        %s302 = smul.addr %s301, 18
        %s303 = scalar_lea.vmem [#allocation8], %s302
        // Predicated region
        $region49: #{tpu_custom_call.1} parent=35 // pred_check
          %p304 = pneg %p138
        $region50: #{tpu_custom_call.1} parent=35 // pred_check_branch
          %306 = sbr.rel (%p304) target = $region52
        $region51: #{tpu_custom_call.1} parent=35 // pred_region
          %308 = dma.done %s300, 288
        $region52: #{tpu_custom_call.1} parent=35 // pred_fallthru
          _
        %s309 = sand.u32 %s47, 1
        %s310 = scalar_lea.sflag [#allocation3], %s309
        %s311 = sand.u32 %s47, 1
        %s312 = smul.addr %s311, 24
        %s313 = scalar_lea.vmem [#allocation2], %s312
        %p314 = pneg %p60
        %p315 = pneg %p57
        %s316 = sand.u32 %s27, 1
        %s317 = scalar_lea.sflag [#allocation6], %s316
        %s318 = sand.u32 %s73, 1
        %s319 = scalar_lea.vmem [#allocation5], %s318
        %p320 = pneg %p86
        %p321 = pneg %p83
        %s322 = sand.u32 %s27, 1
        %s323 = scalar_lea.sflag [#allocation6], %s322
        %s324 = sand.u32 %s99, 1
        %s325 = smul.addr %s324, 6912
        %s326 = scalar_lea.vmem [#allocation7], %s325
        %p327 = pneg %p112
        %p328 = pneg %p109
        %s329 = sand.u32 %s125, 1
        %s330 = scalar_lea.sflag [#allocation9], %s329
        %s331 = sand.u32 %s125, 1
        %s332 = smul.addr %s331, 18
        %s333 = scalar_lea.vmem [#allocation8], %s332
        %p334 = pneg %p138
        %p335 = pneg %p135
        %p336 = pneg %p166
        %p337 = pneg %p163
        %s338 = sand.u32 %s153, 1
        %s339 = scalar_lea.sflag [#allocation4], %s338
        %s340 = sand.u32 %s153, 1
        %s341 = smul.addr %s340, 24
        %s342 = scalar_lea.vmem [#allocation10], %s341
        %s343 = smul.u32 6, %s31
        %v345 = vld [vmem:[%s274] sm:$0xff]
        %v346 = vld [vmem:[%s274 + $0x8] sm:$0xff]
        %v347 = vld [vmem:[%s274 + $0x10] sm:$0xff]
        %v348 = vld [vmem:[%s293] sm:$0xff]
        %v349 = vld [vmem:[%s293 + $0x8] sm:$0xff]
        %v350 = vld [vmem:[%s293 + $0x10] sm:$0xff]
        %v351 = vld [vmem:[%s293 + $0x18] sm:$0xff]
        %v352 = vld [vmem:[%s293 + $0x20] sm:$0xff]
        %v353 = vld [vmem:[%s293 + $0x28] sm:$0xff]
        %v354 = vld [vmem:[%s293 + $0x30] sm:$0xff]
        %v355 = vld [vmem:[%s293 + $0x38] sm:$0xff]
        %v356 = vld [vmem:[%s293 + $0x40] sm:$0xff]
        %v357 = vld [vmem:[%s293 + $0x48] sm:$0xff]
        %v358 = vld [vmem:[%s293 + $0x50] sm:$0xff]
        %v359 = vld [vmem:[%s293 + $0x58] sm:$0xff]
        %v360 = vld [vmem:[%s293 + $0x60] sm:$0xff]
        %v361 = vld [vmem:[%s293 + $0x68] sm:$0xff]
        %v362 = vld [vmem:[%s293 + $0x70] sm:$0xff]
        %v363 = vld [vmem:[%s293 + $0x78] sm:$0xff]
        %v364 = vld [vmem:[%s293 + $0x80] sm:$0xff]
        %v365 = vld [vmem:[%s293 + $0x88] sm:$0xff]
        %v366 = vld [vmem:[%s293 + $0x90] sm:$0xff]
        %v367 = vld [vmem:[%s293 + $0x98] sm:$0xff]
        %v368 = vld [vmem:[%s293 + $0xa0] sm:$0xff]
        %v369 = vld [vmem:[%s293 + $0xa8] sm:$0xff]
        %v370 = vld [vmem:[%s293 + $0xb0] sm:$0xff]
        %v371 = vld [vmem:[%s293 + $0xb8] sm:$0xff]
        %v372 = vld [vmem:[%s293 + $0xc0] sm:$0xff]
        %v373 = vld [vmem:[%s293 + $0xc8] sm:$0xff]
        %v374 = vld [vmem:[%s293 + $0xd0] sm:$0xff]
        %v375 = vld [vmem:[%s293 + $0xd8] sm:$0xff]
        %v376 = vld [vmem:[%s293 + $0xe0] sm:$0xff]
        %v377 = vld [vmem:[%s293 + $0xe8] sm:$0xff]
        %v378 = vld [vmem:[%s293 + $0xf0] sm:$0xff]
        %v379 = vld [vmem:[%s293 + $0xf8] sm:$0xff]
        %v380 = vld [vmem:[%s293 + $0x100] sm:$0xff]
        %v381 = vld [vmem:[%s293 + $0x108] sm:$0xff]
        %v382 = vld [vmem:[%s293 + $0x110] sm:$0xff]
        %v383 = vld [vmem:[%s293 + $0x118] sm:$0xff]
        %v384 = vld [vmem:[%s293 + $0x120] sm:$0xff]
        %v385 = vld [vmem:[%s293 + $0x128] sm:$0xff]
        %v386 = vld [vmem:[%s293 + $0x130] sm:$0xff]
        %v387 = vld [vmem:[%s293 + $0x138] sm:$0xff]
        %v388 = vld [vmem:[%s293 + $0x140] sm:$0xff]
        %v389 = vld [vmem:[%s293 + $0x148] sm:$0xff]
        %v390 = vld [vmem:[%s293 + $0x150] sm:$0xff]
        %v391 = vld [vmem:[%s293 + $0x158] sm:$0xff]
        %v392 = vld [vmem:[%s293 + $0x160] sm:$0xff]
        %v393 = vld [vmem:[%s293 + $0x168] sm:$0xff]
        %v394 = vld [vmem:[%s293 + $0x170] sm:$0xff]
        %v395 = vld [vmem:[%s293 + $0x178] sm:$0xff]
        %v396 = vld [vmem:[%s293 + $0x180] sm:$0xff]
        %v397 = vld [vmem:[%s293 + $0x188] sm:$0xff]
        %v398 = vld [vmem:[%s293 + $0x190] sm:$0xff]
        %v399 = vld [vmem:[%s293 + $0x198] sm:$0xff]
        %v400 = vld [vmem:[%s293 + $0x1a0] sm:$0xff]
        %v401 = vld [vmem:[%s293 + $0x1a8] sm:$0xff]
        %v402 = vld [vmem:[%s293 + $0x1b0] sm:$0xff]
        %v403 = vld [vmem:[%s293 + $0x1b8] sm:$0xff]
        %v404 = vld [vmem:[%s293 + $0x1c0] sm:$0xff]
        %v405 = vld [vmem:[%s293 + $0x1c8] sm:$0xff]
        %v406 = vld [vmem:[%s293 + $0x1d0] sm:$0xff]
        %v407 = vld [vmem:[%s293 + $0x1d8] sm:$0xff]
        %v408 = vld [vmem:[%s293 + $0x1e0] sm:$0xff]
        %v409 = vld [vmem:[%s293 + $0x1e8] sm:$0xff]
        %v410 = vld [vmem:[%s293 + $0x1f0] sm:$0xff]
        %v411 = vld [vmem:[%s293 + $0x1f8] sm:$0xff]
        %v412 = vld [vmem:[%s293 + $0x200] sm:$0xff]
        %v413 = vld [vmem:[%s293 + $0x208] sm:$0xff]
        %v414 = vld [vmem:[%s293 + $0x210] sm:$0xff]
        %v415 = vld [vmem:[%s293 + $0x218] sm:$0xff]
        %v416 = vld [vmem:[%s293 + $0x220] sm:$0xff]
        %v417 = vld [vmem:[%s293 + $0x228] sm:$0xff]
        %v418 = vld [vmem:[%s293 + $0x230] sm:$0xff]
        %v419 = vld [vmem:[%s293 + $0x238] sm:$0xff]
        %v420 = vld [vmem:[%s293 + $0x240] sm:$0xff]
        %v421 = vld [vmem:[%s293 + $0x248] sm:$0xff]
        %v422 = vld [vmem:[%s293 + $0x250] sm:$0xff]
        %v423 = vld [vmem:[%s293 + $0x258] sm:$0xff]
        %v424 = vld [vmem:[%s293 + $0x260] sm:$0xff]
        %v425 = vld [vmem:[%s293 + $0x268] sm:$0xff]
        %v426 = vld [vmem:[%s293 + $0x270] sm:$0xff]
        %v427 = vld [vmem:[%s293 + $0x278] sm:$0xff]
        %v428 = vld [vmem:[%s293 + $0x280] sm:$0xff]
        %v429 = vld [vmem:[%s293 + $0x288] sm:$0xff]
        %v430 = vld [vmem:[%s293 + $0x290] sm:$0xff]
        %v431 = vld [vmem:[%s293 + $0x298] sm:$0xff]
        %v432 = vld [vmem:[%s293 + $0x2a0] sm:$0xff]
        %v433 = vld [vmem:[%s293 + $0x2a8] sm:$0xff]
        %v434 = vld [vmem:[%s293 + $0x2b0] sm:$0xff]
        %v435 = vld [vmem:[%s293 + $0x2b8] sm:$0xff]
        %v436 = vld [vmem:[%s293 + $0x2c0] sm:$0xff]
        %v437 = vld [vmem:[%s293 + $0x2c8] sm:$0xff]
        %v438 = vld [vmem:[%s293 + $0x2d0] sm:$0xff]
        %v439 = vld [vmem:[%s293 + $0x2d8] sm:$0xff]
        %v440 = vld [vmem:[%s293 + $0x2e0] sm:$0xff]
        %v441 = vld [vmem:[%s293 + $0x2e8] sm:$0xff]
        %v442 = vld [vmem:[%s293 + $0x2f0] sm:$0xff]
        %v443 = vld [vmem:[%s293 + $0x2f8] sm:$0xff]
        %v444 = vld [vmem:[%s293 + $0x300] sm:$0xff]
        %v445 = vld [vmem:[%s293 + $0x308] sm:$0xff]
        %v446 = vld [vmem:[%s293 + $0x310] sm:$0xff]
        %v447 = vld [vmem:[%s293 + $0x318] sm:$0xff]
        %v448 = vld [vmem:[%s293 + $0x320] sm:$0xff]
        %v449 = vld [vmem:[%s293 + $0x328] sm:$0xff]
        %v450 = vld [vmem:[%s293 + $0x330] sm:$0xff]
        %v451 = vld [vmem:[%s293 + $0x338] sm:$0xff]
        %v452 = vld [vmem:[%s293 + $0x340] sm:$0xff]
        %v453 = vld [vmem:[%s293 + $0x348] sm:$0xff]
        %v454 = vld [vmem:[%s293 + $0x350] sm:$0xff]
        %v455 = vld [vmem:[%s293 + $0x358] sm:$0xff]
        %v456 = vld [vmem:[%s293 + $0x360] sm:$0xff]
        %v457 = vld [vmem:[%s293 + $0x368] sm:$0xff]
        %v458 = vld [vmem:[%s293 + $0x370] sm:$0xff]
        %v459 = vld [vmem:[%s293 + $0x378] sm:$0xff]
        %v460 = vld [vmem:[%s293 + $0x380] sm:$0xff]
        %v461 = vld [vmem:[%s293 + $0x388] sm:$0xff]
        %v462 = vld [vmem:[%s293 + $0x390] sm:$0xff]
        %v463 = vld [vmem:[%s293 + $0x398] sm:$0xff]
        %v464 = vld [vmem:[%s293 + $0x3a0] sm:$0xff]
        %v465 = vld [vmem:[%s293 + $0x3a8] sm:$0xff]
        %v466 = vld [vmem:[%s293 + $0x3b0] sm:$0xff]
        %v467 = vld [vmem:[%s293 + $0x3b8] sm:$0xff]
        %v468 = vld [vmem:[%s293 + $0x3c0] sm:$0xff]
        %v469 = vld [vmem:[%s293 + $0x3c8] sm:$0xff]
        %v470 = vld [vmem:[%s293 + $0x3d0] sm:$0xff]
        %v471 = vld [vmem:[%s293 + $0x3d8] sm:$0xff]
        %v472 = vld [vmem:[%s293 + $0x3e0] sm:$0xff]
        %v473 = vld [vmem:[%s293 + $0x3e8] sm:$0xff]
        %v474 = vld [vmem:[%s293 + $0x3f0] sm:$0xff]
        %v475 = vld [vmem:[%s293 + $0x3f8] sm:$0xff]
        %v476 = vld [vmem:[%s293 + $0x400] sm:$0xff]
        %v477 = vld [vmem:[%s293 + $0x408] sm:$0xff]
        %v478 = vld [vmem:[%s293 + $0x410] sm:$0xff]
        %v479 = vld [vmem:[%s293 + $0x418] sm:$0xff]
        %v480 = vld [vmem:[%s293 + $0x420] sm:$0xff]
        %v481 = vld [vmem:[%s293 + $0x428] sm:$0xff]
        %v482 = vld [vmem:[%s293 + $0x430] sm:$0xff]
        %v483 = vld [vmem:[%s293 + $0x438] sm:$0xff]
        %v484 = vld [vmem:[%s293 + $0x440] sm:$0xff]
        %v485 = vld [vmem:[%s293 + $0x448] sm:$0xff]
        %v486 = vld [vmem:[%s293 + $0x450] sm:$0xff]
        %v487 = vld [vmem:[%s293 + $0x458] sm:$0xff]
        %v488 = vld [vmem:[%s293 + $0x460] sm:$0xff]
        %v489 = vld [vmem:[%s293 + $0x468] sm:$0xff]
        %v490 = vld [vmem:[%s293 + $0x470] sm:$0xff]
        %v491 = vld [vmem:[%s293 + $0x478] sm:$0xff]
        %v492 = vld [vmem:[%s293 + $0x480] sm:$0xff]
        %v493 = vld [vmem:[%s293 + $0x488] sm:$0xff]
        %v494 = vld [vmem:[%s293 + $0x490] sm:$0xff]
        %v495 = vld [vmem:[%s293 + $0x498] sm:$0xff]
        %v496 = vld [vmem:[%s293 + $0x4a0] sm:$0xff]
        %v497 = vld [vmem:[%s293 + $0x4a8] sm:$0xff]
        %v498 = vld [vmem:[%s293 + $0x4b0] sm:$0xff]
        %v499 = vld [vmem:[%s293 + $0x4b8] sm:$0xff]
        %v500 = vld [vmem:[%s293 + $0x4c0] sm:$0xff]
        %v501 = vld [vmem:[%s293 + $0x4c8] sm:$0xff]
        %v502 = vld [vmem:[%s293 + $0x4d0] sm:$0xff]
        %v503 = vld [vmem:[%s293 + $0x4d8] sm:$0xff]
        %v504 = vld [vmem:[%s293 + $0x4e0] sm:$0xff]
        %v505 = vld [vmem:[%s293 + $0x4e8] sm:$0xff]
        %v506 = vld [vmem:[%s293 + $0x4f0] sm:$0xff]
        %v507 = vld [vmem:[%s293 + $0x4f8] sm:$0xff]
        %v508 = vld [vmem:[%s293 + $0x500] sm:$0xff]
        %v509 = vld [vmem:[%s293 + $0x508] sm:$0xff]
        %v510 = vld [vmem:[%s293 + $0x510] sm:$0xff]
        %v511 = vld [vmem:[%s293 + $0x518] sm:$0xff]
        %v512 = vld [vmem:[%s293 + $0x520] sm:$0xff]
        %v513 = vld [vmem:[%s293 + $0x528] sm:$0xff]
        %v514 = vld [vmem:[%s293 + $0x530] sm:$0xff]
        %v515 = vld [vmem:[%s293 + $0x538] sm:$0xff]
        %v516 = vld [vmem:[%s293 + $0x540] sm:$0xff]
        %v517 = vld [vmem:[%s293 + $0x548] sm:$0xff]
        %v518 = vld [vmem:[%s293 + $0x550] sm:$0xff]
        %v519 = vld [vmem:[%s293 + $0x558] sm:$0xff]
        %v520 = vld [vmem:[%s293 + $0x560] sm:$0xff]
        %v521 = vld [vmem:[%s293 + $0x568] sm:$0xff]
        %v522 = vld [vmem:[%s293 + $0x570] sm:$0xff]
        %v523 = vld [vmem:[%s293 + $0x578] sm:$0xff]
        %v524 = vld [vmem:[%s293 + $0x580] sm:$0xff]
        %v525 = vld [vmem:[%s293 + $0x588] sm:$0xff]
        %v526 = vld [vmem:[%s293 + $0x590] sm:$0xff]
        %v527 = vld [vmem:[%s293 + $0x598] sm:$0xff]
        %v528 = vld [vmem:[%s293 + $0x5a0] sm:$0xff]
        %v529 = vld [vmem:[%s293 + $0x5a8] sm:$0xff]
        %v530 = vld [vmem:[%s293 + $0x5b0] sm:$0xff]
        %v531 = vld [vmem:[%s293 + $0x5b8] sm:$0xff]
        %v532 = vld [vmem:[%s293 + $0x5c0] sm:$0xff]
        %v533 = vld [vmem:[%s293 + $0x5c8] sm:$0xff]
        %v534 = vld [vmem:[%s293 + $0x5d0] sm:$0xff]
        %v535 = vld [vmem:[%s293 + $0x5d8] sm:$0xff]
        %v536 = vld [vmem:[%s293 + $0x5e0] sm:$0xff]
        %v537 = vld [vmem:[%s293 + $0x5e8] sm:$0xff]
        %v538 = vld [vmem:[%s293 + $0x5f0] sm:$0xff]
        %v539 = vld [vmem:[%s293 + $0x5f8] sm:$0xff]
        %v540 = vld [vmem:[%s293 + $0x600] sm:$0xff]
        %v541 = vld [vmem:[%s293 + $0x608] sm:$0xff]
        %v542 = vld [vmem:[%s293 + $0x610] sm:$0xff]
        %v543 = vld [vmem:[%s293 + $0x618] sm:$0xff]
        %v544 = vld [vmem:[%s293 + $0x620] sm:$0xff]
        %v545 = vld [vmem:[%s293 + $0x628] sm:$0xff]
        %v546 = vld [vmem:[%s293 + $0x630] sm:$0xff]
        %v547 = vld [vmem:[%s293 + $0x638] sm:$0xff]
        %v548 = vld [vmem:[%s293 + $0x640] sm:$0xff]
        %v549 = vld [vmem:[%s293 + $0x648] sm:$0xff]
        %v550 = vld [vmem:[%s293 + $0x650] sm:$0xff]
        %v551 = vld [vmem:[%s293 + $0x658] sm:$0xff]
        %v552 = vld [vmem:[%s293 + $0x660] sm:$0xff]
        %v553 = vld [vmem:[%s293 + $0x668] sm:$0xff]
        %v554 = vld [vmem:[%s293 + $0x670] sm:$0xff]
        %v555 = vld [vmem:[%s293 + $0x678] sm:$0xff]
        %v556 = vld [vmem:[%s293 + $0x680] sm:$0xff]
        %v557 = vld [vmem:[%s293 + $0x688] sm:$0xff]
        %v558 = vld [vmem:[%s293 + $0x690] sm:$0xff]
        %v559 = vld [vmem:[%s293 + $0x698] sm:$0xff]
        %v560 = vld [vmem:[%s293 + $0x6a0] sm:$0xff]
        %v561 = vld [vmem:[%s293 + $0x6a8] sm:$0xff]
        %v562 = vld [vmem:[%s293 + $0x6b0] sm:$0xff]
        %v563 = vld [vmem:[%s293 + $0x6b8] sm:$0xff]
        %v564 = vld [vmem:[%s293 + $0x6c0] sm:$0xff]
        %v565 = vld [vmem:[%s293 + $0x6c8] sm:$0xff]
        %v566 = vld [vmem:[%s293 + $0x6d0] sm:$0xff]
        %v567 = vld [vmem:[%s293 + $0x6d8] sm:$0xff]
        %v568 = vld [vmem:[%s293 + $0x6e0] sm:$0xff]
        %v569 = vld [vmem:[%s293 + $0x6e8] sm:$0xff]
        %v570 = vld [vmem:[%s293 + $0x6f0] sm:$0xff]
        %v571 = vld [vmem:[%s293 + $0x6f8] sm:$0xff]
        %v572 = vld [vmem:[%s293 + $0x700] sm:$0xff]
        %v573 = vld [vmem:[%s293 + $0x708] sm:$0xff]
        %v574 = vld [vmem:[%s293 + $0x710] sm:$0xff]
        %v575 = vld [vmem:[%s293 + $0x718] sm:$0xff]
        %v576 = vld [vmem:[%s293 + $0x720] sm:$0xff]
        %v577 = vld [vmem:[%s293 + $0x728] sm:$0xff]
        %v578 = vld [vmem:[%s293 + $0x730] sm:$0xff]
        %v579 = vld [vmem:[%s293 + $0x738] sm:$0xff]
        %v580 = vld [vmem:[%s293 + $0x740] sm:$0xff]
        %v581 = vld [vmem:[%s293 + $0x748] sm:$0xff]
        %v582 = vld [vmem:[%s293 + $0x750] sm:$0xff]
        %v583 = vld [vmem:[%s293 + $0x758] sm:$0xff]
        %v584 = vld [vmem:[%s293 + $0x760] sm:$0xff]
        %v585 = vld [vmem:[%s293 + $0x768] sm:$0xff]
        %v586 = vld [vmem:[%s293 + $0x770] sm:$0xff]
        %v587 = vld [vmem:[%s293 + $0x778] sm:$0xff]
        %v588 = vld [vmem:[%s293 + $0x780] sm:$0xff]
        %v589 = vld [vmem:[%s293 + $0x788] sm:$0xff]
        %v590 = vld [vmem:[%s293 + $0x790] sm:$0xff]
        %v591 = vld [vmem:[%s293 + $0x798] sm:$0xff]
        %v592 = vld [vmem:[%s293 + $0x7a0] sm:$0xff]
        %v593 = vld [vmem:[%s293 + $0x7a8] sm:$0xff]
        %v594 = vld [vmem:[%s293 + $0x7b0] sm:$0xff]
        %v595 = vld [vmem:[%s293 + $0x7b8] sm:$0xff]
        %v596 = vld [vmem:[%s293 + $0x7c0] sm:$0xff]
        %v597 = vld [vmem:[%s293 + $0x7c8] sm:$0xff]
        %v598 = vld [vmem:[%s293 + $0x7d0] sm:$0xff]
        %v599 = vld [vmem:[%s293 + $0x7d8] sm:$0xff]
        %v600 = vld [vmem:[%s293 + $0x7e0] sm:$0xff]
        %v601 = vld [vmem:[%s293 + $0x7e8] sm:$0xff]
        %v602 = vld [vmem:[%s293 + $0x7f0] sm:$0xff]
        %v603 = vld [vmem:[%s293 + $0x7f8] sm:$0xff]
        %v604 = vld [vmem:[%s293 + $0x800] sm:$0xff]
        %v605 = vld [vmem:[%s293 + $0x808] sm:$0xff]
        %v606 = vld [vmem:[%s293 + $0x810] sm:$0xff]
        %v607 = vld [vmem:[%s293 + $0x818] sm:$0xff]
        %v608 = vld [vmem:[%s293 + $0x820] sm:$0xff]
        %v609 = vld [vmem:[%s293 + $0x828] sm:$0xff]
        %v610 = vld [vmem:[%s293 + $0x830] sm:$0xff]
        %v611 = vld [vmem:[%s293 + $0x838] sm:$0xff]
        %v612 = vld [vmem:[%s293 + $0x840] sm:$0xff]
        %v613 = vld [vmem:[%s293 + $0x848] sm:$0xff]
        %v614 = vld [vmem:[%s293 + $0x850] sm:$0xff]
        %v615 = vld [vmem:[%s293 + $0x858] sm:$0xff]
        %v616 = vld [vmem:[%s293 + $0x860] sm:$0xff]
        %v617 = vld [vmem:[%s293 + $0x868] sm:$0xff]
        %v618 = vld [vmem:[%s293 + $0x870] sm:$0xff]
        %v619 = vld [vmem:[%s293 + $0x878] sm:$0xff]
        %v620 = vld [vmem:[%s293 + $0x880] sm:$0xff]
        %v621 = vld [vmem:[%s293 + $0x888] sm:$0xff]
        %v622 = vld [vmem:[%s293 + $0x890] sm:$0xff]
        %v623 = vld [vmem:[%s293 + $0x898] sm:$0xff]
        %v624 = vld [vmem:[%s293 + $0x8a0] sm:$0xff]
        %v625 = vld [vmem:[%s293 + $0x8a8] sm:$0xff]
        %v626 = vld [vmem:[%s293 + $0x8b0] sm:$0xff]
        %v627 = vld [vmem:[%s293 + $0x8b8] sm:$0xff]
        %v628 = vld [vmem:[%s293 + $0x8c0] sm:$0xff]
        %v629 = vld [vmem:[%s293 + $0x8c8] sm:$0xff]
        %v630 = vld [vmem:[%s293 + $0x8d0] sm:$0xff]
        %v631 = vld [vmem:[%s293 + $0x8d8] sm:$0xff]
        %v632 = vld [vmem:[%s293 + $0x8e0] sm:$0xff]
        %v633 = vld [vmem:[%s293 + $0x8e8] sm:$0xff]
        %v634 = vld [vmem:[%s293 + $0x8f0] sm:$0xff]
        %v635 = vld [vmem:[%s293 + $0x8f8] sm:$0xff]
        %v636 = vld [vmem:[%s293 + $0x900] sm:$0xff]
        %v637 = vld [vmem:[%s293 + $0x908] sm:$0xff]
        %v638 = vld [vmem:[%s293 + $0x910] sm:$0xff]
        %v639 = vld [vmem:[%s293 + $0x918] sm:$0xff]
        %v640 = vld [vmem:[%s293 + $0x920] sm:$0xff]
        %v641 = vld [vmem:[%s293 + $0x928] sm:$0xff]
        %v642 = vld [vmem:[%s293 + $0x930] sm:$0xff]
        %v643 = vld [vmem:[%s293 + $0x938] sm:$0xff]
        %v644 = vld [vmem:[%s293 + $0x940] sm:$0xff]
        %v645 = vld [vmem:[%s293 + $0x948] sm:$0xff]
        %v646 = vld [vmem:[%s293 + $0x950] sm:$0xff]
        %v647 = vld [vmem:[%s293 + $0x958] sm:$0xff]
        %v648 = vld [vmem:[%s293 + $0x960] sm:$0xff]
        %v649 = vld [vmem:[%s293 + $0x968] sm:$0xff]
        %v650 = vld [vmem:[%s293 + $0x970] sm:$0xff]
        %v651 = vld [vmem:[%s293 + $0x978] sm:$0xff]
        %v652 = vld [vmem:[%s293 + $0x980] sm:$0xff]
        %v653 = vld [vmem:[%s293 + $0x988] sm:$0xff]
        %v654 = vld [vmem:[%s293 + $0x990] sm:$0xff]
        %v655 = vld [vmem:[%s293 + $0x998] sm:$0xff]
        %v656 = vld [vmem:[%s293 + $0x9a0] sm:$0xff]
        %v657 = vld [vmem:[%s293 + $0x9a8] sm:$0xff]
        %v658 = vld [vmem:[%s293 + $0x9b0] sm:$0xff]
        %v659 = vld [vmem:[%s293 + $0x9b8] sm:$0xff]
        %v660 = vld [vmem:[%s293 + $0x9c0] sm:$0xff]
        %v661 = vld [vmem:[%s293 + $0x9c8] sm:$0xff]
        %v662 = vld [vmem:[%s293 + $0x9d0] sm:$0xff]
        %v663 = vld [vmem:[%s293 + $0x9d8] sm:$0xff]
        %v664 = vld [vmem:[%s293 + $0x9e0] sm:$0xff]
        %v665 = vld [vmem:[%s293 + $0x9e8] sm:$0xff]
        %v666 = vld [vmem:[%s293 + $0x9f0] sm:$0xff]
        %v667 = vld [vmem:[%s293 + $0x9f8] sm:$0xff]
        %v668 = vld [vmem:[%s293 + $0xa00] sm:$0xff]
        %v669 = vld [vmem:[%s293 + $0xa08] sm:$0xff]
        %v670 = vld [vmem:[%s293 + $0xa10] sm:$0xff]
        %v671 = vld [vmem:[%s293 + $0xa18] sm:$0xff]
        %v672 = vld [vmem:[%s293 + $0xa20] sm:$0xff]
        %v673 = vld [vmem:[%s293 + $0xa28] sm:$0xff]
        %v674 = vld [vmem:[%s293 + $0xa30] sm:$0xff]
        %v675 = vld [vmem:[%s293 + $0xa38] sm:$0xff]
        %v676 = vld [vmem:[%s293 + $0xa40] sm:$0xff]
        %v677 = vld [vmem:[%s293 + $0xa48] sm:$0xff]
        %v678 = vld [vmem:[%s293 + $0xa50] sm:$0xff]
        %v679 = vld [vmem:[%s293 + $0xa58] sm:$0xff]
        %v680 = vld [vmem:[%s293 + $0xa60] sm:$0xff]
        %v681 = vld [vmem:[%s293 + $0xa68] sm:$0xff]
        %v682 = vld [vmem:[%s293 + $0xa70] sm:$0xff]
        %v683 = vld [vmem:[%s293 + $0xa78] sm:$0xff]
        %v684 = vld [vmem:[%s293 + $0xa80] sm:$0xff]
        %v685 = vld [vmem:[%s293 + $0xa88] sm:$0xff]
        %v686 = vld [vmem:[%s293 + $0xa90] sm:$0xff]
        %v687 = vld [vmem:[%s293 + $0xa98] sm:$0xff]
        %v688 = vld [vmem:[%s293 + $0xaa0] sm:$0xff]
        %v689 = vld [vmem:[%s293 + $0xaa8] sm:$0xff]
        %v690 = vld [vmem:[%s293 + $0xab0] sm:$0xff]
        %v691 = vld [vmem:[%s293 + $0xab8] sm:$0xff]
        %v692 = vld [vmem:[%s293 + $0xac0] sm:$0xff]
        %v693 = vld [vmem:[%s293 + $0xac8] sm:$0xff]
        %v694 = vld [vmem:[%s293 + $0xad0] sm:$0xff]
        %v695 = vld [vmem:[%s293 + $0xad8] sm:$0xff]
        %v696 = vld [vmem:[%s293 + $0xae0] sm:$0xff]
        %v697 = vld [vmem:[%s293 + $0xae8] sm:$0xff]
        %v698 = vld [vmem:[%s293 + $0xaf0] sm:$0xff]
        %v699 = vld [vmem:[%s293 + $0xaf8] sm:$0xff]
        %v700 = vld [vmem:[%s293 + $0xb00] sm:$0xff]
        %v701 = vld [vmem:[%s293 + $0xb08] sm:$0xff]
        %v702 = vld [vmem:[%s293 + $0xb10] sm:$0xff]
        %v703 = vld [vmem:[%s293 + $0xb18] sm:$0xff]
        %v704 = vld [vmem:[%s293 + $0xb20] sm:$0xff]
        %v705 = vld [vmem:[%s293 + $0xb28] sm:$0xff]
        %v706 = vld [vmem:[%s293 + $0xb30] sm:$0xff]
        %v707 = vld [vmem:[%s293 + $0xb38] sm:$0xff]
        %v708 = vld [vmem:[%s293 + $0xb40] sm:$0xff]
        %v709 = vld [vmem:[%s293 + $0xb48] sm:$0xff]
        %v710 = vld [vmem:[%s293 + $0xb50] sm:$0xff]
        %v711 = vld [vmem:[%s293 + $0xb58] sm:$0xff]
        %v712 = vld [vmem:[%s293 + $0xb60] sm:$0xff]
        %v713 = vld [vmem:[%s293 + $0xb68] sm:$0xff]
        %v714 = vld [vmem:[%s293 + $0xb70] sm:$0xff]
        %v715 = vld [vmem:[%s293 + $0xb78] sm:$0xff]
        %v716 = vld [vmem:[%s293 + $0xb80] sm:$0xff]
        %v717 = vld [vmem:[%s293 + $0xb88] sm:$0xff]
        %v718 = vld [vmem:[%s293 + $0xb90] sm:$0xff]
        %v719 = vld [vmem:[%s293 + $0xb98] sm:$0xff]
        %v720 = vld [vmem:[%s293 + $0xba0] sm:$0xff]
        %v721 = vld [vmem:[%s293 + $0xba8] sm:$0xff]
        %v722 = vld [vmem:[%s293 + $0xbb0] sm:$0xff]
        %v723 = vld [vmem:[%s293 + $0xbb8] sm:$0xff]
        %v724 = vld [vmem:[%s293 + $0xbc0] sm:$0xff]
        %v725 = vld [vmem:[%s293 + $0xbc8] sm:$0xff]
        %v726 = vld [vmem:[%s293 + $0xbd0] sm:$0xff]
        %v727 = vld [vmem:[%s293 + $0xbd8] sm:$0xff]
        %v728 = vld [vmem:[%s293 + $0xbe0] sm:$0xff]
        %v729 = vld [vmem:[%s293 + $0xbe8] sm:$0xff]
        %v730 = vld [vmem:[%s293 + $0xbf0] sm:$0xff]
        %v731 = vld [vmem:[%s293 + $0xbf8] sm:$0xff]
        %v732 = vld [vmem:[%s293 + $0xc00] sm:$0xff]
        %v733 = vld [vmem:[%s293 + $0xc08] sm:$0xff]
        %v734 = vld [vmem:[%s293 + $0xc10] sm:$0xff]
        %v735 = vld [vmem:[%s293 + $0xc18] sm:$0xff]
        %v736 = vld [vmem:[%s293 + $0xc20] sm:$0xff]
        %v737 = vld [vmem:[%s293 + $0xc28] sm:$0xff]
        %v738 = vld [vmem:[%s293 + $0xc30] sm:$0xff]
        %v739 = vld [vmem:[%s293 + $0xc38] sm:$0xff]
        %v740 = vld [vmem:[%s293 + $0xc40] sm:$0xff]
        %v741 = vld [vmem:[%s293 + $0xc48] sm:$0xff]
        %v742 = vld [vmem:[%s293 + $0xc50] sm:$0xff]
        %v743 = vld [vmem:[%s293 + $0xc58] sm:$0xff]
        %v744 = vld [vmem:[%s293 + $0xc60] sm:$0xff]
        %v745 = vld [vmem:[%s293 + $0xc68] sm:$0xff]
        %v746 = vld [vmem:[%s293 + $0xc70] sm:$0xff]
        %v747 = vld [vmem:[%s293 + $0xc78] sm:$0xff]
        %v748 = vld [vmem:[%s293 + $0xc80] sm:$0xff]
        %v749 = vld [vmem:[%s293 + $0xc88] sm:$0xff]
        %v750 = vld [vmem:[%s293 + $0xc90] sm:$0xff]
        %v751 = vld [vmem:[%s293 + $0xc98] sm:$0xff]
        %v752 = vld [vmem:[%s293 + $0xca0] sm:$0xff]
        %v753 = vld [vmem:[%s293 + $0xca8] sm:$0xff]
        %v754 = vld [vmem:[%s293 + $0xcb0] sm:$0xff]
        %v755 = vld [vmem:[%s293 + $0xcb8] sm:$0xff]
        %v756 = vld [vmem:[%s293 + $0xcc0] sm:$0xff]
        %v757 = vld [vmem:[%s293 + $0xcc8] sm:$0xff]
        %v758 = vld [vmem:[%s293 + $0xcd0] sm:$0xff]
        %v759 = vld [vmem:[%s293 + $0xcd8] sm:$0xff]
        %v760 = vld [vmem:[%s293 + $0xce0] sm:$0xff]
        %v761 = vld [vmem:[%s293 + $0xce8] sm:$0xff]
        %v762 = vld [vmem:[%s293 + $0xcf0] sm:$0xff]
        %v763 = vld [vmem:[%s293 + $0xcf8] sm:$0xff]
        %v764 = vld [vmem:[%s293 + $0xd00] sm:$0xff]
        %v765 = vld [vmem:[%s293 + $0xd08] sm:$0xff]
        %v766 = vld [vmem:[%s293 + $0xd10] sm:$0xff]
        %v767 = vld [vmem:[%s293 + $0xd18] sm:$0xff]
        %v768 = vld [vmem:[%s293 + $0xd20] sm:$0xff]
        %v769 = vld [vmem:[%s293 + $0xd28] sm:$0xff]
        %v770 = vld [vmem:[%s293 + $0xd30] sm:$0xff]
        %v771 = vld [vmem:[%s293 + $0xd38] sm:$0xff]
        %v772 = vld [vmem:[%s293 + $0xd40] sm:$0xff]
        %v773 = vld [vmem:[%s293 + $0xd48] sm:$0xff]
        %v774 = vld [vmem:[%s293 + $0xd50] sm:$0xff]
        %v775 = vld [vmem:[%s293 + $0xd58] sm:$0xff]
        %v776 = vld [vmem:[%s293 + $0xd60] sm:$0xff]
        %v777 = vld [vmem:[%s293 + $0xd68] sm:$0xff]
        %v778 = vld [vmem:[%s293 + $0xd70] sm:$0xff]
        %v779 = vld [vmem:[%s293 + $0xd78] sm:$0xff]
        %v780 = vld [vmem:[%s293 + $0xd80] sm:$0xff]
        %v781 = vld [vmem:[%s293 + $0xd88] sm:$0xff]
        %v782 = vld [vmem:[%s293 + $0xd90] sm:$0xff]
        %v783 = vld [vmem:[%s293 + $0xd98] sm:$0xff]
        %v784 = vld [vmem:[%s293 + $0xda0] sm:$0xff]
        %v785 = vld [vmem:[%s293 + $0xda8] sm:$0xff]
        %v786 = vld [vmem:[%s293 + $0xdb0] sm:$0xff]
        %v787 = vld [vmem:[%s293 + $0xdb8] sm:$0xff]
        %v788 = vld [vmem:[%s293 + $0xdc0] sm:$0xff]
        %v789 = vld [vmem:[%s293 + $0xdc8] sm:$0xff]
        %v790 = vld [vmem:[%s293 + $0xdd0] sm:$0xff]
        %v791 = vld [vmem:[%s293 + $0xdd8] sm:$0xff]
        %v792 = vld [vmem:[%s293 + $0xde0] sm:$0xff]
        %v793 = vld [vmem:[%s293 + $0xde8] sm:$0xff]
        %v794 = vld [vmem:[%s293 + $0xdf0] sm:$0xff]
        %v795 = vld [vmem:[%s293 + $0xdf8] sm:$0xff]
        %v796 = vld [vmem:[%s293 + $0xe00] sm:$0xff]
        %v797 = vld [vmem:[%s293 + $0xe08] sm:$0xff]
        %v798 = vld [vmem:[%s293 + $0xe10] sm:$0xff]
        %v799 = vld [vmem:[%s293 + $0xe18] sm:$0xff]
        %v800 = vld [vmem:[%s293 + $0xe20] sm:$0xff]
        %v801 = vld [vmem:[%s293 + $0xe28] sm:$0xff]
        %v802 = vld [vmem:[%s293 + $0xe30] sm:$0xff]
        %v803 = vld [vmem:[%s293 + $0xe38] sm:$0xff]
        %v804 = vld [vmem:[%s293 + $0xe40] sm:$0xff]
        %v805 = vld [vmem:[%s293 + $0xe48] sm:$0xff]
        %v806 = vld [vmem:[%s293 + $0xe50] sm:$0xff]
        %v807 = vld [vmem:[%s293 + $0xe58] sm:$0xff]
        %v808 = vld [vmem:[%s293 + $0xe60] sm:$0xff]
        %v809 = vld [vmem:[%s293 + $0xe68] sm:$0xff]
        %v810 = vld [vmem:[%s293 + $0xe70] sm:$0xff]
        %v811 = vld [vmem:[%s293 + $0xe78] sm:$0xff]
        %v812 = vld [vmem:[%s293 + $0xe80] sm:$0xff]
        %v813 = vld [vmem:[%s293 + $0xe88] sm:$0xff]
        %v814 = vld [vmem:[%s293 + $0xe90] sm:$0xff]
        %v815 = vld [vmem:[%s293 + $0xe98] sm:$0xff]
        %v816 = vld [vmem:[%s293 + $0xea0] sm:$0xff]
        %v817 = vld [vmem:[%s293 + $0xea8] sm:$0xff]
        %v818 = vld [vmem:[%s293 + $0xeb0] sm:$0xff]
        %v819 = vld [vmem:[%s293 + $0xeb8] sm:$0xff]
        %v820 = vld [vmem:[%s293 + $0xec0] sm:$0xff]
        %v821 = vld [vmem:[%s293 + $0xec8] sm:$0xff]
        %v822 = vld [vmem:[%s293 + $0xed0] sm:$0xff]
        %v823 = vld [vmem:[%s293 + $0xed8] sm:$0xff]
        %v824 = vld [vmem:[%s293 + $0xee0] sm:$0xff]
        %v825 = vld [vmem:[%s293 + $0xee8] sm:$0xff]
        %v826 = vld [vmem:[%s293 + $0xef0] sm:$0xff]
        %v827 = vld [vmem:[%s293 + $0xef8] sm:$0xff]
        %v828 = vld [vmem:[%s293 + $0xf00] sm:$0xff]
        %v829 = vld [vmem:[%s293 + $0xf08] sm:$0xff]
        %v830 = vld [vmem:[%s293 + $0xf10] sm:$0xff]
        %v831 = vld [vmem:[%s293 + $0xf18] sm:$0xff]
        %v832 = vld [vmem:[%s293 + $0xf20] sm:$0xff]
        %v833 = vld [vmem:[%s293 + $0xf28] sm:$0xff]
        %v834 = vld [vmem:[%s293 + $0xf30] sm:$0xff]
        %v835 = vld [vmem:[%s293 + $0xf38] sm:$0xff]
        %v836 = vld [vmem:[%s293 + $0xf40] sm:$0xff]
        %v837 = vld [vmem:[%s293 + $0xf48] sm:$0xff]
        %v838 = vld [vmem:[%s293 + $0xf50] sm:$0xff]
        %v839 = vld [vmem:[%s293 + $0xf58] sm:$0xff]
        %v840 = vld [vmem:[%s293 + $0xf60] sm:$0xff]
        %v841 = vld [vmem:[%s293 + $0xf68] sm:$0xff]
        %v842 = vld [vmem:[%s293 + $0xf70] sm:$0xff]
        %v843 = vld [vmem:[%s293 + $0xf78] sm:$0xff]
        %v844 = vld [vmem:[%s293 + $0xf80] sm:$0xff]
        %v845 = vld [vmem:[%s293 + $0xf88] sm:$0xff]
        %v846 = vld [vmem:[%s293 + $0xf90] sm:$0xff]
        %v847 = vld [vmem:[%s293 + $0xf98] sm:$0xff]
        %v848 = vld [vmem:[%s293 + $0xfa0] sm:$0xff]
        %v849 = vld [vmem:[%s293 + $0xfa8] sm:$0xff]
        %v850 = vld [vmem:[%s293 + $0xfb0] sm:$0xff]
        %v851 = vld [vmem:[%s293 + $0xfb8] sm:$0xff]
        %v852 = vld [vmem:[%s293 + $0xfc0] sm:$0xff]
        %v853 = vld [vmem:[%s293 + $0xfc8] sm:$0xff]
        %v854 = vld [vmem:[%s293 + $0xfd0] sm:$0xff]
        %v855 = vld [vmem:[%s293 + $0xfd8] sm:$0xff]
        %v856 = vld [vmem:[%s293 + $0xfe0] sm:$0xff]
        %v857 = vld [vmem:[%s293 + $0xfe8] sm:$0xff]
        %v858 = vld [vmem:[%s293 + $0xff0] sm:$0xff]
        %v859 = vld [vmem:[%s293 + $0xff8] sm:$0xff]
        %v860 = vld [vmem:[%s293 + $0x1000] sm:$0xff]
        %v861 = vld [vmem:[%s293 + $0x1008] sm:$0xff]
        %v862 = vld [vmem:[%s293 + $0x1010] sm:$0xff]
        %v863 = vld [vmem:[%s293 + $0x1018] sm:$0xff]
        %v864 = vld [vmem:[%s293 + $0x1020] sm:$0xff]
        %v865 = vld [vmem:[%s293 + $0x1028] sm:$0xff]
        %v866 = vld [vmem:[%s293 + $0x1030] sm:$0xff]
        %v867 = vld [vmem:[%s293 + $0x1038] sm:$0xff]
        %v868 = vld [vmem:[%s293 + $0x1040] sm:$0xff]
        %v869 = vld [vmem:[%s293 + $0x1048] sm:$0xff]
        %v870 = vld [vmem:[%s293 + $0x1050] sm:$0xff]
        %v871 = vld [vmem:[%s293 + $0x1058] sm:$0xff]
        %v872 = vld [vmem:[%s293 + $0x1060] sm:$0xff]
        %v873 = vld [vmem:[%s293 + $0x1068] sm:$0xff]
        %v874 = vld [vmem:[%s293 + $0x1070] sm:$0xff]
        %v875 = vld [vmem:[%s293 + $0x1078] sm:$0xff]
        %v876 = vld [vmem:[%s293 + $0x1080] sm:$0xff]
        %v877 = vld [vmem:[%s293 + $0x1088] sm:$0xff]
        %v878 = vld [vmem:[%s293 + $0x1090] sm:$0xff]
        %v879 = vld [vmem:[%s293 + $0x1098] sm:$0xff]
        %v880 = vld [vmem:[%s293 + $0x10a0] sm:$0xff]
        %v881 = vld [vmem:[%s293 + $0x10a8] sm:$0xff]
        %v882 = vld [vmem:[%s293 + $0x10b0] sm:$0xff]
        %v883 = vld [vmem:[%s293 + $0x10b8] sm:$0xff]
        %v884 = vld [vmem:[%s293 + $0x10c0] sm:$0xff]
        %v885 = vld [vmem:[%s293 + $0x10c8] sm:$0xff]
        %v886 = vld [vmem:[%s293 + $0x10d0] sm:$0xff]
        %v887 = vld [vmem:[%s293 + $0x10d8] sm:$0xff]
        %v888 = vld [vmem:[%s293 + $0x10e0] sm:$0xff]
        %v889 = vld [vmem:[%s293 + $0x10e8] sm:$0xff]
        %v890 = vld [vmem:[%s293 + $0x10f0] sm:$0xff]
        %v891 = vld [vmem:[%s293 + $0x10f8] sm:$0xff]
        %v892 = vld [vmem:[%s293 + $0x1100] sm:$0xff]
        %v893 = vld [vmem:[%s293 + $0x1108] sm:$0xff]
        %v894 = vld [vmem:[%s293 + $0x1110] sm:$0xff]
        %v895 = vld [vmem:[%s293 + $0x1118] sm:$0xff]
        %v896 = vld [vmem:[%s293 + $0x1120] sm:$0xff]
        %v897 = vld [vmem:[%s293 + $0x1128] sm:$0xff]
        %v898 = vld [vmem:[%s293 + $0x1130] sm:$0xff]
        %v899 = vld [vmem:[%s293 + $0x1138] sm:$0xff]
        %v900 = vld [vmem:[%s293 + $0x1140] sm:$0xff]
        %v901 = vld [vmem:[%s293 + $0x1148] sm:$0xff]
        %v902 = vld [vmem:[%s293 + $0x1150] sm:$0xff]
        %v903 = vld [vmem:[%s293 + $0x1158] sm:$0xff]
        %v904 = vld [vmem:[%s293 + $0x1160] sm:$0xff]
        %v905 = vld [vmem:[%s293 + $0x1168] sm:$0xff]
        %v906 = vld [vmem:[%s293 + $0x1170] sm:$0xff]
        %v907 = vld [vmem:[%s293 + $0x1178] sm:$0xff]
        %v908 = vld [vmem:[%s293 + $0x1180] sm:$0xff]
        %v909 = vld [vmem:[%s293 + $0x1188] sm:$0xff]
        %v910 = vld [vmem:[%s293 + $0x1190] sm:$0xff]
        %v911 = vld [vmem:[%s293 + $0x1198] sm:$0xff]
        %v912 = vld [vmem:[%s293 + $0x11a0] sm:$0xff]
        %v913 = vld [vmem:[%s293 + $0x11a8] sm:$0xff]
        %v914 = vld [vmem:[%s293 + $0x11b0] sm:$0xff]
        %v915 = vld [vmem:[%s293 + $0x11b8] sm:$0xff]
        %v916 = vld [vmem:[%s293 + $0x11c0] sm:$0xff]
        %v917 = vld [vmem:[%s293 + $0x11c8] sm:$0xff]
        %v918 = vld [vmem:[%s293 + $0x11d0] sm:$0xff]
        %v919 = vld [vmem:[%s293 + $0x11d8] sm:$0xff]
        %v920 = vld [vmem:[%s293 + $0x11e0] sm:$0xff]
        %v921 = vld [vmem:[%s293 + $0x11e8] sm:$0xff]
        %v922 = vld [vmem:[%s293 + $0x11f0] sm:$0xff]
        %v923 = vld [vmem:[%s293 + $0x11f8] sm:$0xff]
        %v924 = vld [vmem:[%s293 + $0x1200] sm:$0xff]
        %v925 = vld [vmem:[%s293 + $0x1208] sm:$0xff]
        %v926 = vld [vmem:[%s293 + $0x1210] sm:$0xff]
        %v927 = vld [vmem:[%s293 + $0x1218] sm:$0xff]
        %v928 = vld [vmem:[%s293 + $0x1220] sm:$0xff]
        %v929 = vld [vmem:[%s293 + $0x1228] sm:$0xff]
        %v930 = vld [vmem:[%s293 + $0x1230] sm:$0xff]
        %v931 = vld [vmem:[%s293 + $0x1238] sm:$0xff]
        %v932 = vld [vmem:[%s293 + $0x1240] sm:$0xff]
        %v933 = vld [vmem:[%s293 + $0x1248] sm:$0xff]
        %v934 = vld [vmem:[%s293 + $0x1250] sm:$0xff]
        %v935 = vld [vmem:[%s293 + $0x1258] sm:$0xff]
        %v936 = vld [vmem:[%s293 + $0x1260] sm:$0xff]
        %v937 = vld [vmem:[%s293 + $0x1268] sm:$0xff]
        %v938 = vld [vmem:[%s293 + $0x1270] sm:$0xff]
        %v939 = vld [vmem:[%s293 + $0x1278] sm:$0xff]
        %v940 = vld [vmem:[%s293 + $0x1280] sm:$0xff]
        %v941 = vld [vmem:[%s293 + $0x1288] sm:$0xff]
        %v942 = vld [vmem:[%s293 + $0x1290] sm:$0xff]
        %v943 = vld [vmem:[%s293 + $0x1298] sm:$0xff]
        %v944 = vld [vmem:[%s293 + $0x12a0] sm:$0xff]
        %v945 = vld [vmem:[%s293 + $0x12a8] sm:$0xff]
        %v946 = vld [vmem:[%s293 + $0x12b0] sm:$0xff]
        %v947 = vld [vmem:[%s293 + $0x12b8] sm:$0xff]
        %v948 = vld [vmem:[%s293 + $0x12c0] sm:$0xff]
        %v949 = vld [vmem:[%s293 + $0x12c8] sm:$0xff]
        %v950 = vld [vmem:[%s293 + $0x12d0] sm:$0xff]
        %v951 = vld [vmem:[%s293 + $0x12d8] sm:$0xff]
        %v952 = vld [vmem:[%s293 + $0x12e0] sm:$0xff]
        %v953 = vld [vmem:[%s293 + $0x12e8] sm:$0xff]
        %v954 = vld [vmem:[%s293 + $0x12f0] sm:$0xff]
        %v955 = vld [vmem:[%s293 + $0x12f8] sm:$0xff]
        %v956 = vld [vmem:[%s293 + $0x1300] sm:$0xff]
        %v957 = vld [vmem:[%s293 + $0x1308] sm:$0xff]
        %v958 = vld [vmem:[%s293 + $0x1310] sm:$0xff]
        %v959 = vld [vmem:[%s293 + $0x1318] sm:$0xff]
        %v960 = vld [vmem:[%s293 + $0x1320] sm:$0xff]
        %v961 = vld [vmem:[%s293 + $0x1328] sm:$0xff]
        %v962 = vld [vmem:[%s293 + $0x1330] sm:$0xff]
        %v963 = vld [vmem:[%s293 + $0x1338] sm:$0xff]
        %v964 = vld [vmem:[%s293 + $0x1340] sm:$0xff]
        %v965 = vld [vmem:[%s293 + $0x1348] sm:$0xff]
        %v966 = vld [vmem:[%s293 + $0x1350] sm:$0xff]
        %v967 = vld [vmem:[%s293 + $0x1358] sm:$0xff]
        %v968 = vld [vmem:[%s293 + $0x1360] sm:$0xff]
        %v969 = vld [vmem:[%s293 + $0x1368] sm:$0xff]
        %v970 = vld [vmem:[%s293 + $0x1370] sm:$0xff]
        %v971 = vld [vmem:[%s293 + $0x1378] sm:$0xff]
        %v972 = vld [vmem:[%s293 + $0x1380] sm:$0xff]
        %v973 = vld [vmem:[%s293 + $0x1388] sm:$0xff]
        %v974 = vld [vmem:[%s293 + $0x1390] sm:$0xff]
        %v975 = vld [vmem:[%s293 + $0x1398] sm:$0xff]
        %v976 = vld [vmem:[%s293 + $0x13a0] sm:$0xff]
        %v977 = vld [vmem:[%s293 + $0x13a8] sm:$0xff]
        %v978 = vld [vmem:[%s293 + $0x13b0] sm:$0xff]
        %v979 = vld [vmem:[%s293 + $0x13b8] sm:$0xff]
        %v980 = vld [vmem:[%s293 + $0x13c0] sm:$0xff]
        %v981 = vld [vmem:[%s293 + $0x13c8] sm:$0xff]
        %v982 = vld [vmem:[%s293 + $0x13d0] sm:$0xff]
        %v983 = vld [vmem:[%s293 + $0x13d8] sm:$0xff]
        %v984 = vld [vmem:[%s293 + $0x13e0] sm:$0xff]
        %v985 = vld [vmem:[%s293 + $0x13e8] sm:$0xff]
        %v986 = vld [vmem:[%s293 + $0x13f0] sm:$0xff]
        %v987 = vld [vmem:[%s293 + $0x13f8] sm:$0xff]
        %v988 = vld [vmem:[%s293 + $0x1400] sm:$0xff]
        %v989 = vld [vmem:[%s293 + $0x1408] sm:$0xff]
        %v990 = vld [vmem:[%s293 + $0x1410] sm:$0xff]
        %v991 = vld [vmem:[%s293 + $0x1418] sm:$0xff]
        %v992 = vld [vmem:[%s293 + $0x1420] sm:$0xff]
        %v993 = vld [vmem:[%s293 + $0x1428] sm:$0xff]
        %v994 = vld [vmem:[%s293 + $0x1430] sm:$0xff]
        %v995 = vld [vmem:[%s293 + $0x1438] sm:$0xff]
        %v996 = vld [vmem:[%s293 + $0x1440] sm:$0xff]
        %v997 = vld [vmem:[%s293 + $0x1448] sm:$0xff]
        %v998 = vld [vmem:[%s293 + $0x1450] sm:$0xff]
        %v999 = vld [vmem:[%s293 + $0x1458] sm:$0xff]
        %v1000 = vld [vmem:[%s293 + $0x1460] sm:$0xff]
        %v1001 = vld [vmem:[%s293 + $0x1468] sm:$0xff]
        %v1002 = vld [vmem:[%s293 + $0x1470] sm:$0xff]
        %v1003 = vld [vmem:[%s293 + $0x1478] sm:$0xff]
        %v1004 = vld [vmem:[%s293 + $0x1480] sm:$0xff]
        %v1005 = vld [vmem:[%s293 + $0x1488] sm:$0xff]
        %v1006 = vld [vmem:[%s293 + $0x1490] sm:$0xff]
        %v1007 = vld [vmem:[%s293 + $0x1498] sm:$0xff]
        %v1008 = vld [vmem:[%s293 + $0x14a0] sm:$0xff]
        %v1009 = vld [vmem:[%s293 + $0x14a8] sm:$0xff]
        %v1010 = vld [vmem:[%s293 + $0x14b0] sm:$0xff]
        %v1011 = vld [vmem:[%s293 + $0x14b8] sm:$0xff]
        %v1012 = vld [vmem:[%s293 + $0x14c0] sm:$0xff]
        %v1013 = vld [vmem:[%s293 + $0x14c8] sm:$0xff]
        %v1014 = vld [vmem:[%s293 + $0x14d0] sm:$0xff]
        %v1015 = vld [vmem:[%s293 + $0x14d8] sm:$0xff]
        %v1016 = vld [vmem:[%s293 + $0x14e0] sm:$0xff]
        %v1017 = vld [vmem:[%s293 + $0x14e8] sm:$0xff]
        %v1018 = vld [vmem:[%s293 + $0x14f0] sm:$0xff]
        %v1019 = vld [vmem:[%s293 + $0x14f8] sm:$0xff]
        %v1020 = vld [vmem:[%s293 + $0x1500] sm:$0xff]
        %v1021 = vld [vmem:[%s293 + $0x1508] sm:$0xff]
        %v1022 = vld [vmem:[%s293 + $0x1510] sm:$0xff]
        %v1023 = vld [vmem:[%s293 + $0x1518] sm:$0xff]
        %v1024 = vld [vmem:[%s293 + $0x1520] sm:$0xff]
        %v1025 = vld [vmem:[%s293 + $0x1528] sm:$0xff]
        %v1026 = vld [vmem:[%s293 + $0x1530] sm:$0xff]
        %v1027 = vld [vmem:[%s293 + $0x1538] sm:$0xff]
        %v1028 = vld [vmem:[%s293 + $0x1540] sm:$0xff]
        %v1029 = vld [vmem:[%s293 + $0x1548] sm:$0xff]
        %v1030 = vld [vmem:[%s293 + $0x1550] sm:$0xff]
        %v1031 = vld [vmem:[%s293 + $0x1558] sm:$0xff]
        %v1032 = vld [vmem:[%s293 + $0x1560] sm:$0xff]
        %v1033 = vld [vmem:[%s293 + $0x1568] sm:$0xff]
        %v1034 = vld [vmem:[%s293 + $0x1570] sm:$0xff]
        %v1035 = vld [vmem:[%s293 + $0x1578] sm:$0xff]
        %v1036 = vld [vmem:[%s293 + $0x1580] sm:$0xff]
        %v1037 = vld [vmem:[%s293 + $0x1588] sm:$0xff]
        %v1038 = vld [vmem:[%s293 + $0x1590] sm:$0xff]
        %v1039 = vld [vmem:[%s293 + $0x1598] sm:$0xff]
        %v1040 = vld [vmem:[%s293 + $0x15a0] sm:$0xff]
        %v1041 = vld [vmem:[%s293 + $0x15a8] sm:$0xff]
        %v1042 = vld [vmem:[%s293 + $0x15b0] sm:$0xff]
        %v1043 = vld [vmem:[%s293 + $0x15b8] sm:$0xff]
        %v1044 = vld [vmem:[%s293 + $0x15c0] sm:$0xff]
        %v1045 = vld [vmem:[%s293 + $0x15c8] sm:$0xff]
        %v1046 = vld [vmem:[%s293 + $0x15d0] sm:$0xff]
        %v1047 = vld [vmem:[%s293 + $0x15d8] sm:$0xff]
        %v1048 = vld [vmem:[%s293 + $0x15e0] sm:$0xff]
        %v1049 = vld [vmem:[%s293 + $0x15e8] sm:$0xff]
        %v1050 = vld [vmem:[%s293 + $0x15f0] sm:$0xff]
        %v1051 = vld [vmem:[%s293 + $0x15f8] sm:$0xff]
        %v1052 = vld [vmem:[%s293 + $0x1600] sm:$0xff]
        %v1053 = vld [vmem:[%s293 + $0x1608] sm:$0xff]
        %v1054 = vld [vmem:[%s293 + $0x1610] sm:$0xff]
        %v1055 = vld [vmem:[%s293 + $0x1618] sm:$0xff]
        %v1056 = vld [vmem:[%s293 + $0x1620] sm:$0xff]
        %v1057 = vld [vmem:[%s293 + $0x1628] sm:$0xff]
        %v1058 = vld [vmem:[%s293 + $0x1630] sm:$0xff]
        %v1059 = vld [vmem:[%s293 + $0x1638] sm:$0xff]
        %v1060 = vld [vmem:[%s293 + $0x1640] sm:$0xff]
        %v1061 = vld [vmem:[%s293 + $0x1648] sm:$0xff]
        %v1062 = vld [vmem:[%s293 + $0x1650] sm:$0xff]
        %v1063 = vld [vmem:[%s293 + $0x1658] sm:$0xff]
        %v1064 = vld [vmem:[%s293 + $0x1660] sm:$0xff]
        %v1065 = vld [vmem:[%s293 + $0x1668] sm:$0xff]
        %v1066 = vld [vmem:[%s293 + $0x1670] sm:$0xff]
        %v1067 = vld [vmem:[%s293 + $0x1678] sm:$0xff]
        %v1068 = vld [vmem:[%s293 + $0x1680] sm:$0xff]
        %v1069 = vld [vmem:[%s293 + $0x1688] sm:$0xff]
        %v1070 = vld [vmem:[%s293 + $0x1690] sm:$0xff]
        %v1071 = vld [vmem:[%s293 + $0x1698] sm:$0xff]
        %v1072 = vld [vmem:[%s293 + $0x16a0] sm:$0xff]
        %v1073 = vld [vmem:[%s293 + $0x16a8] sm:$0xff]
        %v1074 = vld [vmem:[%s293 + $0x16b0] sm:$0xff]
        %v1075 = vld [vmem:[%s293 + $0x16b8] sm:$0xff]
        %v1076 = vld [vmem:[%s293 + $0x16c0] sm:$0xff]
        %v1077 = vld [vmem:[%s293 + $0x16c8] sm:$0xff]
        %v1078 = vld [vmem:[%s293 + $0x16d0] sm:$0xff]
        %v1079 = vld [vmem:[%s293 + $0x16d8] sm:$0xff]
        %v1080 = vld [vmem:[%s293 + $0x16e0] sm:$0xff]
        %v1081 = vld [vmem:[%s293 + $0x16e8] sm:$0xff]
        %v1082 = vld [vmem:[%s293 + $0x16f0] sm:$0xff]
        %v1083 = vld [vmem:[%s293 + $0x16f8] sm:$0xff]
        %v1084 = vld [vmem:[%s293 + $0x1700] sm:$0xff]
        %v1085 = vld [vmem:[%s293 + $0x1708] sm:$0xff]
        %v1086 = vld [vmem:[%s293 + $0x1710] sm:$0xff]
        %v1087 = vld [vmem:[%s293 + $0x1718] sm:$0xff]
        %v1088 = vld [vmem:[%s293 + $0x1720] sm:$0xff]
        %v1089 = vld [vmem:[%s293 + $0x1728] sm:$0xff]
        %v1090 = vld [vmem:[%s293 + $0x1730] sm:$0xff]
        %v1091 = vld [vmem:[%s293 + $0x1738] sm:$0xff]
        %v1092 = vld [vmem:[%s293 + $0x1740] sm:$0xff]
        %v1093 = vld [vmem:[%s293 + $0x1748] sm:$0xff]
        %v1094 = vld [vmem:[%s293 + $0x1750] sm:$0xff]
        %v1095 = vld [vmem:[%s293 + $0x1758] sm:$0xff]
        %v1096 = vld [vmem:[%s293 + $0x1760] sm:$0xff]
        %v1097 = vld [vmem:[%s293 + $0x1768] sm:$0xff]
        %v1098 = vld [vmem:[%s293 + $0x1770] sm:$0xff]
        %v1099 = vld [vmem:[%s293 + $0x1778] sm:$0xff]
        %v1100 = vld [vmem:[%s293 + $0x1780] sm:$0xff]
        %v1101 = vld [vmem:[%s293 + $0x1788] sm:$0xff]
        %v1102 = vld [vmem:[%s293 + $0x1790] sm:$0xff]
        %v1103 = vld [vmem:[%s293 + $0x1798] sm:$0xff]
        %v1104 = vld [vmem:[%s293 + $0x17a0] sm:$0xff]
        %v1105 = vld [vmem:[%s293 + $0x17a8] sm:$0xff]
        %v1106 = vld [vmem:[%s293 + $0x17b0] sm:$0xff]
        %v1107 = vld [vmem:[%s293 + $0x17b8] sm:$0xff]
        %v1108 = vld [vmem:[%s293 + $0x17c0] sm:$0xff]
        %v1109 = vld [vmem:[%s293 + $0x17c8] sm:$0xff]
        %v1110 = vld [vmem:[%s293 + $0x17d0] sm:$0xff]
        %v1111 = vld [vmem:[%s293 + $0x17d8] sm:$0xff]
        %v1112 = vld [vmem:[%s293 + $0x17e0] sm:$0xff]
        %v1113 = vld [vmem:[%s293 + $0x17e8] sm:$0xff]
        %v1114 = vld [vmem:[%s293 + $0x17f0] sm:$0xff]
        %v1115 = vld [vmem:[%s293 + $0x17f8] sm:$0xff]
        %v1116 = vld [vmem:[%s293 + $0x1800] sm:$0xff]
        %v1117 = vld [vmem:[%s293 + $0x1808] sm:$0xff]
        %v1118 = vld [vmem:[%s293 + $0x1810] sm:$0xff]
        %v1119 = vld [vmem:[%s293 + $0x1818] sm:$0xff]
        %v1120 = vld [vmem:[%s293 + $0x1820] sm:$0xff]
        %v1121 = vld [vmem:[%s293 + $0x1828] sm:$0xff]
        %v1122 = vld [vmem:[%s293 + $0x1830] sm:$0xff]
        %v1123 = vld [vmem:[%s293 + $0x1838] sm:$0xff]
        %v1124 = vld [vmem:[%s293 + $0x1840] sm:$0xff]
        %v1125 = vld [vmem:[%s293 + $0x1848] sm:$0xff]
        %v1126 = vld [vmem:[%s293 + $0x1850] sm:$0xff]
        %v1127 = vld [vmem:[%s293 + $0x1858] sm:$0xff]
        %v1128 = vld [vmem:[%s293 + $0x1860] sm:$0xff]
        %v1129 = vld [vmem:[%s293 + $0x1868] sm:$0xff]
        %v1130 = vld [vmem:[%s293 + $0x1870] sm:$0xff]
        %v1131 = vld [vmem:[%s293 + $0x1878] sm:$0xff]
        %v1132 = vld [vmem:[%s293 + $0x1880] sm:$0xff]
        %v1133 = vld [vmem:[%s293 + $0x1888] sm:$0xff]
        %v1134 = vld [vmem:[%s293 + $0x1890] sm:$0xff]
        %v1135 = vld [vmem:[%s293 + $0x1898] sm:$0xff]
        %v1136 = vld [vmem:[%s293 + $0x18a0] sm:$0xff]
        %v1137 = vld [vmem:[%s293 + $0x18a8] sm:$0xff]
        %v1138 = vld [vmem:[%s293 + $0x18b0] sm:$0xff]
        %v1139 = vld [vmem:[%s293 + $0x18b8] sm:$0xff]
        %v1140 = vld [vmem:[%s293 + $0x18c0] sm:$0xff]
        %v1141 = vld [vmem:[%s293 + $0x18c8] sm:$0xff]
        %v1142 = vld [vmem:[%s293 + $0x18d0] sm:$0xff]
        %v1143 = vld [vmem:[%s293 + $0x18d8] sm:$0xff]
        %v1144 = vld [vmem:[%s293 + $0x18e0] sm:$0xff]
        %v1145 = vld [vmem:[%s293 + $0x18e8] sm:$0xff]
        %v1146 = vld [vmem:[%s293 + $0x18f0] sm:$0xff]
        %v1147 = vld [vmem:[%s293 + $0x18f8] sm:$0xff]
        %v1148 = vld [vmem:[%s293 + $0x1900] sm:$0xff]
        %v1149 = vld [vmem:[%s293 + $0x1908] sm:$0xff]
        %v1150 = vld [vmem:[%s293 + $0x1910] sm:$0xff]
        %v1151 = vld [vmem:[%s293 + $0x1918] sm:$0xff]
        %v1152 = vld [vmem:[%s293 + $0x1920] sm:$0xff]
        %v1153 = vld [vmem:[%s293 + $0x1928] sm:$0xff]
        %v1154 = vld [vmem:[%s293 + $0x1930] sm:$0xff]
        %v1155 = vld [vmem:[%s293 + $0x1938] sm:$0xff]
        %v1156 = vld [vmem:[%s293 + $0x1940] sm:$0xff]
        %v1157 = vld [vmem:[%s293 + $0x1948] sm:$0xff]
        %v1158 = vld [vmem:[%s293 + $0x1950] sm:$0xff]
        %v1159 = vld [vmem:[%s293 + $0x1958] sm:$0xff]
        %v1160 = vld [vmem:[%s293 + $0x1960] sm:$0xff]
        %v1161 = vld [vmem:[%s293 + $0x1968] sm:$0xff]
        %v1162 = vld [vmem:[%s293 + $0x1970] sm:$0xff]
        %v1163 = vld [vmem:[%s293 + $0x1978] sm:$0xff]
        %v1164 = vld [vmem:[%s293 + $0x1980] sm:$0xff]
        %v1165 = vld [vmem:[%s293 + $0x1988] sm:$0xff]
        %v1166 = vld [vmem:[%s293 + $0x1990] sm:$0xff]
        %v1167 = vld [vmem:[%s293 + $0x1998] sm:$0xff]
        %v1168 = vld [vmem:[%s293 + $0x19a0] sm:$0xff]
        %v1169 = vld [vmem:[%s293 + $0x19a8] sm:$0xff]
        %v1170 = vld [vmem:[%s293 + $0x19b0] sm:$0xff]
        %v1171 = vld [vmem:[%s293 + $0x19b8] sm:$0xff]
        %v1172 = vld [vmem:[%s293 + $0x19c0] sm:$0xff]
        %v1173 = vld [vmem:[%s293 + $0x19c8] sm:$0xff]
        %v1174 = vld [vmem:[%s293 + $0x19d0] sm:$0xff]
        %v1175 = vld [vmem:[%s293 + $0x19d8] sm:$0xff]
        %v1176 = vld [vmem:[%s293 + $0x19e0] sm:$0xff]
        %v1177 = vld [vmem:[%s293 + $0x19e8] sm:$0xff]
        %v1178 = vld [vmem:[%s293 + $0x19f0] sm:$0xff]
        %v1179 = vld [vmem:[%s293 + $0x19f8] sm:$0xff]
        %v1180 = vld [vmem:[%s293 + $0x1a00] sm:$0xff]
        %v1181 = vld [vmem:[%s293 + $0x1a08] sm:$0xff]
        %v1182 = vld [vmem:[%s293 + $0x1a10] sm:$0xff]
        %v1183 = vld [vmem:[%s293 + $0x1a18] sm:$0xff]
        %v1184 = vld [vmem:[%s293 + $0x1a20] sm:$0xff]
        %v1185 = vld [vmem:[%s293 + $0x1a28] sm:$0xff]
        %v1186 = vld [vmem:[%s293 + $0x1a30] sm:$0xff]
        %v1187 = vld [vmem:[%s293 + $0x1a38] sm:$0xff]
        %v1188 = vld [vmem:[%s293 + $0x1a40] sm:$0xff]
        %v1189 = vld [vmem:[%s293 + $0x1a48] sm:$0xff]
        %v1190 = vld [vmem:[%s293 + $0x1a50] sm:$0xff]
        %v1191 = vld [vmem:[%s293 + $0x1a58] sm:$0xff]
        %v1192 = vld [vmem:[%s293 + $0x1a60] sm:$0xff]
        %v1193 = vld [vmem:[%s293 + $0x1a68] sm:$0xff]
        %v1194 = vld [vmem:[%s293 + $0x1a70] sm:$0xff]
        %v1195 = vld [vmem:[%s293 + $0x1a78] sm:$0xff]
        %v1196 = vld [vmem:[%s293 + $0x1a80] sm:$0xff]
        %v1197 = vld [vmem:[%s293 + $0x1a88] sm:$0xff]
        %v1198 = vld [vmem:[%s293 + $0x1a90] sm:$0xff]
        %v1199 = vld [vmem:[%s293 + $0x1a98] sm:$0xff]
        %v1200 = vld [vmem:[%s293 + $0x1aa0] sm:$0xff]
        %v1201 = vld [vmem:[%s293 + $0x1aa8] sm:$0xff]
        %v1202 = vld [vmem:[%s293 + $0x1ab0] sm:$0xff]
        %v1203 = vld [vmem:[%s293 + $0x1ab8] sm:$0xff]
        %v1204 = vld [vmem:[%s293 + $0x1ac0] sm:$0xff]
        %v1205 = vld [vmem:[%s293 + $0x1ac8] sm:$0xff]
        %v1206 = vld [vmem:[%s293 + $0x1ad0] sm:$0xff]
        %v1207 = vld [vmem:[%s293 + $0x1ad8] sm:$0xff]
        %v1208 = vld [vmem:[%s293 + $0x1ae0] sm:$0xff]
        %v1209 = vld [vmem:[%s293 + $0x1ae8] sm:$0xff]
        %v1210 = vld [vmem:[%s293 + $0x1af0] sm:$0xff]
        %v1211 = vld [vmem:[%s293 + $0x1af8] sm:$0xff]
        %v1212 = vld [vmem:[%s303] sm:$0xff]
        %v1213 = vld [vmem:[%s303 + $0x8] sm:$0xff]
        %v1214 = vld [vmem:[%s303 + $0x10] sm:$0x3]
        %v1218 = vperm.slane %v1212, 0
        %v1219 = vperm.slane %v1212, 1
        %v1220 = vperm.slane %v1212, 2
        %v1221 = vperm.slane %v1212, 3
        %v1222 = vperm.slane %v1212, 4
        %v1223 = vperm.slane %v1212, 5
        %v1224 = vperm.slane %v1212, 6
        %v1225 = vperm.slane %v1212, 7
        %v1226 = vperm.slane %v1213, 0
        %v1227 = vperm.slane %v1213, 1
        %v1228 = vperm.slane %v1213, 2
        %v1229 = vperm.slane %v1213, 3
        %v1230 = vperm.slane %v1213, 4
        %v1231 = vperm.slane %v1213, 5
        %v1232 = vperm.slane %v1213, 6
        %v1233 = vperm.slane %v1213, 7
        %v1234 = vperm.slane %v1214, 0
        %v1235 = vperm.slane %v1214, 1
        %v1257 = vunpack.c.l.b16 %v345
        %v1258 = vunpack.c.h.b16 %v345
        %v1259 = vunpack.c.l.b16 %v346
        %v1260 = vunpack.c.h.b16 %v346
        %v1261 = vunpack.c.l.b16 %v347
        %v1262 = vunpack.c.h.b16 %v347
        %v1263 = vpack.c.b16 %v1257, %v1257
        %v1264 = vpack.c.b16 %v1258, %v1258
        %v1265 = vpack.c.b16 %v1259, %v1259
        %v1266 = vpack.c.b16 %v1260, %v1260
        %v1267 = vpack.c.b16 %v1261, %v1261
        %v1268 = vpack.c.b16 %v1262, %v1262
        %v2139 = vunpack.c.l.b16 %v348
        %v2140 = vunpack.c.h.b16 %v348
        %v2141 = vunpack.c.l.b16 %v349
        %v2142 = vunpack.c.h.b16 %v349
        %v2143 = vunpack.c.l.b16 %v350
        %v2144 = vunpack.c.h.b16 %v350
        %v2145 = vunpack.c.l.b16 %v351
        %v2146 = vunpack.c.h.b16 %v351
        %v2147 = vunpack.c.l.b16 %v352
        %v2148 = vunpack.c.h.b16 %v352
        %v2149 = vunpack.c.l.b16 %v353
        %v2150 = vunpack.c.h.b16 %v353
        %v2151 = vunpack.c.l.b16 %v354
        %v2152 = vunpack.c.h.b16 %v354
        %v2153 = vunpack.c.l.b16 %v355
        %v2154 = vunpack.c.h.b16 %v355
        %v2155 = vunpack.c.l.b16 %v356
        %v2156 = vunpack.c.h.b16 %v356
        %v2157 = vunpack.c.l.b16 %v357
        %v2158 = vunpack.c.h.b16 %v357
        %v2159 = vunpack.c.l.b16 %v358
        %v2160 = vunpack.c.h.b16 %v358
        %v2161 = vunpack.c.l.b16 %v359
        %v2162 = vunpack.c.h.b16 %v359
        %v2163 = vunpack.c.l.b16 %v360
        %v2164 = vunpack.c.h.b16 %v360
        %v2165 = vunpack.c.l.b16 %v361
        %v2166 = vunpack.c.h.b16 %v361
        %v2167 = vunpack.c.l.b16 %v362
        %v2168 = vunpack.c.h.b16 %v362
        %v2169 = vunpack.c.l.b16 %v363
        %v2170 = vunpack.c.h.b16 %v363
        %v2171 = vunpack.c.l.b16 %v364
        %v2172 = vunpack.c.h.b16 %v364
        %v2173 = vunpack.c.l.b16 %v365
        %v2174 = vunpack.c.h.b16 %v365
        %v2175 = vunpack.c.l.b16 %v366
        %v2176 = vunpack.c.h.b16 %v366
        %v2177 = vunpack.c.l.b16 %v367
        %v2178 = vunpack.c.h.b16 %v367
        %v2179 = vunpack.c.l.b16 %v368
        %v2180 = vunpack.c.h.b16 %v368
        %v2181 = vunpack.c.l.b16 %v369
        %v2182 = vunpack.c.h.b16 %v369
        %v2183 = vunpack.c.l.b16 %v370
        %v2184 = vunpack.c.h.b16 %v370
        %v2185 = vunpack.c.l.b16 %v371
        %v2186 = vunpack.c.h.b16 %v371
        %v2187 = vunpack.c.l.b16 %v372
        %v2188 = vunpack.c.h.b16 %v372
        %v2189 = vunpack.c.l.b16 %v373
        %v2190 = vunpack.c.h.b16 %v373
        %v2191 = vunpack.c.l.b16 %v374
        %v2192 = vunpack.c.h.b16 %v374
        %v2193 = vunpack.c.l.b16 %v375
        %v2194 = vunpack.c.h.b16 %v375
        %v2195 = vunpack.c.l.b16 %v376
        %v2196 = vunpack.c.h.b16 %v376
        %v2197 = vunpack.c.l.b16 %v377
        %v2198 = vunpack.c.h.b16 %v377
        %v2199 = vunpack.c.l.b16 %v378
        %v2200 = vunpack.c.h.b16 %v378
        %v2201 = vunpack.c.l.b16 %v379
        %v2202 = vunpack.c.h.b16 %v379
        %v2203 = vunpack.c.l.b16 %v380
        %v2204 = vunpack.c.h.b16 %v380
        %v2205 = vunpack.c.l.b16 %v381
        %v2206 = vunpack.c.h.b16 %v381
        %v2207 = vunpack.c.l.b16 %v382
        %v2208 = vunpack.c.h.b16 %v382
        %v2209 = vunpack.c.l.b16 %v383
        %v2210 = vunpack.c.h.b16 %v383
        %v2211 = vunpack.c.l.b16 %v384
        %v2212 = vunpack.c.h.b16 %v384
        %v2213 = vunpack.c.l.b16 %v385
        %v2214 = vunpack.c.h.b16 %v385
        %v2215 = vunpack.c.l.b16 %v386
        %v2216 = vunpack.c.h.b16 %v386
        %v2217 = vunpack.c.l.b16 %v387
        %v2218 = vunpack.c.h.b16 %v387
        %v2219 = vunpack.c.l.b16 %v388
        %v2220 = vunpack.c.h.b16 %v388
        %v2221 = vunpack.c.l.b16 %v389
        %v2222 = vunpack.c.h.b16 %v389
        %v2223 = vunpack.c.l.b16 %v390
        %v2224 = vunpack.c.h.b16 %v390
        %v2225 = vunpack.c.l.b16 %v391
        %v2226 = vunpack.c.h.b16 %v391
        %v2227 = vunpack.c.l.b16 %v392
        %v2228 = vunpack.c.h.b16 %v392
        %v2229 = vunpack.c.l.b16 %v393
        %v2230 = vunpack.c.h.b16 %v393
        %v2231 = vunpack.c.l.b16 %v394
        %v2232 = vunpack.c.h.b16 %v394
        %v2233 = vunpack.c.l.b16 %v395
        %v2234 = vunpack.c.h.b16 %v395
        %v2235 = vunpack.c.l.b16 %v396
        %v2236 = vunpack.c.h.b16 %v396
        %v2237 = vunpack.c.l.b16 %v397
        %v2238 = vunpack.c.h.b16 %v397
        %v2239 = vunpack.c.l.b16 %v398
        %v2240 = vunpack.c.h.b16 %v398
        %v2241 = vunpack.c.l.b16 %v399
        %v2242 = vunpack.c.h.b16 %v399
        %v2243 = vunpack.c.l.b16 %v400
        %v2244 = vunpack.c.h.b16 %v400
        %v2245 = vunpack.c.l.b16 %v401
        %v2246 = vunpack.c.h.b16 %v401
        %v2247 = vunpack.c.l.b16 %v402
        %v2248 = vunpack.c.h.b16 %v402
        %v2249 = vunpack.c.l.b16 %v403
        %v2250 = vunpack.c.h.b16 %v403
        %v2251 = vunpack.c.l.b16 %v404
        %v2252 = vunpack.c.h.b16 %v404
        %v2253 = vunpack.c.l.b16 %v405
        %v2254 = vunpack.c.h.b16 %v405
        %v2255 = vunpack.c.l.b16 %v406
        %v2256 = vunpack.c.h.b16 %v406
        %v2257 = vunpack.c.l.b16 %v407
        %v2258 = vunpack.c.h.b16 %v407
        %v2259 = vunpack.c.l.b16 %v408
        %v2260 = vunpack.c.h.b16 %v408
        %v2261 = vunpack.c.l.b16 %v409
        %v2262 = vunpack.c.h.b16 %v409
        %v2263 = vunpack.c.l.b16 %v410
        %v2264 = vunpack.c.h.b16 %v410
        %v2265 = vunpack.c.l.b16 %v411
        %v2266 = vunpack.c.h.b16 %v411
        %v2267 = vunpack.c.l.b16 %v412
        %v2268 = vunpack.c.h.b16 %v412
        %v2269 = vunpack.c.l.b16 %v413
        %v2270 = vunpack.c.h.b16 %v413
        %v2271 = vunpack.c.l.b16 %v414
        %v2272 = vunpack.c.h.b16 %v414
        %v2273 = vunpack.c.l.b16 %v415
        %v2274 = vunpack.c.h.b16 %v415
        %v2275 = vunpack.c.l.b16 %v416
        %v2276 = vunpack.c.h.b16 %v416
        %v2277 = vunpack.c.l.b16 %v417
        %v2278 = vunpack.c.h.b16 %v417
        %v2279 = vunpack.c.l.b16 %v418
        %v2280 = vunpack.c.h.b16 %v418
        %v2281 = vunpack.c.l.b16 %v419
        %v2282 = vunpack.c.h.b16 %v419
        %v2283 = vunpack.c.l.b16 %v420
        %v2284 = vunpack.c.h.b16 %v420
        %v2285 = vunpack.c.l.b16 %v421
        %v2286 = vunpack.c.h.b16 %v421
        %v2287 = vunpack.c.l.b16 %v422
        %v2288 = vunpack.c.h.b16 %v422
        %v2289 = vunpack.c.l.b16 %v423
        %v2290 = vunpack.c.h.b16 %v423
        %v2291 = vunpack.c.l.b16 %v424
        %v2292 = vunpack.c.h.b16 %v424
        %v2293 = vunpack.c.l.b16 %v425
        %v2294 = vunpack.c.h.b16 %v425
        %v2295 = vunpack.c.l.b16 %v426
        %v2296 = vunpack.c.h.b16 %v426
        %v2297 = vunpack.c.l.b16 %v427
        %v2298 = vunpack.c.h.b16 %v427
        %v2299 = vunpack.c.l.b16 %v428
        %v2300 = vunpack.c.h.b16 %v428
        %v2301 = vunpack.c.l.b16 %v429
        %v2302 = vunpack.c.h.b16 %v429
        %v2303 = vunpack.c.l.b16 %v430
        %v2304 = vunpack.c.h.b16 %v430
        %v2305 = vunpack.c.l.b16 %v431
        %v2306 = vunpack.c.h.b16 %v431
        %v2307 = vunpack.c.l.b16 %v432
        %v2308 = vunpack.c.h.b16 %v432
        %v2309 = vunpack.c.l.b16 %v433
        %v2310 = vunpack.c.h.b16 %v433
        %v2311 = vunpack.c.l.b16 %v434
        %v2312 = vunpack.c.h.b16 %v434
        %v2313 = vunpack.c.l.b16 %v435
        %v2314 = vunpack.c.h.b16 %v435
        %v2315 = vunpack.c.l.b16 %v436
        %v2316 = vunpack.c.h.b16 %v436
        %v2317 = vunpack.c.l.b16 %v437
        %v2318 = vunpack.c.h.b16 %v437
        %v2319 = vunpack.c.l.b16 %v438
        %v2320 = vunpack.c.h.b16 %v438
        %v2321 = vunpack.c.l.b16 %v439
        %v2322 = vunpack.c.h.b16 %v439
        %v2323 = vunpack.c.l.b16 %v440
        %v2324 = vunpack.c.h.b16 %v440
        %v2325 = vunpack.c.l.b16 %v441
        %v2326 = vunpack.c.h.b16 %v441
        %v2327 = vunpack.c.l.b16 %v442
        %v2328 = vunpack.c.h.b16 %v442
        %v2329 = vunpack.c.l.b16 %v443
        %v2330 = vunpack.c.h.b16 %v443
        %v2331 = vunpack.c.l.b16 %v444
        %v2332 = vunpack.c.h.b16 %v444
        %v2333 = vunpack.c.l.b16 %v445
        %v2334 = vunpack.c.h.b16 %v445
        %v2335 = vunpack.c.l.b16 %v446
        %v2336 = vunpack.c.h.b16 %v446
        %v2337 = vunpack.c.l.b16 %v447
        %v2338 = vunpack.c.h.b16 %v447
        %v2339 = vunpack.c.l.b16 %v448
        %v2340 = vunpack.c.h.b16 %v448
        %v2341 = vunpack.c.l.b16 %v449
        %v2342 = vunpack.c.h.b16 %v449
        %v2343 = vunpack.c.l.b16 %v450
        %v2344 = vunpack.c.h.b16 %v450
        %v2345 = vunpack.c.l.b16 %v451
        %v2346 = vunpack.c.h.b16 %v451
        %v2347 = vunpack.c.l.b16 %v452
        %v2348 = vunpack.c.h.b16 %v452
        %v2349 = vunpack.c.l.b16 %v453
        %v2350 = vunpack.c.h.b16 %v453
        %v2351 = vunpack.c.l.b16 %v454
        %v2352 = vunpack.c.h.b16 %v454
        %v2353 = vunpack.c.l.b16 %v455
        %v2354 = vunpack.c.h.b16 %v455
        %v2355 = vunpack.c.l.b16 %v456
        %v2356 = vunpack.c.h.b16 %v456
        %v2357 = vunpack.c.l.b16 %v457
        %v2358 = vunpack.c.h.b16 %v457
        %v2359 = vunpack.c.l.b16 %v458
        %v2360 = vunpack.c.h.b16 %v458
        %v2361 = vunpack.c.l.b16 %v459
        %v2362 = vunpack.c.h.b16 %v459
        %v2363 = vunpack.c.l.b16 %v460
        %v2364 = vunpack.c.h.b16 %v460
        %v2365 = vunpack.c.l.b16 %v461
        %v2366 = vunpack.c.h.b16 %v461
        %v2367 = vunpack.c.l.b16 %v462
        %v2368 = vunpack.c.h.b16 %v462
        %v2369 = vunpack.c.l.b16 %v463
        %v2370 = vunpack.c.h.b16 %v463
        %v2371 = vunpack.c.l.b16 %v464
        %v2372 = vunpack.c.h.b16 %v464
        %v2373 = vunpack.c.l.b16 %v465
        %v2374 = vunpack.c.h.b16 %v465
        %v2375 = vunpack.c.l.b16 %v466
        %v2376 = vunpack.c.h.b16 %v466
        %v2377 = vunpack.c.l.b16 %v467
        %v2378 = vunpack.c.h.b16 %v467
        %v2379 = vunpack.c.l.b16 %v468
        %v2380 = vunpack.c.h.b16 %v468
        %v2381 = vunpack.c.l.b16 %v469
        %v2382 = vunpack.c.h.b16 %v469
        %v2383 = vunpack.c.l.b16 %v470
        %v2384 = vunpack.c.h.b16 %v470
        %v2385 = vunpack.c.l.b16 %v471
        %v2386 = vunpack.c.h.b16 %v471
        %v2387 = vunpack.c.l.b16 %v472
        %v2388 = vunpack.c.h.b16 %v472
        %v2389 = vunpack.c.l.b16 %v473
        %v2390 = vunpack.c.h.b16 %v473
        %v2391 = vunpack.c.l.b16 %v474
        %v2392 = vunpack.c.h.b16 %v474
        %v2393 = vunpack.c.l.b16 %v475
        %v2394 = vunpack.c.h.b16 %v475
        %v2395 = vunpack.c.l.b16 %v476
        %v2396 = vunpack.c.h.b16 %v476
        %v2397 = vunpack.c.l.b16 %v477
        %v2398 = vunpack.c.h.b16 %v477
        %v2399 = vunpack.c.l.b16 %v478
        %v2400 = vunpack.c.h.b16 %v478
        %v2401 = vunpack.c.l.b16 %v479
        %v2402 = vunpack.c.h.b16 %v479
        %v2403 = vunpack.c.l.b16 %v480
        %v2404 = vunpack.c.h.b16 %v480
        %v2405 = vunpack.c.l.b16 %v481
        %v2406 = vunpack.c.h.b16 %v481
        %v2407 = vunpack.c.l.b16 %v482
        %v2408 = vunpack.c.h.b16 %v482
        %v2409 = vunpack.c.l.b16 %v483
        %v2410 = vunpack.c.h.b16 %v483
        %v2411 = vunpack.c.l.b16 %v484
        %v2412 = vunpack.c.h.b16 %v484
        %v2413 = vunpack.c.l.b16 %v485
        %v2414 = vunpack.c.h.b16 %v485
        %v2415 = vunpack.c.l.b16 %v486
        %v2416 = vunpack.c.h.b16 %v486
        %v2417 = vunpack.c.l.b16 %v487
        %v2418 = vunpack.c.h.b16 %v487
        %v2419 = vunpack.c.l.b16 %v488
        %v2420 = vunpack.c.h.b16 %v488
        %v2421 = vunpack.c.l.b16 %v489
        %v2422 = vunpack.c.h.b16 %v489
        %v2423 = vunpack.c.l.b16 %v490
        %v2424 = vunpack.c.h.b16 %v490
        %v2425 = vunpack.c.l.b16 %v491
        %v2426 = vunpack.c.h.b16 %v491
        %v2427 = vunpack.c.l.b16 %v492
        %v2428 = vunpack.c.h.b16 %v492
        %v2429 = vunpack.c.l.b16 %v493
        %v2430 = vunpack.c.h.b16 %v493
        %v2431 = vunpack.c.l.b16 %v494
        %v2432 = vunpack.c.h.b16 %v494
        %v2433 = vunpack.c.l.b16 %v495
        %v2434 = vunpack.c.h.b16 %v495
        %v2435 = vunpack.c.l.b16 %v496
        %v2436 = vunpack.c.h.b16 %v496
        %v2437 = vunpack.c.l.b16 %v497
        %v2438 = vunpack.c.h.b16 %v497
        %v2439 = vunpack.c.l.b16 %v498
        %v2440 = vunpack.c.h.b16 %v498
        %v2441 = vunpack.c.l.b16 %v499
        %v2442 = vunpack.c.h.b16 %v499
        %v2443 = vunpack.c.l.b16 %v500
        %v2444 = vunpack.c.h.b16 %v500
        %v2445 = vunpack.c.l.b16 %v501
        %v2446 = vunpack.c.h.b16 %v501
        %v2447 = vunpack.c.l.b16 %v502
        %v2448 = vunpack.c.h.b16 %v502
        %v2449 = vunpack.c.l.b16 %v503
        %v2450 = vunpack.c.h.b16 %v503
        %v2451 = vunpack.c.l.b16 %v504
        %v2452 = vunpack.c.h.b16 %v504
        %v2453 = vunpack.c.l.b16 %v505
        %v2454 = vunpack.c.h.b16 %v505
        %v2455 = vunpack.c.l.b16 %v506
        %v2456 = vunpack.c.h.b16 %v506
        %v2457 = vunpack.c.l.b16 %v507
        %v2458 = vunpack.c.h.b16 %v507
        %v2459 = vunpack.c.l.b16 %v508
        %v2460 = vunpack.c.h.b16 %v508
        %v2461 = vunpack.c.l.b16 %v509
        %v2462 = vunpack.c.h.b16 %v509
        %v2463 = vunpack.c.l.b16 %v510
        %v2464 = vunpack.c.h.b16 %v510
        %v2465 = vunpack.c.l.b16 %v511
        %v2466 = vunpack.c.h.b16 %v511
        %v2467 = vunpack.c.l.b16 %v512
        %v2468 = vunpack.c.h.b16 %v512
        %v2469 = vunpack.c.l.b16 %v513
        %v2470 = vunpack.c.h.b16 %v513
        %v2471 = vunpack.c.l.b16 %v514
        %v2472 = vunpack.c.h.b16 %v514
        %v2473 = vunpack.c.l.b16 %v515
        %v2474 = vunpack.c.h.b16 %v515
        %v2475 = vunpack.c.l.b16 %v516
        %v2476 = vunpack.c.h.b16 %v516
        %v2477 = vunpack.c.l.b16 %v517
        %v2478 = vunpack.c.h.b16 %v517
        %v2479 = vunpack.c.l.b16 %v518
        %v2480 = vunpack.c.h.b16 %v518
        %v2481 = vunpack.c.l.b16 %v519
        %v2482 = vunpack.c.h.b16 %v519
        %v2483 = vunpack.c.l.b16 %v520
        %v2484 = vunpack.c.h.b16 %v520
        %v2485 = vunpack.c.l.b16 %v521
        %v2486 = vunpack.c.h.b16 %v521
        %v2487 = vunpack.c.l.b16 %v522
        %v2488 = vunpack.c.h.b16 %v522
        %v2489 = vunpack.c.l.b16 %v523
        %v2490 = vunpack.c.h.b16 %v523
        %v2491 = vunpack.c.l.b16 %v524
        %v2492 = vunpack.c.h.b16 %v524
        %v2493 = vunpack.c.l.b16 %v525
        %v2494 = vunpack.c.h.b16 %v525
        %v2495 = vunpack.c.l.b16 %v526
        %v2496 = vunpack.c.h.b16 %v526
        %v2497 = vunpack.c.l.b16 %v527
        %v2498 = vunpack.c.h.b16 %v527
        %v2499 = vunpack.c.l.b16 %v528
        %v2500 = vunpack.c.h.b16 %v528
        %v2501 = vunpack.c.l.b16 %v529
        %v2502 = vunpack.c.h.b16 %v529
        %v2503 = vunpack.c.l.b16 %v530
        %v2504 = vunpack.c.h.b16 %v530
        %v2505 = vunpack.c.l.b16 %v531
        %v2506 = vunpack.c.h.b16 %v531
        %v2507 = vunpack.c.l.b16 %v532
        %v2508 = vunpack.c.h.b16 %v532
        %v2509 = vunpack.c.l.b16 %v533
        %v2510 = vunpack.c.h.b16 %v533
        %v2511 = vunpack.c.l.b16 %v534
        %v2512 = vunpack.c.h.b16 %v534
        %v2513 = vunpack.c.l.b16 %v535
        %v2514 = vunpack.c.h.b16 %v535
        %v2515 = vunpack.c.l.b16 %v536
        %v2516 = vunpack.c.h.b16 %v536
        %v2517 = vunpack.c.l.b16 %v537
        %v2518 = vunpack.c.h.b16 %v537
        %v2519 = vunpack.c.l.b16 %v538
        %v2520 = vunpack.c.h.b16 %v538
        %v2521 = vunpack.c.l.b16 %v539
        %v2522 = vunpack.c.h.b16 %v539
        %v2523 = vunpack.c.l.b16 %v540
        %v2524 = vunpack.c.h.b16 %v540
        %v2525 = vunpack.c.l.b16 %v541
        %v2526 = vunpack.c.h.b16 %v541
        %v2527 = vunpack.c.l.b16 %v542
        %v2528 = vunpack.c.h.b16 %v542
        %v2529 = vunpack.c.l.b16 %v543
        %v2530 = vunpack.c.h.b16 %v543
        %v2531 = vunpack.c.l.b16 %v544
        %v2532 = vunpack.c.h.b16 %v544
        %v2533 = vunpack.c.l.b16 %v545
        %v2534 = vunpack.c.h.b16 %v545
        %v2535 = vunpack.c.l.b16 %v546
        %v2536 = vunpack.c.h.b16 %v546
        %v2537 = vunpack.c.l.b16 %v547
        %v2538 = vunpack.c.h.b16 %v547
        %v2539 = vunpack.c.l.b16 %v548
        %v2540 = vunpack.c.h.b16 %v548
        %v2541 = vunpack.c.l.b16 %v549
        %v2542 = vunpack.c.h.b16 %v549
        %v2543 = vunpack.c.l.b16 %v550
        %v2544 = vunpack.c.h.b16 %v550
        %v2545 = vunpack.c.l.b16 %v551
        %v2546 = vunpack.c.h.b16 %v551
        %v2547 = vunpack.c.l.b16 %v552
        %v2548 = vunpack.c.h.b16 %v552
        %v2549 = vunpack.c.l.b16 %v553
        %v2550 = vunpack.c.h.b16 %v553
        %v2551 = vunpack.c.l.b16 %v554
        %v2552 = vunpack.c.h.b16 %v554
        %v2553 = vunpack.c.l.b16 %v555
        %v2554 = vunpack.c.h.b16 %v555
        %v2555 = vunpack.c.l.b16 %v556
        %v2556 = vunpack.c.h.b16 %v556
        %v2557 = vunpack.c.l.b16 %v557
        %v2558 = vunpack.c.h.b16 %v557
        %v2559 = vunpack.c.l.b16 %v558
        %v2560 = vunpack.c.h.b16 %v558
        %v2561 = vunpack.c.l.b16 %v559
        %v2562 = vunpack.c.h.b16 %v559
        %v2563 = vunpack.c.l.b16 %v560
        %v2564 = vunpack.c.h.b16 %v560
        %v2565 = vunpack.c.l.b16 %v561
        %v2566 = vunpack.c.h.b16 %v561
        %v2567 = vunpack.c.l.b16 %v562
        %v2568 = vunpack.c.h.b16 %v562
        %v2569 = vunpack.c.l.b16 %v563
        %v2570 = vunpack.c.h.b16 %v563
        %v2571 = vunpack.c.l.b16 %v564
        %v2572 = vunpack.c.h.b16 %v564
        %v2573 = vunpack.c.l.b16 %v565
        %v2574 = vunpack.c.h.b16 %v565
        %v2575 = vunpack.c.l.b16 %v566
        %v2576 = vunpack.c.h.b16 %v566
        %v2577 = vunpack.c.l.b16 %v567
        %v2578 = vunpack.c.h.b16 %v567
        %v2579 = vunpack.c.l.b16 %v568
        %v2580 = vunpack.c.h.b16 %v568
        %v2581 = vunpack.c.l.b16 %v569
        %v2582 = vunpack.c.h.b16 %v569
        %v2583 = vunpack.c.l.b16 %v570
        %v2584 = vunpack.c.h.b16 %v570
        %v2585 = vunpack.c.l.b16 %v571
        %v2586 = vunpack.c.h.b16 %v571
        %v2587 = vunpack.c.l.b16 %v572
        %v2588 = vunpack.c.h.b16 %v572
        %v2589 = vunpack.c.l.b16 %v573
        %v2590 = vunpack.c.h.b16 %v573
        %v2591 = vunpack.c.l.b16 %v574
        %v2592 = vunpack.c.h.b16 %v574
        %v2593 = vunpack.c.l.b16 %v575
        %v2594 = vunpack.c.h.b16 %v575
        %v2595 = vunpack.c.l.b16 %v576
        %v2596 = vunpack.c.h.b16 %v576
        %v2597 = vunpack.c.l.b16 %v577
        %v2598 = vunpack.c.h.b16 %v577
        %v2599 = vunpack.c.l.b16 %v578
        %v2600 = vunpack.c.h.b16 %v578
        %v2601 = vunpack.c.l.b16 %v579
        %v2602 = vunpack.c.h.b16 %v579
        %v2603 = vunpack.c.l.b16 %v580
        %v2604 = vunpack.c.h.b16 %v580
        %v2605 = vunpack.c.l.b16 %v581
        %v2606 = vunpack.c.h.b16 %v581
        %v2607 = vunpack.c.l.b16 %v582
        %v2608 = vunpack.c.h.b16 %v582
        %v2609 = vunpack.c.l.b16 %v583
        %v2610 = vunpack.c.h.b16 %v583
        %v2611 = vunpack.c.l.b16 %v584
        %v2612 = vunpack.c.h.b16 %v584
        %v2613 = vunpack.c.l.b16 %v585
        %v2614 = vunpack.c.h.b16 %v585
        %v2615 = vunpack.c.l.b16 %v586
        %v2616 = vunpack.c.h.b16 %v586
        %v2617 = vunpack.c.l.b16 %v587
        %v2618 = vunpack.c.h.b16 %v587
        %v2619 = vunpack.c.l.b16 %v588
        %v2620 = vunpack.c.h.b16 %v588
        %v2621 = vunpack.c.l.b16 %v589
        %v2622 = vunpack.c.h.b16 %v589
        %v2623 = vunpack.c.l.b16 %v590
        %v2624 = vunpack.c.h.b16 %v590
        %v2625 = vunpack.c.l.b16 %v591
        %v2626 = vunpack.c.h.b16 %v591
        %v2627 = vunpack.c.l.b16 %v592
        %v2628 = vunpack.c.h.b16 %v592
        %v2629 = vunpack.c.l.b16 %v593
        %v2630 = vunpack.c.h.b16 %v593
        %v2631 = vunpack.c.l.b16 %v594
        %v2632 = vunpack.c.h.b16 %v594
        %v2633 = vunpack.c.l.b16 %v595
        %v2634 = vunpack.c.h.b16 %v595
        %v2635 = vunpack.c.l.b16 %v596
        %v2636 = vunpack.c.h.b16 %v596
        %v2637 = vunpack.c.l.b16 %v597
        %v2638 = vunpack.c.h.b16 %v597
        %v2639 = vunpack.c.l.b16 %v598
        %v2640 = vunpack.c.h.b16 %v598
        %v2641 = vunpack.c.l.b16 %v599
        %v2642 = vunpack.c.h.b16 %v599
        %v2643 = vunpack.c.l.b16 %v600
        %v2644 = vunpack.c.h.b16 %v600
        %v2645 = vunpack.c.l.b16 %v601
        %v2646 = vunpack.c.h.b16 %v601
        %v2647 = vunpack.c.l.b16 %v602
        %v2648 = vunpack.c.h.b16 %v602
        %v2649 = vunpack.c.l.b16 %v603
        %v2650 = vunpack.c.h.b16 %v603
        %v2651 = vunpack.c.l.b16 %v604
        %v2652 = vunpack.c.h.b16 %v604
        %v2653 = vunpack.c.l.b16 %v605
        %v2654 = vunpack.c.h.b16 %v605
        %v2655 = vunpack.c.l.b16 %v606
        %v2656 = vunpack.c.h.b16 %v606
        %v2657 = vunpack.c.l.b16 %v607
        %v2658 = vunpack.c.h.b16 %v607
        %v2659 = vunpack.c.l.b16 %v608
        %v2660 = vunpack.c.h.b16 %v608
        %v2661 = vunpack.c.l.b16 %v609
        %v2662 = vunpack.c.h.b16 %v609
        %v2663 = vunpack.c.l.b16 %v610
        %v2664 = vunpack.c.h.b16 %v610
        %v2665 = vunpack.c.l.b16 %v611
        %v2666 = vunpack.c.h.b16 %v611
        %v2667 = vunpack.c.l.b16 %v612
        %v2668 = vunpack.c.h.b16 %v612
        %v2669 = vunpack.c.l.b16 %v613
        %v2670 = vunpack.c.h.b16 %v613
        %v2671 = vunpack.c.l.b16 %v614
        %v2672 = vunpack.c.h.b16 %v614
        %v2673 = vunpack.c.l.b16 %v615
        %v2674 = vunpack.c.h.b16 %v615
        %v2675 = vunpack.c.l.b16 %v616
        %v2676 = vunpack.c.h.b16 %v616
        %v2677 = vunpack.c.l.b16 %v617
        %v2678 = vunpack.c.h.b16 %v617
        %v2679 = vunpack.c.l.b16 %v618
        %v2680 = vunpack.c.h.b16 %v618
        %v2681 = vunpack.c.l.b16 %v619
        %v2682 = vunpack.c.h.b16 %v619
        %v2683 = vunpack.c.l.b16 %v620
        %v2684 = vunpack.c.h.b16 %v620
        %v2685 = vunpack.c.l.b16 %v621
        %v2686 = vunpack.c.h.b16 %v621
        %v2687 = vunpack.c.l.b16 %v622
        %v2688 = vunpack.c.h.b16 %v622
        %v2689 = vunpack.c.l.b16 %v623
        %v2690 = vunpack.c.h.b16 %v623
        %v2691 = vunpack.c.l.b16 %v624
        %v2692 = vunpack.c.h.b16 %v624
        %v2693 = vunpack.c.l.b16 %v625
        %v2694 = vunpack.c.h.b16 %v625
        %v2695 = vunpack.c.l.b16 %v626
        %v2696 = vunpack.c.h.b16 %v626
        %v2697 = vunpack.c.l.b16 %v627
        %v2698 = vunpack.c.h.b16 %v627
        %v2699 = vunpack.c.l.b16 %v628
        %v2700 = vunpack.c.h.b16 %v628
        %v2701 = vunpack.c.l.b16 %v629
        %v2702 = vunpack.c.h.b16 %v629
        %v2703 = vunpack.c.l.b16 %v630
        %v2704 = vunpack.c.h.b16 %v630
        %v2705 = vunpack.c.l.b16 %v631
        %v2706 = vunpack.c.h.b16 %v631
        %v2707 = vunpack.c.l.b16 %v632
        %v2708 = vunpack.c.h.b16 %v632
        %v2709 = vunpack.c.l.b16 %v633
        %v2710 = vunpack.c.h.b16 %v633
        %v2711 = vunpack.c.l.b16 %v634
        %v2712 = vunpack.c.h.b16 %v634
        %v2713 = vunpack.c.l.b16 %v635
        %v2714 = vunpack.c.h.b16 %v635
        %v2715 = vunpack.c.l.b16 %v636
        %v2716 = vunpack.c.h.b16 %v636
        %v2717 = vunpack.c.l.b16 %v637
        %v2718 = vunpack.c.h.b16 %v637
        %v2719 = vunpack.c.l.b16 %v638
        %v2720 = vunpack.c.h.b16 %v638
        %v2721 = vunpack.c.l.b16 %v639
        %v2722 = vunpack.c.h.b16 %v639
        %v2723 = vunpack.c.l.b16 %v640
        %v2724 = vunpack.c.h.b16 %v640
        %v2725 = vunpack.c.l.b16 %v641
        %v2726 = vunpack.c.h.b16 %v641
        %v2727 = vunpack.c.l.b16 %v642
        %v2728 = vunpack.c.h.b16 %v642
        %v2729 = vunpack.c.l.b16 %v643
        %v2730 = vunpack.c.h.b16 %v643
        %v2731 = vunpack.c.l.b16 %v644
        %v2732 = vunpack.c.h.b16 %v644
        %v2733 = vunpack.c.l.b16 %v645
        %v2734 = vunpack.c.h.b16 %v645
        %v2735 = vunpack.c.l.b16 %v646
        %v2736 = vunpack.c.h.b16 %v646
        %v2737 = vunpack.c.l.b16 %v647
        %v2738 = vunpack.c.h.b16 %v647
        %v2739 = vunpack.c.l.b16 %v648
        %v2740 = vunpack.c.h.b16 %v648
        %v2741 = vunpack.c.l.b16 %v649
        %v2742 = vunpack.c.h.b16 %v649
        %v2743 = vunpack.c.l.b16 %v650
        %v2744 = vunpack.c.h.b16 %v650
        %v2745 = vunpack.c.l.b16 %v651
        %v2746 = vunpack.c.h.b16 %v651
        %v2747 = vunpack.c.l.b16 %v652
        %v2748 = vunpack.c.h.b16 %v652
        %v2749 = vunpack.c.l.b16 %v653
        %v2750 = vunpack.c.h.b16 %v653
        %v2751 = vunpack.c.l.b16 %v654
        %v2752 = vunpack.c.h.b16 %v654
        %v2753 = vunpack.c.l.b16 %v655
        %v2754 = vunpack.c.h.b16 %v655
        %v2755 = vunpack.c.l.b16 %v656
        %v2756 = vunpack.c.h.b16 %v656
        %v2757 = vunpack.c.l.b16 %v657
        %v2758 = vunpack.c.h.b16 %v657
        %v2759 = vunpack.c.l.b16 %v658
        %v2760 = vunpack.c.h.b16 %v658
        %v2761 = vunpack.c.l.b16 %v659
        %v2762 = vunpack.c.h.b16 %v659
        %v2763 = vunpack.c.l.b16 %v660
        %v2764 = vunpack.c.h.b16 %v660
        %v2765 = vunpack.c.l.b16 %v661
        %v2766 = vunpack.c.h.b16 %v661
        %v2767 = vunpack.c.l.b16 %v662
        %v2768 = vunpack.c.h.b16 %v662
        %v2769 = vunpack.c.l.b16 %v663
        %v2770 = vunpack.c.h.b16 %v663
        %v2771 = vunpack.c.l.b16 %v664
        %v2772 = vunpack.c.h.b16 %v664
        %v2773 = vunpack.c.l.b16 %v665
        %v2774 = vunpack.c.h.b16 %v665
        %v2775 = vunpack.c.l.b16 %v666
        %v2776 = vunpack.c.h.b16 %v666
        %v2777 = vunpack.c.l.b16 %v667
        %v2778 = vunpack.c.h.b16 %v667
        %v2779 = vunpack.c.l.b16 %v668
        %v2780 = vunpack.c.h.b16 %v668
        %v2781 = vunpack.c.l.b16 %v669
        %v2782 = vunpack.c.h.b16 %v669
        %v2783 = vunpack.c.l.b16 %v670
        %v2784 = vunpack.c.h.b16 %v670
        %v2785 = vunpack.c.l.b16 %v671
        %v2786 = vunpack.c.h.b16 %v671
        %v2787 = vunpack.c.l.b16 %v672
        %v2788 = vunpack.c.h.b16 %v672
        %v2789 = vunpack.c.l.b16 %v673
        %v2790 = vunpack.c.h.b16 %v673
        %v2791 = vunpack.c.l.b16 %v674
        %v2792 = vunpack.c.h.b16 %v674
        %v2793 = vunpack.c.l.b16 %v675
        %v2794 = vunpack.c.h.b16 %v675
        %v2795 = vunpack.c.l.b16 %v676
        %v2796 = vunpack.c.h.b16 %v676
        %v2797 = vunpack.c.l.b16 %v677
        %v2798 = vunpack.c.h.b16 %v677
        %v2799 = vunpack.c.l.b16 %v678
        %v2800 = vunpack.c.h.b16 %v678
        %v2801 = vunpack.c.l.b16 %v679
        %v2802 = vunpack.c.h.b16 %v679
        %v2803 = vunpack.c.l.b16 %v680
        %v2804 = vunpack.c.h.b16 %v680
        %v2805 = vunpack.c.l.b16 %v681
        %v2806 = vunpack.c.h.b16 %v681
        %v2807 = vunpack.c.l.b16 %v682
        %v2808 = vunpack.c.h.b16 %v682
        %v2809 = vunpack.c.l.b16 %v683
        %v2810 = vunpack.c.h.b16 %v683
        %v2811 = vunpack.c.l.b16 %v684
        %v2812 = vunpack.c.h.b16 %v684
        %v2813 = vunpack.c.l.b16 %v685
        %v2814 = vunpack.c.h.b16 %v685
        %v2815 = vunpack.c.l.b16 %v686
        %v2816 = vunpack.c.h.b16 %v686
        %v2817 = vunpack.c.l.b16 %v687
        %v2818 = vunpack.c.h.b16 %v687
        %v2819 = vunpack.c.l.b16 %v688
        %v2820 = vunpack.c.h.b16 %v688
        %v2821 = vunpack.c.l.b16 %v689
        %v2822 = vunpack.c.h.b16 %v689
        %v2823 = vunpack.c.l.b16 %v690
        %v2824 = vunpack.c.h.b16 %v690
        %v2825 = vunpack.c.l.b16 %v691
        %v2826 = vunpack.c.h.b16 %v691
        %v2827 = vunpack.c.l.b16 %v692
        %v2828 = vunpack.c.h.b16 %v692
        %v2829 = vunpack.c.l.b16 %v693
        %v2830 = vunpack.c.h.b16 %v693
        %v2831 = vunpack.c.l.b16 %v694
        %v2832 = vunpack.c.h.b16 %v694
        %v2833 = vunpack.c.l.b16 %v695
        %v2834 = vunpack.c.h.b16 %v695
        %v2835 = vunpack.c.l.b16 %v696
        %v2836 = vunpack.c.h.b16 %v696
        %v2837 = vunpack.c.l.b16 %v697
        %v2838 = vunpack.c.h.b16 %v697
        %v2839 = vunpack.c.l.b16 %v698
        %v2840 = vunpack.c.h.b16 %v698
        %v2841 = vunpack.c.l.b16 %v699
        %v2842 = vunpack.c.h.b16 %v699
        %v2843 = vunpack.c.l.b16 %v700
        %v2844 = vunpack.c.h.b16 %v700
        %v2845 = vunpack.c.l.b16 %v701
        %v2846 = vunpack.c.h.b16 %v701
        %v2847 = vunpack.c.l.b16 %v702
        %v2848 = vunpack.c.h.b16 %v702
        %v2849 = vunpack.c.l.b16 %v703
        %v2850 = vunpack.c.h.b16 %v703
        %v2851 = vunpack.c.l.b16 %v704
        %v2852 = vunpack.c.h.b16 %v704
        %v2853 = vunpack.c.l.b16 %v705
        %v2854 = vunpack.c.h.b16 %v705
        %v2855 = vunpack.c.l.b16 %v706
        %v2856 = vunpack.c.h.b16 %v706
        %v2857 = vunpack.c.l.b16 %v707
        %v2858 = vunpack.c.h.b16 %v707
        %v2859 = vunpack.c.l.b16 %v708
        %v2860 = vunpack.c.h.b16 %v708
        %v2861 = vunpack.c.l.b16 %v709
        %v2862 = vunpack.c.h.b16 %v709
        %v2863 = vunpack.c.l.b16 %v710
        %v2864 = vunpack.c.h.b16 %v710
        %v2865 = vunpack.c.l.b16 %v711
        %v2866 = vunpack.c.h.b16 %v711
        %v2867 = vunpack.c.l.b16 %v712
        %v2868 = vunpack.c.h.b16 %v712
        %v2869 = vunpack.c.l.b16 %v713
        %v2870 = vunpack.c.h.b16 %v713
        %v2871 = vunpack.c.l.b16 %v714
        %v2872 = vunpack.c.h.b16 %v714
        %v2873 = vunpack.c.l.b16 %v715
        %v2874 = vunpack.c.h.b16 %v715
        %v2875 = vunpack.c.l.b16 %v716
        %v2876 = vunpack.c.h.b16 %v716
        %v2877 = vunpack.c.l.b16 %v717
        %v2878 = vunpack.c.h.b16 %v717
        %v2879 = vunpack.c.l.b16 %v718
        %v2880 = vunpack.c.h.b16 %v718
        %v2881 = vunpack.c.l.b16 %v719
        %v2882 = vunpack.c.h.b16 %v719
        %v2883 = vunpack.c.l.b16 %v720
        %v2884 = vunpack.c.h.b16 %v720
        %v2885 = vunpack.c.l.b16 %v721
        %v2886 = vunpack.c.h.b16 %v721
        %v2887 = vunpack.c.l.b16 %v722
        %v2888 = vunpack.c.h.b16 %v722
        %v2889 = vunpack.c.l.b16 %v723
        %v2890 = vunpack.c.h.b16 %v723
        %v2891 = vunpack.c.l.b16 %v724
        %v2892 = vunpack.c.h.b16 %v724
        %v2893 = vunpack.c.l.b16 %v725
        %v2894 = vunpack.c.h.b16 %v725
        %v2895 = vunpack.c.l.b16 %v726
        %v2896 = vunpack.c.h.b16 %v726
        %v2897 = vunpack.c.l.b16 %v727
        %v2898 = vunpack.c.h.b16 %v727
        %v2899 = vunpack.c.l.b16 %v728
        %v2900 = vunpack.c.h.b16 %v728
        %v2901 = vunpack.c.l.b16 %v729
        %v2902 = vunpack.c.h.b16 %v729
        %v2903 = vunpack.c.l.b16 %v730
        %v2904 = vunpack.c.h.b16 %v730
        %v2905 = vunpack.c.l.b16 %v731
        %v2906 = vunpack.c.h.b16 %v731
        %v2907 = vunpack.c.l.b16 %v732
        %v2908 = vunpack.c.h.b16 %v732
        %v2909 = vunpack.c.l.b16 %v733
        %v2910 = vunpack.c.h.b16 %v733
        %v2911 = vunpack.c.l.b16 %v734
        %v2912 = vunpack.c.h.b16 %v734
        %v2913 = vunpack.c.l.b16 %v735
        %v2914 = vunpack.c.h.b16 %v735
        %v2915 = vunpack.c.l.b16 %v736
        %v2916 = vunpack.c.h.b16 %v736
        %v2917 = vunpack.c.l.b16 %v737
        %v2918 = vunpack.c.h.b16 %v737
        %v2919 = vunpack.c.l.b16 %v738
        %v2920 = vunpack.c.h.b16 %v738
        %v2921 = vunpack.c.l.b16 %v739
        %v2922 = vunpack.c.h.b16 %v739
        %v2923 = vunpack.c.l.b16 %v740
        %v2924 = vunpack.c.h.b16 %v740
        %v2925 = vunpack.c.l.b16 %v741
        %v2926 = vunpack.c.h.b16 %v741
        %v2927 = vunpack.c.l.b16 %v742
        %v2928 = vunpack.c.h.b16 %v742
        %v2929 = vunpack.c.l.b16 %v743
        %v2930 = vunpack.c.h.b16 %v743
        %v2931 = vunpack.c.l.b16 %v744
        %v2932 = vunpack.c.h.b16 %v744
        %v2933 = vunpack.c.l.b16 %v745
        %v2934 = vunpack.c.h.b16 %v745
        %v2935 = vunpack.c.l.b16 %v746
        %v2936 = vunpack.c.h.b16 %v746
        %v2937 = vunpack.c.l.b16 %v747
        %v2938 = vunpack.c.h.b16 %v747
        %v2939 = vunpack.c.l.b16 %v748
        %v2940 = vunpack.c.h.b16 %v748
        %v2941 = vunpack.c.l.b16 %v749
        %v2942 = vunpack.c.h.b16 %v749
        %v2943 = vunpack.c.l.b16 %v750
        %v2944 = vunpack.c.h.b16 %v750
        %v2945 = vunpack.c.l.b16 %v751
        %v2946 = vunpack.c.h.b16 %v751
        %v2947 = vunpack.c.l.b16 %v752
        %v2948 = vunpack.c.h.b16 %v752
        %v2949 = vunpack.c.l.b16 %v753
        %v2950 = vunpack.c.h.b16 %v753
        %v2951 = vunpack.c.l.b16 %v754
        %v2952 = vunpack.c.h.b16 %v754
        %v2953 = vunpack.c.l.b16 %v755
        %v2954 = vunpack.c.h.b16 %v755
        %v2955 = vunpack.c.l.b16 %v756
        %v2956 = vunpack.c.h.b16 %v756
        %v2957 = vunpack.c.l.b16 %v757
        %v2958 = vunpack.c.h.b16 %v757
        %v2959 = vunpack.c.l.b16 %v758
        %v2960 = vunpack.c.h.b16 %v758
        %v2961 = vunpack.c.l.b16 %v759
        %v2962 = vunpack.c.h.b16 %v759
        %v2963 = vunpack.c.l.b16 %v760
        %v2964 = vunpack.c.h.b16 %v760
        %v2965 = vunpack.c.l.b16 %v761
        %v2966 = vunpack.c.h.b16 %v761
        %v2967 = vunpack.c.l.b16 %v762
        %v2968 = vunpack.c.h.b16 %v762
        %v2969 = vunpack.c.l.b16 %v763
        %v2970 = vunpack.c.h.b16 %v763
        %v2971 = vunpack.c.l.b16 %v764
        %v2972 = vunpack.c.h.b16 %v764
        %v2973 = vunpack.c.l.b16 %v765
        %v2974 = vunpack.c.h.b16 %v765
        %v2975 = vunpack.c.l.b16 %v766
        %v2976 = vunpack.c.h.b16 %v766
        %v2977 = vunpack.c.l.b16 %v767
        %v2978 = vunpack.c.h.b16 %v767
        %v2979 = vunpack.c.l.b16 %v768
        %v2980 = vunpack.c.h.b16 %v768
        %v2981 = vunpack.c.l.b16 %v769
        %v2982 = vunpack.c.h.b16 %v769
        %v2983 = vunpack.c.l.b16 %v770
        %v2984 = vunpack.c.h.b16 %v770
        %v2985 = vunpack.c.l.b16 %v771
        %v2986 = vunpack.c.h.b16 %v771
        %v2987 = vunpack.c.l.b16 %v772
        %v2988 = vunpack.c.h.b16 %v772
        %v2989 = vunpack.c.l.b16 %v773
        %v2990 = vunpack.c.h.b16 %v773
        %v2991 = vunpack.c.l.b16 %v774
        %v2992 = vunpack.c.h.b16 %v774
        %v2993 = vunpack.c.l.b16 %v775
        %v2994 = vunpack.c.h.b16 %v775
        %v2995 = vunpack.c.l.b16 %v776
        %v2996 = vunpack.c.h.b16 %v776
        %v2997 = vunpack.c.l.b16 %v777
        %v2998 = vunpack.c.h.b16 %v777
        %v2999 = vunpack.c.l.b16 %v778
        %v3000 = vunpack.c.h.b16 %v778
        %v3001 = vunpack.c.l.b16 %v779
        %v3002 = vunpack.c.h.b16 %v779
        %v3003 = vunpack.c.l.b16 %v780
        %v3004 = vunpack.c.h.b16 %v780
        %v3005 = vunpack.c.l.b16 %v781
        %v3006 = vunpack.c.h.b16 %v781
        %v3007 = vunpack.c.l.b16 %v782
        %v3008 = vunpack.c.h.b16 %v782
        %v3009 = vunpack.c.l.b16 %v783
        %v3010 = vunpack.c.h.b16 %v783
        %v3011 = vunpack.c.l.b16 %v784
        %v3012 = vunpack.c.h.b16 %v784
        %v3013 = vunpack.c.l.b16 %v785
        %v3014 = vunpack.c.h.b16 %v785
        %v3015 = vunpack.c.l.b16 %v786
        %v3016 = vunpack.c.h.b16 %v786
        %v3017 = vunpack.c.l.b16 %v787
        %v3018 = vunpack.c.h.b16 %v787
        %v3019 = vunpack.c.l.b16 %v788
        %v3020 = vunpack.c.h.b16 %v788
        %v3021 = vunpack.c.l.b16 %v789
        %v3022 = vunpack.c.h.b16 %v789
        %v3023 = vunpack.c.l.b16 %v790
        %v3024 = vunpack.c.h.b16 %v790
        %v3025 = vunpack.c.l.b16 %v791
        %v3026 = vunpack.c.h.b16 %v791
        %v3027 = vunpack.c.l.b16 %v792
        %v3028 = vunpack.c.h.b16 %v792
        %v3029 = vunpack.c.l.b16 %v793
        %v3030 = vunpack.c.h.b16 %v793
        %v3031 = vunpack.c.l.b16 %v794
        %v3032 = vunpack.c.h.b16 %v794
        %v3033 = vunpack.c.l.b16 %v795
        %v3034 = vunpack.c.h.b16 %v795
        %v3035 = vunpack.c.l.b16 %v796
        %v3036 = vunpack.c.h.b16 %v796
        %v3037 = vunpack.c.l.b16 %v797
        %v3038 = vunpack.c.h.b16 %v797
        %v3039 = vunpack.c.l.b16 %v798
        %v3040 = vunpack.c.h.b16 %v798
        %v3041 = vunpack.c.l.b16 %v799
        %v3042 = vunpack.c.h.b16 %v799
        %v3043 = vunpack.c.l.b16 %v800
        %v3044 = vunpack.c.h.b16 %v800
        %v3045 = vunpack.c.l.b16 %v801
        %v3046 = vunpack.c.h.b16 %v801
        %v3047 = vunpack.c.l.b16 %v802
        %v3048 = vunpack.c.h.b16 %v802
        %v3049 = vunpack.c.l.b16 %v803
        %v3050 = vunpack.c.h.b16 %v803
        %v3051 = vunpack.c.l.b16 %v804
        %v3052 = vunpack.c.h.b16 %v804
        %v3053 = vunpack.c.l.b16 %v805
        %v3054 = vunpack.c.h.b16 %v805
        %v3055 = vunpack.c.l.b16 %v806
        %v3056 = vunpack.c.h.b16 %v806
        %v3057 = vunpack.c.l.b16 %v807
        %v3058 = vunpack.c.h.b16 %v807
        %v3059 = vunpack.c.l.b16 %v808
        %v3060 = vunpack.c.h.b16 %v808
        %v3061 = vunpack.c.l.b16 %v809
        %v3062 = vunpack.c.h.b16 %v809
        %v3063 = vunpack.c.l.b16 %v810
        %v3064 = vunpack.c.h.b16 %v810
        %v3065 = vunpack.c.l.b16 %v811
        %v3066 = vunpack.c.h.b16 %v811
        %v3067 = vunpack.c.l.b16 %v812
        %v3068 = vunpack.c.h.b16 %v812
        %v3069 = vunpack.c.l.b16 %v813
        %v3070 = vunpack.c.h.b16 %v813
        %v3071 = vunpack.c.l.b16 %v814
        %v3072 = vunpack.c.h.b16 %v814
        %v3073 = vunpack.c.l.b16 %v815
        %v3074 = vunpack.c.h.b16 %v815
        %v3075 = vunpack.c.l.b16 %v816
        %v3076 = vunpack.c.h.b16 %v816
        %v3077 = vunpack.c.l.b16 %v817
        %v3078 = vunpack.c.h.b16 %v817
        %v3079 = vunpack.c.l.b16 %v818
        %v3080 = vunpack.c.h.b16 %v818
        %v3081 = vunpack.c.l.b16 %v819
        %v3082 = vunpack.c.h.b16 %v819
        %v3083 = vunpack.c.l.b16 %v820
        %v3084 = vunpack.c.h.b16 %v820
        %v3085 = vunpack.c.l.b16 %v821
        %v3086 = vunpack.c.h.b16 %v821
        %v3087 = vunpack.c.l.b16 %v822
        %v3088 = vunpack.c.h.b16 %v822
        %v3089 = vunpack.c.l.b16 %v823
        %v3090 = vunpack.c.h.b16 %v823
        %v3091 = vunpack.c.l.b16 %v824
        %v3092 = vunpack.c.h.b16 %v824
        %v3093 = vunpack.c.l.b16 %v825
        %v3094 = vunpack.c.h.b16 %v825
        %v3095 = vunpack.c.l.b16 %v826
        %v3096 = vunpack.c.h.b16 %v826
        %v3097 = vunpack.c.l.b16 %v827
        %v3098 = vunpack.c.h.b16 %v827
        %v3099 = vunpack.c.l.b16 %v828
        %v3100 = vunpack.c.h.b16 %v828
        %v3101 = vunpack.c.l.b16 %v829
        %v3102 = vunpack.c.h.b16 %v829
        %v3103 = vunpack.c.l.b16 %v830
        %v3104 = vunpack.c.h.b16 %v830
        %v3105 = vunpack.c.l.b16 %v831
        %v3106 = vunpack.c.h.b16 %v831
        %v3107 = vunpack.c.l.b16 %v832
        %v3108 = vunpack.c.h.b16 %v832
        %v3109 = vunpack.c.l.b16 %v833
        %v3110 = vunpack.c.h.b16 %v833
        %v3111 = vunpack.c.l.b16 %v834
        %v3112 = vunpack.c.h.b16 %v834
        %v3113 = vunpack.c.l.b16 %v835
        %v3114 = vunpack.c.h.b16 %v835
        %v3115 = vunpack.c.l.b16 %v836
        %v3116 = vunpack.c.h.b16 %v836
        %v3117 = vunpack.c.l.b16 %v837
        %v3118 = vunpack.c.h.b16 %v837
        %v3119 = vunpack.c.l.b16 %v838
        %v3120 = vunpack.c.h.b16 %v838
        %v3121 = vunpack.c.l.b16 %v839
        %v3122 = vunpack.c.h.b16 %v839
        %v3123 = vunpack.c.l.b16 %v840
        %v3124 = vunpack.c.h.b16 %v840
        %v3125 = vunpack.c.l.b16 %v841
        %v3126 = vunpack.c.h.b16 %v841
        %v3127 = vunpack.c.l.b16 %v842
        %v3128 = vunpack.c.h.b16 %v842
        %v3129 = vunpack.c.l.b16 %v843
        %v3130 = vunpack.c.h.b16 %v843
        %v3131 = vunpack.c.l.b16 %v844
        %v3132 = vunpack.c.h.b16 %v844
        %v3133 = vunpack.c.l.b16 %v845
        %v3134 = vunpack.c.h.b16 %v845
        %v3135 = vunpack.c.l.b16 %v846
        %v3136 = vunpack.c.h.b16 %v846
        %v3137 = vunpack.c.l.b16 %v847
        %v3138 = vunpack.c.h.b16 %v847
        %v3139 = vunpack.c.l.b16 %v848
        %v3140 = vunpack.c.h.b16 %v848
        %v3141 = vunpack.c.l.b16 %v849
        %v3142 = vunpack.c.h.b16 %v849
        %v3143 = vunpack.c.l.b16 %v850
        %v3144 = vunpack.c.h.b16 %v850
        %v3145 = vunpack.c.l.b16 %v851
        %v3146 = vunpack.c.h.b16 %v851
        %v3147 = vunpack.c.l.b16 %v852
        %v3148 = vunpack.c.h.b16 %v852
        %v3149 = vunpack.c.l.b16 %v853
        %v3150 = vunpack.c.h.b16 %v853
        %v3151 = vunpack.c.l.b16 %v854
        %v3152 = vunpack.c.h.b16 %v854
        %v3153 = vunpack.c.l.b16 %v855
        %v3154 = vunpack.c.h.b16 %v855
        %v3155 = vunpack.c.l.b16 %v856
        %v3156 = vunpack.c.h.b16 %v856
        %v3157 = vunpack.c.l.b16 %v857
        %v3158 = vunpack.c.h.b16 %v857
        %v3159 = vunpack.c.l.b16 %v858
        %v3160 = vunpack.c.h.b16 %v858
        %v3161 = vunpack.c.l.b16 %v859
        %v3162 = vunpack.c.h.b16 %v859
        %v3163 = vunpack.c.l.b16 %v860
        %v3164 = vunpack.c.h.b16 %v860
        %v3165 = vunpack.c.l.b16 %v861
        %v3166 = vunpack.c.h.b16 %v861
        %v3167 = vunpack.c.l.b16 %v862
        %v3168 = vunpack.c.h.b16 %v862
        %v3169 = vunpack.c.l.b16 %v863
        %v3170 = vunpack.c.h.b16 %v863
        %v3171 = vunpack.c.l.b16 %v864
        %v3172 = vunpack.c.h.b16 %v864
        %v3173 = vunpack.c.l.b16 %v865
        %v3174 = vunpack.c.h.b16 %v865
        %v3175 = vunpack.c.l.b16 %v866
        %v3176 = vunpack.c.h.b16 %v866
        %v3177 = vunpack.c.l.b16 %v867
        %v3178 = vunpack.c.h.b16 %v867
        %v3179 = vunpack.c.l.b16 %v868
        %v3180 = vunpack.c.h.b16 %v868
        %v3181 = vunpack.c.l.b16 %v869
        %v3182 = vunpack.c.h.b16 %v869
        %v3183 = vunpack.c.l.b16 %v870
        %v3184 = vunpack.c.h.b16 %v870
        %v3185 = vunpack.c.l.b16 %v871
        %v3186 = vunpack.c.h.b16 %v871
        %v3187 = vunpack.c.l.b16 %v872
        %v3188 = vunpack.c.h.b16 %v872
        %v3189 = vunpack.c.l.b16 %v873
        %v3190 = vunpack.c.h.b16 %v873
        %v3191 = vunpack.c.l.b16 %v874
        %v3192 = vunpack.c.h.b16 %v874
        %v3193 = vunpack.c.l.b16 %v875
        %v3194 = vunpack.c.h.b16 %v875
        %v3195 = vunpack.c.l.b16 %v876
        %v3196 = vunpack.c.h.b16 %v876
        %v3197 = vunpack.c.l.b16 %v877
        %v3198 = vunpack.c.h.b16 %v877
        %v3199 = vunpack.c.l.b16 %v878
        %v3200 = vunpack.c.h.b16 %v878
        %v3201 = vunpack.c.l.b16 %v879
        %v3202 = vunpack.c.h.b16 %v879
        %v3203 = vunpack.c.l.b16 %v880
        %v3204 = vunpack.c.h.b16 %v880
        %v3205 = vunpack.c.l.b16 %v881
        %v3206 = vunpack.c.h.b16 %v881
        %v3207 = vunpack.c.l.b16 %v882
        %v3208 = vunpack.c.h.b16 %v882
        %v3209 = vunpack.c.l.b16 %v883
        %v3210 = vunpack.c.h.b16 %v883
        %v3211 = vunpack.c.l.b16 %v884
        %v3212 = vunpack.c.h.b16 %v884
        %v3213 = vunpack.c.l.b16 %v885
        %v3214 = vunpack.c.h.b16 %v885
        %v3215 = vunpack.c.l.b16 %v886
        %v3216 = vunpack.c.h.b16 %v886
        %v3217 = vunpack.c.l.b16 %v887
        %v3218 = vunpack.c.h.b16 %v887
        %v3219 = vunpack.c.l.b16 %v888
        %v3220 = vunpack.c.h.b16 %v888
        %v3221 = vunpack.c.l.b16 %v889
        %v3222 = vunpack.c.h.b16 %v889
        %v3223 = vunpack.c.l.b16 %v890
        %v3224 = vunpack.c.h.b16 %v890
        %v3225 = vunpack.c.l.b16 %v891
        %v3226 = vunpack.c.h.b16 %v891
        %v3227 = vunpack.c.l.b16 %v892
        %v3228 = vunpack.c.h.b16 %v892
        %v3229 = vunpack.c.l.b16 %v893
        %v3230 = vunpack.c.h.b16 %v893
        %v3231 = vunpack.c.l.b16 %v894
        %v3232 = vunpack.c.h.b16 %v894
        %v3233 = vunpack.c.l.b16 %v895
        %v3234 = vunpack.c.h.b16 %v895
        %v3235 = vunpack.c.l.b16 %v896
        %v3236 = vunpack.c.h.b16 %v896
        %v3237 = vunpack.c.l.b16 %v897
        %v3238 = vunpack.c.h.b16 %v897
        %v3239 = vunpack.c.l.b16 %v898
        %v3240 = vunpack.c.h.b16 %v898
        %v3241 = vunpack.c.l.b16 %v899
        %v3242 = vunpack.c.h.b16 %v899
        %v3243 = vunpack.c.l.b16 %v900
        %v3244 = vunpack.c.h.b16 %v900
        %v3245 = vunpack.c.l.b16 %v901
        %v3246 = vunpack.c.h.b16 %v901
        %v3247 = vunpack.c.l.b16 %v902
        %v3248 = vunpack.c.h.b16 %v902
        %v3249 = vunpack.c.l.b16 %v903
        %v3250 = vunpack.c.h.b16 %v903
        %v3251 = vunpack.c.l.b16 %v904
        %v3252 = vunpack.c.h.b16 %v904
        %v3253 = vunpack.c.l.b16 %v905
        %v3254 = vunpack.c.h.b16 %v905
        %v3255 = vunpack.c.l.b16 %v906
        %v3256 = vunpack.c.h.b16 %v906
        %v3257 = vunpack.c.l.b16 %v907
        %v3258 = vunpack.c.h.b16 %v907
        %v3259 = vunpack.c.l.b16 %v908
        %v3260 = vunpack.c.h.b16 %v908
        %v3261 = vunpack.c.l.b16 %v909
        %v3262 = vunpack.c.h.b16 %v909
        %v3263 = vunpack.c.l.b16 %v910
        %v3264 = vunpack.c.h.b16 %v910
        %v3265 = vunpack.c.l.b16 %v911
        %v3266 = vunpack.c.h.b16 %v911
        %v3267 = vunpack.c.l.b16 %v912
        %v3268 = vunpack.c.h.b16 %v912
        %v3269 = vunpack.c.l.b16 %v913
        %v3270 = vunpack.c.h.b16 %v913
        %v3271 = vunpack.c.l.b16 %v914
        %v3272 = vunpack.c.h.b16 %v914
        %v3273 = vunpack.c.l.b16 %v915
        %v3274 = vunpack.c.h.b16 %v915
        %v3275 = vunpack.c.l.b16 %v916
        %v3276 = vunpack.c.h.b16 %v916
        %v3277 = vunpack.c.l.b16 %v917
        %v3278 = vunpack.c.h.b16 %v917
        %v3279 = vunpack.c.l.b16 %v918
        %v3280 = vunpack.c.h.b16 %v918
        %v3281 = vunpack.c.l.b16 %v919
        %v3282 = vunpack.c.h.b16 %v919
        %v3283 = vunpack.c.l.b16 %v920
        %v3284 = vunpack.c.h.b16 %v920
        %v3285 = vunpack.c.l.b16 %v921
        %v3286 = vunpack.c.h.b16 %v921
        %v3287 = vunpack.c.l.b16 %v922
        %v3288 = vunpack.c.h.b16 %v922
        %v3289 = vunpack.c.l.b16 %v923
        %v3290 = vunpack.c.h.b16 %v923
        %v3291 = vunpack.c.l.b16 %v924
        %v3292 = vunpack.c.h.b16 %v924
        %v3293 = vunpack.c.l.b16 %v925
        %v3294 = vunpack.c.h.b16 %v925
        %v3295 = vunpack.c.l.b16 %v926
        %v3296 = vunpack.c.h.b16 %v926
        %v3297 = vunpack.c.l.b16 %v927
        %v3298 = vunpack.c.h.b16 %v927
        %v3299 = vunpack.c.l.b16 %v928
        %v3300 = vunpack.c.h.b16 %v928
        %v3301 = vunpack.c.l.b16 %v929
        %v3302 = vunpack.c.h.b16 %v929
        %v3303 = vunpack.c.l.b16 %v930
        %v3304 = vunpack.c.h.b16 %v930
        %v3305 = vunpack.c.l.b16 %v931
        %v3306 = vunpack.c.h.b16 %v931
        %v3307 = vunpack.c.l.b16 %v932
        %v3308 = vunpack.c.h.b16 %v932
        %v3309 = vunpack.c.l.b16 %v933
        %v3310 = vunpack.c.h.b16 %v933
        %v3311 = vunpack.c.l.b16 %v934
        %v3312 = vunpack.c.h.b16 %v934
        %v3313 = vunpack.c.l.b16 %v935
        %v3314 = vunpack.c.h.b16 %v935
        %v3315 = vunpack.c.l.b16 %v936
        %v3316 = vunpack.c.h.b16 %v936
        %v3317 = vunpack.c.l.b16 %v937
        %v3318 = vunpack.c.h.b16 %v937
        %v3319 = vunpack.c.l.b16 %v938
        %v3320 = vunpack.c.h.b16 %v938
        %v3321 = vunpack.c.l.b16 %v939
        %v3322 = vunpack.c.h.b16 %v939
        %v3323 = vunpack.c.l.b16 %v940
        %v3324 = vunpack.c.h.b16 %v940
        %v3325 = vunpack.c.l.b16 %v941
        %v3326 = vunpack.c.h.b16 %v941
        %v3327 = vunpack.c.l.b16 %v942
        %v3328 = vunpack.c.h.b16 %v942
        %v3329 = vunpack.c.l.b16 %v943
        %v3330 = vunpack.c.h.b16 %v943
        %v3331 = vunpack.c.l.b16 %v944
        %v3332 = vunpack.c.h.b16 %v944
        %v3333 = vunpack.c.l.b16 %v945
        %v3334 = vunpack.c.h.b16 %v945
        %v3335 = vunpack.c.l.b16 %v946
        %v3336 = vunpack.c.h.b16 %v946
        %v3337 = vunpack.c.l.b16 %v947
        %v3338 = vunpack.c.h.b16 %v947
        %v3339 = vunpack.c.l.b16 %v948
        %v3340 = vunpack.c.h.b16 %v948
        %v3341 = vunpack.c.l.b16 %v949
        %v3342 = vunpack.c.h.b16 %v949
        %v3343 = vunpack.c.l.b16 %v950
        %v3344 = vunpack.c.h.b16 %v950
        %v3345 = vunpack.c.l.b16 %v951
        %v3346 = vunpack.c.h.b16 %v951
        %v3347 = vunpack.c.l.b16 %v952
        %v3348 = vunpack.c.h.b16 %v952
        %v3349 = vunpack.c.l.b16 %v953
        %v3350 = vunpack.c.h.b16 %v953
        %v3351 = vunpack.c.l.b16 %v954
        %v3352 = vunpack.c.h.b16 %v954
        %v3353 = vunpack.c.l.b16 %v955
        %v3354 = vunpack.c.h.b16 %v955
        %v3355 = vunpack.c.l.b16 %v956
        %v3356 = vunpack.c.h.b16 %v956
        %v3357 = vunpack.c.l.b16 %v957
        %v3358 = vunpack.c.h.b16 %v957
        %v3359 = vunpack.c.l.b16 %v958
        %v3360 = vunpack.c.h.b16 %v958
        %v3361 = vunpack.c.l.b16 %v959
        %v3362 = vunpack.c.h.b16 %v959
        %v3363 = vunpack.c.l.b16 %v960
        %v3364 = vunpack.c.h.b16 %v960
        %v3365 = vunpack.c.l.b16 %v961
        %v3366 = vunpack.c.h.b16 %v961
        %v3367 = vunpack.c.l.b16 %v962
        %v3368 = vunpack.c.h.b16 %v962
        %v3369 = vunpack.c.l.b16 %v963
        %v3370 = vunpack.c.h.b16 %v963
        %v3371 = vunpack.c.l.b16 %v964
        %v3372 = vunpack.c.h.b16 %v964
        %v3373 = vunpack.c.l.b16 %v965
        %v3374 = vunpack.c.h.b16 %v965
        %v3375 = vunpack.c.l.b16 %v966
        %v3376 = vunpack.c.h.b16 %v966
        %v3377 = vunpack.c.l.b16 %v967
        %v3378 = vunpack.c.h.b16 %v967
        %v3379 = vunpack.c.l.b16 %v968
        %v3380 = vunpack.c.h.b16 %v968
        %v3381 = vunpack.c.l.b16 %v969
        %v3382 = vunpack.c.h.b16 %v969
        %v3383 = vunpack.c.l.b16 %v970
        %v3384 = vunpack.c.h.b16 %v970
        %v3385 = vunpack.c.l.b16 %v971
        %v3386 = vunpack.c.h.b16 %v971
        %v3387 = vunpack.c.l.b16 %v972
        %v3388 = vunpack.c.h.b16 %v972
        %v3389 = vunpack.c.l.b16 %v973
        %v3390 = vunpack.c.h.b16 %v973
        %v3391 = vunpack.c.l.b16 %v974
        %v3392 = vunpack.c.h.b16 %v974
        %v3393 = vunpack.c.l.b16 %v975
        %v3394 = vunpack.c.h.b16 %v975
        %v3395 = vunpack.c.l.b16 %v976
        %v3396 = vunpack.c.h.b16 %v976
        %v3397 = vunpack.c.l.b16 %v977
        %v3398 = vunpack.c.h.b16 %v977
        %v3399 = vunpack.c.l.b16 %v978
        %v3400 = vunpack.c.h.b16 %v978
        %v3401 = vunpack.c.l.b16 %v979
        %v3402 = vunpack.c.h.b16 %v979
        %v3403 = vunpack.c.l.b16 %v980
        %v3404 = vunpack.c.h.b16 %v980
        %v3405 = vunpack.c.l.b16 %v981
        %v3406 = vunpack.c.h.b16 %v981
        %v3407 = vunpack.c.l.b16 %v982
        %v3408 = vunpack.c.h.b16 %v982
        %v3409 = vunpack.c.l.b16 %v983
        %v3410 = vunpack.c.h.b16 %v983
        %v3411 = vunpack.c.l.b16 %v984
        %v3412 = vunpack.c.h.b16 %v984
        %v3413 = vunpack.c.l.b16 %v985
        %v3414 = vunpack.c.h.b16 %v985
        %v3415 = vunpack.c.l.b16 %v986
        %v3416 = vunpack.c.h.b16 %v986
        %v3417 = vunpack.c.l.b16 %v987
        %v3418 = vunpack.c.h.b16 %v987
        %v3419 = vunpack.c.l.b16 %v988
        %v3420 = vunpack.c.h.b16 %v988
        %v3421 = vunpack.c.l.b16 %v989
        %v3422 = vunpack.c.h.b16 %v989
        %v3423 = vunpack.c.l.b16 %v990
        %v3424 = vunpack.c.h.b16 %v990
        %v3425 = vunpack.c.l.b16 %v991
        %v3426 = vunpack.c.h.b16 %v991
        %v3427 = vunpack.c.l.b16 %v992
        %v3428 = vunpack.c.h.b16 %v992
        %v3429 = vunpack.c.l.b16 %v993
        %v3430 = vunpack.c.h.b16 %v993
        %v3431 = vunpack.c.l.b16 %v994
        %v3432 = vunpack.c.h.b16 %v994
        %v3433 = vunpack.c.l.b16 %v995
        %v3434 = vunpack.c.h.b16 %v995
        %v3435 = vunpack.c.l.b16 %v996
        %v3436 = vunpack.c.h.b16 %v996
        %v3437 = vunpack.c.l.b16 %v997
        %v3438 = vunpack.c.h.b16 %v997
        %v3439 = vunpack.c.l.b16 %v998
        %v3440 = vunpack.c.h.b16 %v998
        %v3441 = vunpack.c.l.b16 %v999
        %v3442 = vunpack.c.h.b16 %v999
        %v3443 = vunpack.c.l.b16 %v1000
        %v3444 = vunpack.c.h.b16 %v1000
        %v3445 = vunpack.c.l.b16 %v1001
        %v3446 = vunpack.c.h.b16 %v1001
        %v3447 = vunpack.c.l.b16 %v1002
        %v3448 = vunpack.c.h.b16 %v1002
        %v3449 = vunpack.c.l.b16 %v1003
        %v3450 = vunpack.c.h.b16 %v1003
        %v3451 = vunpack.c.l.b16 %v1004
        %v3452 = vunpack.c.h.b16 %v1004
        %v3453 = vunpack.c.l.b16 %v1005
        %v3454 = vunpack.c.h.b16 %v1005
        %v3455 = vunpack.c.l.b16 %v1006
        %v3456 = vunpack.c.h.b16 %v1006
        %v3457 = vunpack.c.l.b16 %v1007
        %v3458 = vunpack.c.h.b16 %v1007
        %v3459 = vunpack.c.l.b16 %v1008
        %v3460 = vunpack.c.h.b16 %v1008
        %v3461 = vunpack.c.l.b16 %v1009
        %v3462 = vunpack.c.h.b16 %v1009
        %v3463 = vunpack.c.l.b16 %v1010
        %v3464 = vunpack.c.h.b16 %v1010
        %v3465 = vunpack.c.l.b16 %v1011
        %v3466 = vunpack.c.h.b16 %v1011
        %v3467 = vunpack.c.l.b16 %v1012
        %v3468 = vunpack.c.h.b16 %v1012
        %v3469 = vunpack.c.l.b16 %v1013
        %v3470 = vunpack.c.h.b16 %v1013
        %v3471 = vunpack.c.l.b16 %v1014
        %v3472 = vunpack.c.h.b16 %v1014
        %v3473 = vunpack.c.l.b16 %v1015
        %v3474 = vunpack.c.h.b16 %v1015
        %v3475 = vunpack.c.l.b16 %v1016
        %v3476 = vunpack.c.h.b16 %v1016
        %v3477 = vunpack.c.l.b16 %v1017
        %v3478 = vunpack.c.h.b16 %v1017
        %v3479 = vunpack.c.l.b16 %v1018
        %v3480 = vunpack.c.h.b16 %v1018
        %v3481 = vunpack.c.l.b16 %v1019
        %v3482 = vunpack.c.h.b16 %v1019
        %v3483 = vunpack.c.l.b16 %v1020
        %v3484 = vunpack.c.h.b16 %v1020
        %v3485 = vunpack.c.l.b16 %v1021
        %v3486 = vunpack.c.h.b16 %v1021
        %v3487 = vunpack.c.l.b16 %v1022
        %v3488 = vunpack.c.h.b16 %v1022
        %v3489 = vunpack.c.l.b16 %v1023
        %v3490 = vunpack.c.h.b16 %v1023
        %v3491 = vunpack.c.l.b16 %v1024
        %v3492 = vunpack.c.h.b16 %v1024
        %v3493 = vunpack.c.l.b16 %v1025
        %v3494 = vunpack.c.h.b16 %v1025
        %v3495 = vunpack.c.l.b16 %v1026
        %v3496 = vunpack.c.h.b16 %v1026
        %v3497 = vunpack.c.l.b16 %v1027
        %v3498 = vunpack.c.h.b16 %v1027
        %v3499 = vunpack.c.l.b16 %v1028
        %v3500 = vunpack.c.h.b16 %v1028
        %v3501 = vunpack.c.l.b16 %v1029
        %v3502 = vunpack.c.h.b16 %v1029
        %v3503 = vunpack.c.l.b16 %v1030
        %v3504 = vunpack.c.h.b16 %v1030
        %v3505 = vunpack.c.l.b16 %v1031
        %v3506 = vunpack.c.h.b16 %v1031
        %v3507 = vunpack.c.l.b16 %v1032
        %v3508 = vunpack.c.h.b16 %v1032
        %v3509 = vunpack.c.l.b16 %v1033
        %v3510 = vunpack.c.h.b16 %v1033
        %v3511 = vunpack.c.l.b16 %v1034
        %v3512 = vunpack.c.h.b16 %v1034
        %v3513 = vunpack.c.l.b16 %v1035
        %v3514 = vunpack.c.h.b16 %v1035
        %v3515 = vunpack.c.l.b16 %v1036
        %v3516 = vunpack.c.h.b16 %v1036
        %v3517 = vunpack.c.l.b16 %v1037
        %v3518 = vunpack.c.h.b16 %v1037
        %v3519 = vunpack.c.l.b16 %v1038
        %v3520 = vunpack.c.h.b16 %v1038
        %v3521 = vunpack.c.l.b16 %v1039
        %v3522 = vunpack.c.h.b16 %v1039
        %v3523 = vunpack.c.l.b16 %v1040
        %v3524 = vunpack.c.h.b16 %v1040
        %v3525 = vunpack.c.l.b16 %v1041
        %v3526 = vunpack.c.h.b16 %v1041
        %v3527 = vunpack.c.l.b16 %v1042
        %v3528 = vunpack.c.h.b16 %v1042
        %v3529 = vunpack.c.l.b16 %v1043
        %v3530 = vunpack.c.h.b16 %v1043
        %v3531 = vunpack.c.l.b16 %v1044
        %v3532 = vunpack.c.h.b16 %v1044
        %v3533 = vunpack.c.l.b16 %v1045
        %v3534 = vunpack.c.h.b16 %v1045
        %v3535 = vunpack.c.l.b16 %v1046
        %v3536 = vunpack.c.h.b16 %v1046
        %v3537 = vunpack.c.l.b16 %v1047
        %v3538 = vunpack.c.h.b16 %v1047
        %v3539 = vunpack.c.l.b16 %v1048
        %v3540 = vunpack.c.h.b16 %v1048
        %v3541 = vunpack.c.l.b16 %v1049
        %v3542 = vunpack.c.h.b16 %v1049
        %v3543 = vunpack.c.l.b16 %v1050
        %v3544 = vunpack.c.h.b16 %v1050
        %v3545 = vunpack.c.l.b16 %v1051
        %v3546 = vunpack.c.h.b16 %v1051
        %v3547 = vunpack.c.l.b16 %v1052
        %v3548 = vunpack.c.h.b16 %v1052
        %v3549 = vunpack.c.l.b16 %v1053
        %v3550 = vunpack.c.h.b16 %v1053
        %v3551 = vunpack.c.l.b16 %v1054
        %v3552 = vunpack.c.h.b16 %v1054
        %v3553 = vunpack.c.l.b16 %v1055
        %v3554 = vunpack.c.h.b16 %v1055
        %v3555 = vunpack.c.l.b16 %v1056
        %v3556 = vunpack.c.h.b16 %v1056
        %v3557 = vunpack.c.l.b16 %v1057
        %v3558 = vunpack.c.h.b16 %v1057
        %v3559 = vunpack.c.l.b16 %v1058
        %v3560 = vunpack.c.h.b16 %v1058
        %v3561 = vunpack.c.l.b16 %v1059
        %v3562 = vunpack.c.h.b16 %v1059
        %v3563 = vunpack.c.l.b16 %v1060
        %v3564 = vunpack.c.h.b16 %v1060
        %v3565 = vunpack.c.l.b16 %v1061
        %v3566 = vunpack.c.h.b16 %v1061
        %v3567 = vunpack.c.l.b16 %v1062
        %v3568 = vunpack.c.h.b16 %v1062
        %v3569 = vunpack.c.l.b16 %v1063
        %v3570 = vunpack.c.h.b16 %v1063
        %v3571 = vunpack.c.l.b16 %v1064
        %v3572 = vunpack.c.h.b16 %v1064
        %v3573 = vunpack.c.l.b16 %v1065
        %v3574 = vunpack.c.h.b16 %v1065
        %v3575 = vunpack.c.l.b16 %v1066
        %v3576 = vunpack.c.h.b16 %v1066
        %v3577 = vunpack.c.l.b16 %v1067
        %v3578 = vunpack.c.h.b16 %v1067
        %v3579 = vunpack.c.l.b16 %v1068
        %v3580 = vunpack.c.h.b16 %v1068
        %v3581 = vunpack.c.l.b16 %v1069
        %v3582 = vunpack.c.h.b16 %v1069
        %v3583 = vunpack.c.l.b16 %v1070
        %v3584 = vunpack.c.h.b16 %v1070
        %v3585 = vunpack.c.l.b16 %v1071
        %v3586 = vunpack.c.h.b16 %v1071
        %v3587 = vunpack.c.l.b16 %v1072
        %v3588 = vunpack.c.h.b16 %v1072
        %v3589 = vunpack.c.l.b16 %v1073
        %v3590 = vunpack.c.h.b16 %v1073
        %v3591 = vunpack.c.l.b16 %v1074
        %v3592 = vunpack.c.h.b16 %v1074
        %v3593 = vunpack.c.l.b16 %v1075
        %v3594 = vunpack.c.h.b16 %v1075
        %v3595 = vunpack.c.l.b16 %v1076
        %v3596 = vunpack.c.h.b16 %v1076
        %v3597 = vunpack.c.l.b16 %v1077
        %v3598 = vunpack.c.h.b16 %v1077
        %v3599 = vunpack.c.l.b16 %v1078
        %v3600 = vunpack.c.h.b16 %v1078
        %v3601 = vunpack.c.l.b16 %v1079
        %v3602 = vunpack.c.h.b16 %v1079
        %v3603 = vunpack.c.l.b16 %v1080
        %v3604 = vunpack.c.h.b16 %v1080
        %v3605 = vunpack.c.l.b16 %v1081
        %v3606 = vunpack.c.h.b16 %v1081
        %v3607 = vunpack.c.l.b16 %v1082
        %v3608 = vunpack.c.h.b16 %v1082
        %v3609 = vunpack.c.l.b16 %v1083
        %v3610 = vunpack.c.h.b16 %v1083
        %v3611 = vunpack.c.l.b16 %v1084
        %v3612 = vunpack.c.h.b16 %v1084
        %v3613 = vunpack.c.l.b16 %v1085
        %v3614 = vunpack.c.h.b16 %v1085
        %v3615 = vunpack.c.l.b16 %v1086
        %v3616 = vunpack.c.h.b16 %v1086
        %v3617 = vunpack.c.l.b16 %v1087
        %v3618 = vunpack.c.h.b16 %v1087
        %v3619 = vunpack.c.l.b16 %v1088
        %v3620 = vunpack.c.h.b16 %v1088
        %v3621 = vunpack.c.l.b16 %v1089
        %v3622 = vunpack.c.h.b16 %v1089
        %v3623 = vunpack.c.l.b16 %v1090
        %v3624 = vunpack.c.h.b16 %v1090
        %v3625 = vunpack.c.l.b16 %v1091
        %v3626 = vunpack.c.h.b16 %v1091
        %v3627 = vunpack.c.l.b16 %v1092
        %v3628 = vunpack.c.h.b16 %v1092
        %v3629 = vunpack.c.l.b16 %v1093
        %v3630 = vunpack.c.h.b16 %v1093
        %v3631 = vunpack.c.l.b16 %v1094
        %v3632 = vunpack.c.h.b16 %v1094
        %v3633 = vunpack.c.l.b16 %v1095
        %v3634 = vunpack.c.h.b16 %v1095
        %v3635 = vunpack.c.l.b16 %v1096
        %v3636 = vunpack.c.h.b16 %v1096
        %v3637 = vunpack.c.l.b16 %v1097
        %v3638 = vunpack.c.h.b16 %v1097
        %v3639 = vunpack.c.l.b16 %v1098
        %v3640 = vunpack.c.h.b16 %v1098
        %v3641 = vunpack.c.l.b16 %v1099
        %v3642 = vunpack.c.h.b16 %v1099
        %v3643 = vunpack.c.l.b16 %v1100
        %v3644 = vunpack.c.h.b16 %v1100
        %v3645 = vunpack.c.l.b16 %v1101
        %v3646 = vunpack.c.h.b16 %v1101
        %v3647 = vunpack.c.l.b16 %v1102
        %v3648 = vunpack.c.h.b16 %v1102
        %v3649 = vunpack.c.l.b16 %v1103
        %v3650 = vunpack.c.h.b16 %v1103
        %v3651 = vunpack.c.l.b16 %v1104
        %v3652 = vunpack.c.h.b16 %v1104
        %v3653 = vunpack.c.l.b16 %v1105
        %v3654 = vunpack.c.h.b16 %v1105
        %v3655 = vunpack.c.l.b16 %v1106
        %v3656 = vunpack.c.h.b16 %v1106
        %v3657 = vunpack.c.l.b16 %v1107
        %v3658 = vunpack.c.h.b16 %v1107
        %v3659 = vunpack.c.l.b16 %v1108
        %v3660 = vunpack.c.h.b16 %v1108
        %v3661 = vunpack.c.l.b16 %v1109
        %v3662 = vunpack.c.h.b16 %v1109
        %v3663 = vunpack.c.l.b16 %v1110
        %v3664 = vunpack.c.h.b16 %v1110
        %v3665 = vunpack.c.l.b16 %v1111
        %v3666 = vunpack.c.h.b16 %v1111
        %v3667 = vunpack.c.l.b16 %v1112
        %v3668 = vunpack.c.h.b16 %v1112
        %v3669 = vunpack.c.l.b16 %v1113
        %v3670 = vunpack.c.h.b16 %v1113
        %v3671 = vunpack.c.l.b16 %v1114
        %v3672 = vunpack.c.h.b16 %v1114
        %v3673 = vunpack.c.l.b16 %v1115
        %v3674 = vunpack.c.h.b16 %v1115
        %v3675 = vunpack.c.l.b16 %v1116
        %v3676 = vunpack.c.h.b16 %v1116
        %v3677 = vunpack.c.l.b16 %v1117
        %v3678 = vunpack.c.h.b16 %v1117
        %v3679 = vunpack.c.l.b16 %v1118
        %v3680 = vunpack.c.h.b16 %v1118
        %v3681 = vunpack.c.l.b16 %v1119
        %v3682 = vunpack.c.h.b16 %v1119
        %v3683 = vunpack.c.l.b16 %v1120
        %v3684 = vunpack.c.h.b16 %v1120
        %v3685 = vunpack.c.l.b16 %v1121
        %v3686 = vunpack.c.h.b16 %v1121
        %v3687 = vunpack.c.l.b16 %v1122
        %v3688 = vunpack.c.h.b16 %v1122
        %v3689 = vunpack.c.l.b16 %v1123
        %v3690 = vunpack.c.h.b16 %v1123
        %v3691 = vunpack.c.l.b16 %v1124
        %v3692 = vunpack.c.h.b16 %v1124
        %v3693 = vunpack.c.l.b16 %v1125
        %v3694 = vunpack.c.h.b16 %v1125
        %v3695 = vunpack.c.l.b16 %v1126
        %v3696 = vunpack.c.h.b16 %v1126
        %v3697 = vunpack.c.l.b16 %v1127
        %v3698 = vunpack.c.h.b16 %v1127
        %v3699 = vunpack.c.l.b16 %v1128
        %v3700 = vunpack.c.h.b16 %v1128
        %v3701 = vunpack.c.l.b16 %v1129
        %v3702 = vunpack.c.h.b16 %v1129
        %v3703 = vunpack.c.l.b16 %v1130
        %v3704 = vunpack.c.h.b16 %v1130
        %v3705 = vunpack.c.l.b16 %v1131
        %v3706 = vunpack.c.h.b16 %v1131
        %v3707 = vunpack.c.l.b16 %v1132
        %v3708 = vunpack.c.h.b16 %v1132
        %v3709 = vunpack.c.l.b16 %v1133
        %v3710 = vunpack.c.h.b16 %v1133
        %v3711 = vunpack.c.l.b16 %v1134
        %v3712 = vunpack.c.h.b16 %v1134
        %v3713 = vunpack.c.l.b16 %v1135
        %v3714 = vunpack.c.h.b16 %v1135
        %v3715 = vunpack.c.l.b16 %v1136
        %v3716 = vunpack.c.h.b16 %v1136
        %v3717 = vunpack.c.l.b16 %v1137
        %v3718 = vunpack.c.h.b16 %v1137
        %v3719 = vunpack.c.l.b16 %v1138
        %v3720 = vunpack.c.h.b16 %v1138
        %v3721 = vunpack.c.l.b16 %v1139
        %v3722 = vunpack.c.h.b16 %v1139
        %v3723 = vunpack.c.l.b16 %v1140
        %v3724 = vunpack.c.h.b16 %v1140
        %v3725 = vunpack.c.l.b16 %v1141
        %v3726 = vunpack.c.h.b16 %v1141
        %v3727 = vunpack.c.l.b16 %v1142
        %v3728 = vunpack.c.h.b16 %v1142
        %v3729 = vunpack.c.l.b16 %v1143
        %v3730 = vunpack.c.h.b16 %v1143
        %v3731 = vunpack.c.l.b16 %v1144
        %v3732 = vunpack.c.h.b16 %v1144
        %v3733 = vunpack.c.l.b16 %v1145
        %v3734 = vunpack.c.h.b16 %v1145
        %v3735 = vunpack.c.l.b16 %v1146
        %v3736 = vunpack.c.h.b16 %v1146
        %v3737 = vunpack.c.l.b16 %v1147
        %v3738 = vunpack.c.h.b16 %v1147
        %v3739 = vunpack.c.l.b16 %v1148
        %v3740 = vunpack.c.h.b16 %v1148
        %v3741 = vunpack.c.l.b16 %v1149
        %v3742 = vunpack.c.h.b16 %v1149
        %v3743 = vunpack.c.l.b16 %v1150
        %v3744 = vunpack.c.h.b16 %v1150
        %v3745 = vunpack.c.l.b16 %v1151
        %v3746 = vunpack.c.h.b16 %v1151
        %v3747 = vunpack.c.l.b16 %v1152
        %v3748 = vunpack.c.h.b16 %v1152
        %v3749 = vunpack.c.l.b16 %v1153
        %v3750 = vunpack.c.h.b16 %v1153
        %v3751 = vunpack.c.l.b16 %v1154
        %v3752 = vunpack.c.h.b16 %v1154
        %v3753 = vunpack.c.l.b16 %v1155
        %v3754 = vunpack.c.h.b16 %v1155
        %v3755 = vunpack.c.l.b16 %v1156
        %v3756 = vunpack.c.h.b16 %v1156
        %v3757 = vunpack.c.l.b16 %v1157
        %v3758 = vunpack.c.h.b16 %v1157
        %v3759 = vunpack.c.l.b16 %v1158
        %v3760 = vunpack.c.h.b16 %v1158
        %v3761 = vunpack.c.l.b16 %v1159
        %v3762 = vunpack.c.h.b16 %v1159
        %v3763 = vunpack.c.l.b16 %v1160
        %v3764 = vunpack.c.h.b16 %v1160
        %v3765 = vunpack.c.l.b16 %v1161
        %v3766 = vunpack.c.h.b16 %v1161
        %v3767 = vunpack.c.l.b16 %v1162
        %v3768 = vunpack.c.h.b16 %v1162
        %v3769 = vunpack.c.l.b16 %v1163
        %v3770 = vunpack.c.h.b16 %v1163
        %v3771 = vunpack.c.l.b16 %v1164
        %v3772 = vunpack.c.h.b16 %v1164
        %v3773 = vunpack.c.l.b16 %v1165
        %v3774 = vunpack.c.h.b16 %v1165
        %v3775 = vunpack.c.l.b16 %v1166
        %v3776 = vunpack.c.h.b16 %v1166
        %v3777 = vunpack.c.l.b16 %v1167
        %v3778 = vunpack.c.h.b16 %v1167
        %v3779 = vunpack.c.l.b16 %v1168
        %v3780 = vunpack.c.h.b16 %v1168
        %v3781 = vunpack.c.l.b16 %v1169
        %v3782 = vunpack.c.h.b16 %v1169
        %v3783 = vunpack.c.l.b16 %v1170
        %v3784 = vunpack.c.h.b16 %v1170
        %v3785 = vunpack.c.l.b16 %v1171
        %v3786 = vunpack.c.h.b16 %v1171
        %v3787 = vunpack.c.l.b16 %v1172
        %v3788 = vunpack.c.h.b16 %v1172
        %v3789 = vunpack.c.l.b16 %v1173
        %v3790 = vunpack.c.h.b16 %v1173
        %v3791 = vunpack.c.l.b16 %v1174
        %v3792 = vunpack.c.h.b16 %v1174
        %v3793 = vunpack.c.l.b16 %v1175
        %v3794 = vunpack.c.h.b16 %v1175
        %v3795 = vunpack.c.l.b16 %v1176
        %v3796 = vunpack.c.h.b16 %v1176
        %v3797 = vunpack.c.l.b16 %v1177
        %v3798 = vunpack.c.h.b16 %v1177
        %v3799 = vunpack.c.l.b16 %v1178
        %v3800 = vunpack.c.h.b16 %v1178
        %v3801 = vunpack.c.l.b16 %v1179
        %v3802 = vunpack.c.h.b16 %v1179
        %v3803 = vunpack.c.l.b16 %v1180
        %v3804 = vunpack.c.h.b16 %v1180
        %v3805 = vunpack.c.l.b16 %v1181
        %v3806 = vunpack.c.h.b16 %v1181
        %v3807 = vunpack.c.l.b16 %v1182
        %v3808 = vunpack.c.h.b16 %v1182
        %v3809 = vunpack.c.l.b16 %v1183
        %v3810 = vunpack.c.h.b16 %v1183
        %v3811 = vunpack.c.l.b16 %v1184
        %v3812 = vunpack.c.h.b16 %v1184
        %v3813 = vunpack.c.l.b16 %v1185
        %v3814 = vunpack.c.h.b16 %v1185
        %v3815 = vunpack.c.l.b16 %v1186
        %v3816 = vunpack.c.h.b16 %v1186
        %v3817 = vunpack.c.l.b16 %v1187
        %v3818 = vunpack.c.h.b16 %v1187
        %v3819 = vunpack.c.l.b16 %v1188
        %v3820 = vunpack.c.h.b16 %v1188
        %v3821 = vunpack.c.l.b16 %v1189
        %v3822 = vunpack.c.h.b16 %v1189
        %v3823 = vunpack.c.l.b16 %v1190
        %v3824 = vunpack.c.h.b16 %v1190
        %v3825 = vunpack.c.l.b16 %v1191
        %v3826 = vunpack.c.h.b16 %v1191
        %v3827 = vunpack.c.l.b16 %v1192
        %v3828 = vunpack.c.h.b16 %v1192
        %v3829 = vunpack.c.l.b16 %v1193
        %v3830 = vunpack.c.h.b16 %v1193
        %v3831 = vunpack.c.l.b16 %v1194
        %v3832 = vunpack.c.h.b16 %v1194
        %v3833 = vunpack.c.l.b16 %v1195
        %v3834 = vunpack.c.h.b16 %v1195
        %v3835 = vunpack.c.l.b16 %v1196
        %v3836 = vunpack.c.h.b16 %v1196
        %v3837 = vunpack.c.l.b16 %v1197
        %v3838 = vunpack.c.h.b16 %v1197
        %v3839 = vunpack.c.l.b16 %v1198
        %v3840 = vunpack.c.h.b16 %v1198
        %v3841 = vunpack.c.l.b16 %v1199
        %v3842 = vunpack.c.h.b16 %v1199
        %v3843 = vunpack.c.l.b16 %v1200
        %v3844 = vunpack.c.h.b16 %v1200
        %v3845 = vunpack.c.l.b16 %v1201
        %v3846 = vunpack.c.h.b16 %v1201
        %v3847 = vunpack.c.l.b16 %v1202
        %v3848 = vunpack.c.h.b16 %v1202
        %v3849 = vunpack.c.l.b16 %v1203
        %v3850 = vunpack.c.h.b16 %v1203
        %v3851 = vunpack.c.l.b16 %v1204
        %v3852 = vunpack.c.h.b16 %v1204
        %v3853 = vunpack.c.l.b16 %v1205
        %v3854 = vunpack.c.h.b16 %v1205
        %v3855 = vunpack.c.l.b16 %v1206
        %v3856 = vunpack.c.h.b16 %v1206
        %v3857 = vunpack.c.l.b16 %v1207
        %v3858 = vunpack.c.h.b16 %v1207
        %v3859 = vunpack.c.l.b16 %v1208
        %v3860 = vunpack.c.h.b16 %v1208
        %v3861 = vunpack.c.l.b16 %v1209
        %v3862 = vunpack.c.h.b16 %v1209
        %v3863 = vunpack.c.l.b16 %v1210
        %v3864 = vunpack.c.h.b16 %v1210
        %v3865 = vunpack.c.l.b16 %v1211
        %v3866 = vunpack.c.h.b16 %v1211
        %v3867 = vpack.c.b16 %v2157, %v2139
        %v3868 = vpack.c.b16 %v2158, %v2140
        %v3869 = vpack.c.b16 %v2159, %v2141
        %v3870 = vpack.c.b16 %v2160, %v2142
        %v3871 = vpack.c.b16 %v2161, %v2143
        %v3872 = vpack.c.b16 %v2162, %v2144
        %v3873 = vpack.c.b16 %v2163, %v2145
        %v3874 = vpack.c.b16 %v2164, %v2146
        %v3875 = vpack.c.b16 %v2165, %v2147
        %v3876 = vpack.c.b16 %v2166, %v2148
        %v3877 = vpack.c.b16 %v2167, %v2149
        %v3878 = vpack.c.b16 %v2168, %v2150
        %v3879 = vpack.c.b16 %v2169, %v2151
        %v3880 = vpack.c.b16 %v2170, %v2152
        %v3881 = vpack.c.b16 %v2171, %v2153
        %v3882 = vpack.c.b16 %v2172, %v2154
        %v3883 = vpack.c.b16 %v2173, %v2155
        %v3884 = vpack.c.b16 %v2174, %v2156
        %v3885 = vpack.c.b16 %v2193, %v2175
        %v3886 = vpack.c.b16 %v2194, %v2176
        %v3887 = vpack.c.b16 %v2195, %v2177
        %v3888 = vpack.c.b16 %v2196, %v2178
        %v3889 = vpack.c.b16 %v2197, %v2179
        %v3890 = vpack.c.b16 %v2198, %v2180
        %v3891 = vpack.c.b16 %v2199, %v2181
        %v3892 = vpack.c.b16 %v2200, %v2182
        %v3893 = vpack.c.b16 %v2201, %v2183
        %v3894 = vpack.c.b16 %v2202, %v2184
        %v3895 = vpack.c.b16 %v2203, %v2185
        %v3896 = vpack.c.b16 %v2204, %v2186
        %v3897 = vpack.c.b16 %v2205, %v2187
        %v3898 = vpack.c.b16 %v2206, %v2188
        %v3899 = vpack.c.b16 %v2207, %v2189
        %v3900 = vpack.c.b16 %v2208, %v2190
        %v3901 = vpack.c.b16 %v2209, %v2191
        %v3902 = vpack.c.b16 %v2210, %v2192
        %v3903 = vpack.c.b16 %v2229, %v2211
        %v3904 = vpack.c.b16 %v2230, %v2212
        %v3905 = vpack.c.b16 %v2231, %v2213
        %v3906 = vpack.c.b16 %v2232, %v2214
        %v3907 = vpack.c.b16 %v2233, %v2215
        %v3908 = vpack.c.b16 %v2234, %v2216
        %v3909 = vpack.c.b16 %v2235, %v2217
        %v3910 = vpack.c.b16 %v2236, %v2218
        %v3911 = vpack.c.b16 %v2237, %v2219
        %v3912 = vpack.c.b16 %v2238, %v2220
        %v3913 = vpack.c.b16 %v2239, %v2221
        %v3914 = vpack.c.b16 %v2240, %v2222
        %v3915 = vpack.c.b16 %v2241, %v2223
        %v3916 = vpack.c.b16 %v2242, %v2224
        %v3917 = vpack.c.b16 %v2243, %v2225
        %v3918 = vpack.c.b16 %v2244, %v2226
        %v3919 = vpack.c.b16 %v2245, %v2227
        %v3920 = vpack.c.b16 %v2246, %v2228
        %v3921 = vpack.c.b16 %v2265, %v2247
        %v3922 = vpack.c.b16 %v2266, %v2248
        %v3923 = vpack.c.b16 %v2267, %v2249
        %v3924 = vpack.c.b16 %v2268, %v2250
        %v3925 = vpack.c.b16 %v2269, %v2251
        %v3926 = vpack.c.b16 %v2270, %v2252
        %v3927 = vpack.c.b16 %v2271, %v2253
        %v3928 = vpack.c.b16 %v2272, %v2254
        %v3929 = vpack.c.b16 %v2273, %v2255
        %v3930 = vpack.c.b16 %v2274, %v2256
        %v3931 = vpack.c.b16 %v2275, %v2257
        %v3932 = vpack.c.b16 %v2276, %v2258
        %v3933 = vpack.c.b16 %v2277, %v2259
        %v3934 = vpack.c.b16 %v2278, %v2260
        %v3935 = vpack.c.b16 %v2279, %v2261
        %v3936 = vpack.c.b16 %v2280, %v2262
        %v3937 = vpack.c.b16 %v2281, %v2263
        %v3938 = vpack.c.b16 %v2282, %v2264
        %v3939 = vpack.c.b16 %v2301, %v2283
        %v3940 = vpack.c.b16 %v2302, %v2284
        %v3941 = vpack.c.b16 %v2303, %v2285
        %v3942 = vpack.c.b16 %v2304, %v2286
        %v3943 = vpack.c.b16 %v2305, %v2287
        %v3944 = vpack.c.b16 %v2306, %v2288
        %v3945 = vpack.c.b16 %v2307, %v2289
        %v3946 = vpack.c.b16 %v2308, %v2290
        %v3947 = vpack.c.b16 %v2309, %v2291
        %v3948 = vpack.c.b16 %v2310, %v2292
        %v3949 = vpack.c.b16 %v2311, %v2293
        %v3950 = vpack.c.b16 %v2312, %v2294
        %v3951 = vpack.c.b16 %v2313, %v2295
        %v3952 = vpack.c.b16 %v2314, %v2296
        %v3953 = vpack.c.b16 %v2315, %v2297
        %v3954 = vpack.c.b16 %v2316, %v2298
        %v3955 = vpack.c.b16 %v2317, %v2299
        %v3956 = vpack.c.b16 %v2318, %v2300
        %v3957 = vpack.c.b16 %v2337, %v2319
        %v3958 = vpack.c.b16 %v2338, %v2320
        %v3959 = vpack.c.b16 %v2339, %v2321
        %v3960 = vpack.c.b16 %v2340, %v2322
        %v3961 = vpack.c.b16 %v2341, %v2323
        %v3962 = vpack.c.b16 %v2342, %v2324
        %v3963 = vpack.c.b16 %v2343, %v2325
        %v3964 = vpack.c.b16 %v2344, %v2326
        %v3965 = vpack.c.b16 %v2345, %v2327
        %v3966 = vpack.c.b16 %v2346, %v2328
        %v3967 = vpack.c.b16 %v2347, %v2329
        %v3968 = vpack.c.b16 %v2348, %v2330
        %v3969 = vpack.c.b16 %v2349, %v2331
        %v3970 = vpack.c.b16 %v2350, %v2332
        %v3971 = vpack.c.b16 %v2351, %v2333
        %v3972 = vpack.c.b16 %v2352, %v2334
        %v3973 = vpack.c.b16 %v2353, %v2335
        %v3974 = vpack.c.b16 %v2354, %v2336
        %v3975 = vpack.c.b16 %v2373, %v2355
        %v3976 = vpack.c.b16 %v2374, %v2356
        %v3977 = vpack.c.b16 %v2375, %v2357
        %v3978 = vpack.c.b16 %v2376, %v2358
        %v3979 = vpack.c.b16 %v2377, %v2359
        %v3980 = vpack.c.b16 %v2378, %v2360
        %v3981 = vpack.c.b16 %v2379, %v2361
        %v3982 = vpack.c.b16 %v2380, %v2362
        %v3983 = vpack.c.b16 %v2381, %v2363
        %v3984 = vpack.c.b16 %v2382, %v2364
        %v3985 = vpack.c.b16 %v2383, %v2365
        %v3986 = vpack.c.b16 %v2384, %v2366
        %v3987 = vpack.c.b16 %v2385, %v2367
        %v3988 = vpack.c.b16 %v2386, %v2368
        %v3989 = vpack.c.b16 %v2387, %v2369
        %v3990 = vpack.c.b16 %v2388, %v2370
        %v3991 = vpack.c.b16 %v2389, %v2371
        %v3992 = vpack.c.b16 %v2390, %v2372
        %v3993 = vpack.c.b16 %v2409, %v2391
        %v3994 = vpack.c.b16 %v2410, %v2392
        %v3995 = vpack.c.b16 %v2411, %v2393
        %v3996 = vpack.c.b16 %v2412, %v2394
        %v3997 = vpack.c.b16 %v2413, %v2395
        %v3998 = vpack.c.b16 %v2414, %v2396
        %v3999 = vpack.c.b16 %v2415, %v2397
        %v4000 = vpack.c.b16 %v2416, %v2398
        %v4001 = vpack.c.b16 %v2417, %v2399
        %v4002 = vpack.c.b16 %v2418, %v2400
        %v4003 = vpack.c.b16 %v2419, %v2401
        %v4004 = vpack.c.b16 %v2420, %v2402
        %v4005 = vpack.c.b16 %v2421, %v2403
        %v4006 = vpack.c.b16 %v2422, %v2404
        %v4007 = vpack.c.b16 %v2423, %v2405
        %v4008 = vpack.c.b16 %v2424, %v2406
        %v4009 = vpack.c.b16 %v2425, %v2407
        %v4010 = vpack.c.b16 %v2426, %v2408
        %v4011 = vpack.c.b16 %v2445, %v2427
        %v4012 = vpack.c.b16 %v2446, %v2428
        %v4013 = vpack.c.b16 %v2447, %v2429
        %v4014 = vpack.c.b16 %v2448, %v2430
        %v4015 = vpack.c.b16 %v2449, %v2431
        %v4016 = vpack.c.b16 %v2450, %v2432
        %v4017 = vpack.c.b16 %v2451, %v2433
        %v4018 = vpack.c.b16 %v2452, %v2434
        %v4019 = vpack.c.b16 %v2453, %v2435
        %v4020 = vpack.c.b16 %v2454, %v2436
        %v4021 = vpack.c.b16 %v2455, %v2437
        %v4022 = vpack.c.b16 %v2456, %v2438
        %v4023 = vpack.c.b16 %v2457, %v2439
        %v4024 = vpack.c.b16 %v2458, %v2440
        %v4025 = vpack.c.b16 %v2459, %v2441
        %v4026 = vpack.c.b16 %v2460, %v2442
        %v4027 = vpack.c.b16 %v2461, %v2443
        %v4028 = vpack.c.b16 %v2462, %v2444
        %v4029 = vpack.c.b16 %v2481, %v2463
        %v4030 = vpack.c.b16 %v2482, %v2464
        %v4031 = vpack.c.b16 %v2483, %v2465
        %v4032 = vpack.c.b16 %v2484, %v2466
        %v4033 = vpack.c.b16 %v2485, %v2467
        %v4034 = vpack.c.b16 %v2486, %v2468
        %v4035 = vpack.c.b16 %v2487, %v2469
        %v4036 = vpack.c.b16 %v2488, %v2470
        %v4037 = vpack.c.b16 %v2489, %v2471
        %v4038 = vpack.c.b16 %v2490, %v2472
        %v4039 = vpack.c.b16 %v2491, %v2473
        %v4040 = vpack.c.b16 %v2492, %v2474
        %v4041 = vpack.c.b16 %v2493, %v2475
        %v4042 = vpack.c.b16 %v2494, %v2476
        %v4043 = vpack.c.b16 %v2495, %v2477
        %v4044 = vpack.c.b16 %v2496, %v2478
        %v4045 = vpack.c.b16 %v2497, %v2479
        %v4046 = vpack.c.b16 %v2498, %v2480
        %v4047 = vpack.c.b16 %v2517, %v2499
        %v4048 = vpack.c.b16 %v2518, %v2500
        %v4049 = vpack.c.b16 %v2519, %v2501
        %v4050 = vpack.c.b16 %v2520, %v2502
        %v4051 = vpack.c.b16 %v2521, %v2503
        %v4052 = vpack.c.b16 %v2522, %v2504
        %v4053 = vpack.c.b16 %v2523, %v2505
        %v4054 = vpack.c.b16 %v2524, %v2506
        %v4055 = vpack.c.b16 %v2525, %v2507
        %v4056 = vpack.c.b16 %v2526, %v2508
        %v4057 = vpack.c.b16 %v2527, %v2509
        %v4058 = vpack.c.b16 %v2528, %v2510
        %v4059 = vpack.c.b16 %v2529, %v2511
        %v4060 = vpack.c.b16 %v2530, %v2512
        %v4061 = vpack.c.b16 %v2531, %v2513
        %v4062 = vpack.c.b16 %v2532, %v2514
        %v4063 = vpack.c.b16 %v2533, %v2515
        %v4064 = vpack.c.b16 %v2534, %v2516
        %v4065 = vpack.c.b16 %v2553, %v2535
        %v4066 = vpack.c.b16 %v2554, %v2536
        %v4067 = vpack.c.b16 %v2555, %v2537
        %v4068 = vpack.c.b16 %v2556, %v2538
        %v4069 = vpack.c.b16 %v2557, %v2539
        %v4070 = vpack.c.b16 %v2558, %v2540
        %v4071 = vpack.c.b16 %v2559, %v2541
        %v4072 = vpack.c.b16 %v2560, %v2542
        %v4073 = vpack.c.b16 %v2561, %v2543
        %v4074 = vpack.c.b16 %v2562, %v2544
        %v4075 = vpack.c.b16 %v2563, %v2545
        %v4076 = vpack.c.b16 %v2564, %v2546
        %v4077 = vpack.c.b16 %v2565, %v2547
        %v4078 = vpack.c.b16 %v2566, %v2548
        %v4079 = vpack.c.b16 %v2567, %v2549
        %v4080 = vpack.c.b16 %v2568, %v2550
        %v4081 = vpack.c.b16 %v2569, %v2551
        %v4082 = vpack.c.b16 %v2570, %v2552
        %v4083 = vpack.c.b16 %v2589, %v2571
        %v4084 = vpack.c.b16 %v2590, %v2572
        %v4085 = vpack.c.b16 %v2591, %v2573
        %v4086 = vpack.c.b16 %v2592, %v2574
        %v4087 = vpack.c.b16 %v2593, %v2575
        %v4088 = vpack.c.b16 %v2594, %v2576
        %v4089 = vpack.c.b16 %v2595, %v2577
        %v4090 = vpack.c.b16 %v2596, %v2578
        %v4091 = vpack.c.b16 %v2597, %v2579
        %v4092 = vpack.c.b16 %v2598, %v2580
        %v4093 = vpack.c.b16 %v2599, %v2581
        %v4094 = vpack.c.b16 %v2600, %v2582
        %v4095 = vpack.c.b16 %v2601, %v2583
        %v4096 = vpack.c.b16 %v2602, %v2584
        %v4097 = vpack.c.b16 %v2603, %v2585
        %v4098 = vpack.c.b16 %v2604, %v2586
        %v4099 = vpack.c.b16 %v2605, %v2587
        %v4100 = vpack.c.b16 %v2606, %v2588
        %v4101 = vpack.c.b16 %v2625, %v2607
        %v4102 = vpack.c.b16 %v2626, %v2608
        %v4103 = vpack.c.b16 %v2627, %v2609
        %v4104 = vpack.c.b16 %v2628, %v2610
        %v4105 = vpack.c.b16 %v2629, %v2611
        %v4106 = vpack.c.b16 %v2630, %v2612
        %v4107 = vpack.c.b16 %v2631, %v2613
        %v4108 = vpack.c.b16 %v2632, %v2614
        %v4109 = vpack.c.b16 %v2633, %v2615
        %v4110 = vpack.c.b16 %v2634, %v2616
        %v4111 = vpack.c.b16 %v2635, %v2617
        %v4112 = vpack.c.b16 %v2636, %v2618
        %v4113 = vpack.c.b16 %v2637, %v2619
        %v4114 = vpack.c.b16 %v2638, %v2620
        %v4115 = vpack.c.b16 %v2639, %v2621
        %v4116 = vpack.c.b16 %v2640, %v2622
        %v4117 = vpack.c.b16 %v2641, %v2623
        %v4118 = vpack.c.b16 %v2642, %v2624
        %v4119 = vpack.c.b16 %v2661, %v2643
        %v4120 = vpack.c.b16 %v2662, %v2644
        %v4121 = vpack.c.b16 %v2663, %v2645
        %v4122 = vpack.c.b16 %v2664, %v2646
        %v4123 = vpack.c.b16 %v2665, %v2647
        %v4124 = vpack.c.b16 %v2666, %v2648
        %v4125 = vpack.c.b16 %v2667, %v2649
        %v4126 = vpack.c.b16 %v2668, %v2650
        %v4127 = vpack.c.b16 %v2669, %v2651
        %v4128 = vpack.c.b16 %v2670, %v2652
        %v4129 = vpack.c.b16 %v2671, %v2653
        %v4130 = vpack.c.b16 %v2672, %v2654
        %v4131 = vpack.c.b16 %v2673, %v2655
        %v4132 = vpack.c.b16 %v2674, %v2656
        %v4133 = vpack.c.b16 %v2675, %v2657
        %v4134 = vpack.c.b16 %v2676, %v2658
        %v4135 = vpack.c.b16 %v2677, %v2659
        %v4136 = vpack.c.b16 %v2678, %v2660
        %v4137 = vpack.c.b16 %v2697, %v2679
        %v4138 = vpack.c.b16 %v2698, %v2680
        %v4139 = vpack.c.b16 %v2699, %v2681
        %v4140 = vpack.c.b16 %v2700, %v2682
        %v4141 = vpack.c.b16 %v2701, %v2683
        %v4142 = vpack.c.b16 %v2702, %v2684
        %v4143 = vpack.c.b16 %v2703, %v2685
        %v4144 = vpack.c.b16 %v2704, %v2686
        %v4145 = vpack.c.b16 %v2705, %v2687
        %v4146 = vpack.c.b16 %v2706, %v2688
        %v4147 = vpack.c.b16 %v2707, %v2689
        %v4148 = vpack.c.b16 %v2708, %v2690
        %v4149 = vpack.c.b16 %v2709, %v2691
        %v4150 = vpack.c.b16 %v2710, %v2692
        %v4151 = vpack.c.b16 %v2711, %v2693
        %v4152 = vpack.c.b16 %v2712, %v2694
        %v4153 = vpack.c.b16 %v2713, %v2695
        %v4154 = vpack.c.b16 %v2714, %v2696
        %v4155 = vpack.c.b16 %v2733, %v2715
        %v4156 = vpack.c.b16 %v2734, %v2716
        %v4157 = vpack.c.b16 %v2735, %v2717
        %v4158 = vpack.c.b16 %v2736, %v2718
        %v4159 = vpack.c.b16 %v2737, %v2719
        %v4160 = vpack.c.b16 %v2738, %v2720
        %v4161 = vpack.c.b16 %v2739, %v2721
        %v4162 = vpack.c.b16 %v2740, %v2722
        %v4163 = vpack.c.b16 %v2741, %v2723
        %v4164 = vpack.c.b16 %v2742, %v2724
        %v4165 = vpack.c.b16 %v2743, %v2725
        %v4166 = vpack.c.b16 %v2744, %v2726
        %v4167 = vpack.c.b16 %v2745, %v2727
        %v4168 = vpack.c.b16 %v2746, %v2728
        %v4169 = vpack.c.b16 %v2747, %v2729
        %v4170 = vpack.c.b16 %v2748, %v2730
        %v4171 = vpack.c.b16 %v2749, %v2731
        %v4172 = vpack.c.b16 %v2750, %v2732
        %v4173 = vpack.c.b16 %v2769, %v2751
        %v4174 = vpack.c.b16 %v2770, %v2752
        %v4175 = vpack.c.b16 %v2771, %v2753
        %v4176 = vpack.c.b16 %v2772, %v2754
        %v4177 = vpack.c.b16 %v2773, %v2755
        %v4178 = vpack.c.b16 %v2774, %v2756
        %v4179 = vpack.c.b16 %v2775, %v2757
        %v4180 = vpack.c.b16 %v2776, %v2758
        %v4181 = vpack.c.b16 %v2777, %v2759
        %v4182 = vpack.c.b16 %v2778, %v2760
        %v4183 = vpack.c.b16 %v2779, %v2761
        %v4184 = vpack.c.b16 %v2780, %v2762
        %v4185 = vpack.c.b16 %v2781, %v2763
        %v4186 = vpack.c.b16 %v2782, %v2764
        %v4187 = vpack.c.b16 %v2783, %v2765
        %v4188 = vpack.c.b16 %v2784, %v2766
        %v4189 = vpack.c.b16 %v2785, %v2767
        %v4190 = vpack.c.b16 %v2786, %v2768
        %v4191 = vpack.c.b16 %v2805, %v2787
        %v4192 = vpack.c.b16 %v2806, %v2788
        %v4193 = vpack.c.b16 %v2807, %v2789
        %v4194 = vpack.c.b16 %v2808, %v2790
        %v4195 = vpack.c.b16 %v2809, %v2791
        %v4196 = vpack.c.b16 %v2810, %v2792
        %v4197 = vpack.c.b16 %v2811, %v2793
        %v4198 = vpack.c.b16 %v2812, %v2794
        %v4199 = vpack.c.b16 %v2813, %v2795
        %v4200 = vpack.c.b16 %v2814, %v2796
        %v4201 = vpack.c.b16 %v2815, %v2797
        %v4202 = vpack.c.b16 %v2816, %v2798
        %v4203 = vpack.c.b16 %v2817, %v2799
        %v4204 = vpack.c.b16 %v2818, %v2800
        %v4205 = vpack.c.b16 %v2819, %v2801
        %v4206 = vpack.c.b16 %v2820, %v2802
        %v4207 = vpack.c.b16 %v2821, %v2803
        %v4208 = vpack.c.b16 %v2822, %v2804
        %v4209 = vpack.c.b16 %v2841, %v2823
        %v4210 = vpack.c.b16 %v2842, %v2824
        %v4211 = vpack.c.b16 %v2843, %v2825
        %v4212 = vpack.c.b16 %v2844, %v2826
        %v4213 = vpack.c.b16 %v2845, %v2827
        %v4214 = vpack.c.b16 %v2846, %v2828
        %v4215 = vpack.c.b16 %v2847, %v2829
        %v4216 = vpack.c.b16 %v2848, %v2830
        %v4217 = vpack.c.b16 %v2849, %v2831
        %v4218 = vpack.c.b16 %v2850, %v2832
        %v4219 = vpack.c.b16 %v2851, %v2833
        %v4220 = vpack.c.b16 %v2852, %v2834
        %v4221 = vpack.c.b16 %v2853, %v2835
        %v4222 = vpack.c.b16 %v2854, %v2836
        %v4223 = vpack.c.b16 %v2855, %v2837
        %v4224 = vpack.c.b16 %v2856, %v2838
        %v4225 = vpack.c.b16 %v2857, %v2839
        %v4226 = vpack.c.b16 %v2858, %v2840
        %v4227 = vpack.c.b16 %v2877, %v2859
        %v4228 = vpack.c.b16 %v2878, %v2860
        %v4229 = vpack.c.b16 %v2879, %v2861
        %v4230 = vpack.c.b16 %v2880, %v2862
        %v4231 = vpack.c.b16 %v2881, %v2863
        %v4232 = vpack.c.b16 %v2882, %v2864
        %v4233 = vpack.c.b16 %v2883, %v2865
        %v4234 = vpack.c.b16 %v2884, %v2866
        %v4235 = vpack.c.b16 %v2885, %v2867
        %v4236 = vpack.c.b16 %v2886, %v2868
        %v4237 = vpack.c.b16 %v2887, %v2869
        %v4238 = vpack.c.b16 %v2888, %v2870
        %v4239 = vpack.c.b16 %v2889, %v2871
        %v4240 = vpack.c.b16 %v2890, %v2872
        %v4241 = vpack.c.b16 %v2891, %v2873
        %v4242 = vpack.c.b16 %v2892, %v2874
        %v4243 = vpack.c.b16 %v2893, %v2875
        %v4244 = vpack.c.b16 %v2894, %v2876
        %v4245 = vpack.c.b16 %v2913, %v2895
        %v4246 = vpack.c.b16 %v2914, %v2896
        %v4247 = vpack.c.b16 %v2915, %v2897
        %v4248 = vpack.c.b16 %v2916, %v2898
        %v4249 = vpack.c.b16 %v2917, %v2899
        %v4250 = vpack.c.b16 %v2918, %v2900
        %v4251 = vpack.c.b16 %v2919, %v2901
        %v4252 = vpack.c.b16 %v2920, %v2902
        %v4253 = vpack.c.b16 %v2921, %v2903
        %v4254 = vpack.c.b16 %v2922, %v2904
        %v4255 = vpack.c.b16 %v2923, %v2905
        %v4256 = vpack.c.b16 %v2924, %v2906
        %v4257 = vpack.c.b16 %v2925, %v2907
        %v4258 = vpack.c.b16 %v2926, %v2908
        %v4259 = vpack.c.b16 %v2927, %v2909
        %v4260 = vpack.c.b16 %v2928, %v2910
        %v4261 = vpack.c.b16 %v2929, %v2911
        %v4262 = vpack.c.b16 %v2930, %v2912
        %v4263 = vpack.c.b16 %v2949, %v2931
        %v4264 = vpack.c.b16 %v2950, %v2932
        %v4265 = vpack.c.b16 %v2951, %v2933
        %v4266 = vpack.c.b16 %v2952, %v2934
        %v4267 = vpack.c.b16 %v2953, %v2935
        %v4268 = vpack.c.b16 %v2954, %v2936
        %v4269 = vpack.c.b16 %v2955, %v2937
        %v4270 = vpack.c.b16 %v2956, %v2938
        %v4271 = vpack.c.b16 %v2957, %v2939
        %v4272 = vpack.c.b16 %v2958, %v2940
        %v4273 = vpack.c.b16 %v2959, %v2941
        %v4274 = vpack.c.b16 %v2960, %v2942
        %v4275 = vpack.c.b16 %v2961, %v2943
        %v4276 = vpack.c.b16 %v2962, %v2944
        %v4277 = vpack.c.b16 %v2963, %v2945
        %v4278 = vpack.c.b16 %v2964, %v2946
        %v4279 = vpack.c.b16 %v2965, %v2947
        %v4280 = vpack.c.b16 %v2966, %v2948
        %v4281 = vpack.c.b16 %v2985, %v2967
        %v4282 = vpack.c.b16 %v2986, %v2968
        %v4283 = vpack.c.b16 %v2987, %v2969
        %v4284 = vpack.c.b16 %v2988, %v2970
        %v4285 = vpack.c.b16 %v2989, %v2971
        %v4286 = vpack.c.b16 %v2990, %v2972
        %v4287 = vpack.c.b16 %v2991, %v2973
        %v4288 = vpack.c.b16 %v2992, %v2974
        %v4289 = vpack.c.b16 %v2993, %v2975
        %v4290 = vpack.c.b16 %v2994, %v2976
        %v4291 = vpack.c.b16 %v2995, %v2977
        %v4292 = vpack.c.b16 %v2996, %v2978
        %v4293 = vpack.c.b16 %v2997, %v2979
        %v4294 = vpack.c.b16 %v2998, %v2980
        %v4295 = vpack.c.b16 %v2999, %v2981
        %v4296 = vpack.c.b16 %v3000, %v2982
        %v4297 = vpack.c.b16 %v3001, %v2983
        %v4298 = vpack.c.b16 %v3002, %v2984
        %v4299 = vpack.c.b16 %v3021, %v3003
        %v4300 = vpack.c.b16 %v3022, %v3004
        %v4301 = vpack.c.b16 %v3023, %v3005
        %v4302 = vpack.c.b16 %v3024, %v3006
        %v4303 = vpack.c.b16 %v3025, %v3007
        %v4304 = vpack.c.b16 %v3026, %v3008
        %v4305 = vpack.c.b16 %v3027, %v3009
        %v4306 = vpack.c.b16 %v3028, %v3010
        %v4307 = vpack.c.b16 %v3029, %v3011
        %v4308 = vpack.c.b16 %v3030, %v3012
        %v4309 = vpack.c.b16 %v3031, %v3013
        %v4310 = vpack.c.b16 %v3032, %v3014
        %v4311 = vpack.c.b16 %v3033, %v3015
        %v4312 = vpack.c.b16 %v3034, %v3016
        %v4313 = vpack.c.b16 %v3035, %v3017
        %v4314 = vpack.c.b16 %v3036, %v3018
        %v4315 = vpack.c.b16 %v3037, %v3019
        %v4316 = vpack.c.b16 %v3038, %v3020
        %v4317 = vpack.c.b16 %v3057, %v3039
        %v4318 = vpack.c.b16 %v3058, %v3040
        %v4319 = vpack.c.b16 %v3059, %v3041
        %v4320 = vpack.c.b16 %v3060, %v3042
        %v4321 = vpack.c.b16 %v3061, %v3043
        %v4322 = vpack.c.b16 %v3062, %v3044
        %v4323 = vpack.c.b16 %v3063, %v3045
        %v4324 = vpack.c.b16 %v3064, %v3046
        %v4325 = vpack.c.b16 %v3065, %v3047
        %v4326 = vpack.c.b16 %v3066, %v3048
        %v4327 = vpack.c.b16 %v3067, %v3049
        %v4328 = vpack.c.b16 %v3068, %v3050
        %v4329 = vpack.c.b16 %v3069, %v3051
        %v4330 = vpack.c.b16 %v3070, %v3052
        %v4331 = vpack.c.b16 %v3071, %v3053
        %v4332 = vpack.c.b16 %v3072, %v3054
        %v4333 = vpack.c.b16 %v3073, %v3055
        %v4334 = vpack.c.b16 %v3074, %v3056
        %v4335 = vpack.c.b16 %v3093, %v3075
        %v4336 = vpack.c.b16 %v3094, %v3076
        %v4337 = vpack.c.b16 %v3095, %v3077
        %v4338 = vpack.c.b16 %v3096, %v3078
        %v4339 = vpack.c.b16 %v3097, %v3079
        %v4340 = vpack.c.b16 %v3098, %v3080
        %v4341 = vpack.c.b16 %v3099, %v3081
        %v4342 = vpack.c.b16 %v3100, %v3082
        %v4343 = vpack.c.b16 %v3101, %v3083
        %v4344 = vpack.c.b16 %v3102, %v3084
        %v4345 = vpack.c.b16 %v3103, %v3085
        %v4346 = vpack.c.b16 %v3104, %v3086
        %v4347 = vpack.c.b16 %v3105, %v3087
        %v4348 = vpack.c.b16 %v3106, %v3088
        %v4349 = vpack.c.b16 %v3107, %v3089
        %v4350 = vpack.c.b16 %v3108, %v3090
        %v4351 = vpack.c.b16 %v3109, %v3091
        %v4352 = vpack.c.b16 %v3110, %v3092
        %v4353 = vpack.c.b16 %v3129, %v3111
        %v4354 = vpack.c.b16 %v3130, %v3112
        %v4355 = vpack.c.b16 %v3131, %v3113
        %v4356 = vpack.c.b16 %v3132, %v3114
        %v4357 = vpack.c.b16 %v3133, %v3115
        %v4358 = vpack.c.b16 %v3134, %v3116
        %v4359 = vpack.c.b16 %v3135, %v3117
        %v4360 = vpack.c.b16 %v3136, %v3118
        %v4361 = vpack.c.b16 %v3137, %v3119
        %v4362 = vpack.c.b16 %v3138, %v3120
        %v4363 = vpack.c.b16 %v3139, %v3121
        %v4364 = vpack.c.b16 %v3140, %v3122
        %v4365 = vpack.c.b16 %v3141, %v3123
        %v4366 = vpack.c.b16 %v3142, %v3124
        %v4367 = vpack.c.b16 %v3143, %v3125
        %v4368 = vpack.c.b16 %v3144, %v3126
        %v4369 = vpack.c.b16 %v3145, %v3127
        %v4370 = vpack.c.b16 %v3146, %v3128
        %v4371 = vpack.c.b16 %v3165, %v3147
        %v4372 = vpack.c.b16 %v3166, %v3148
        %v4373 = vpack.c.b16 %v3167, %v3149
        %v4374 = vpack.c.b16 %v3168, %v3150
        %v4375 = vpack.c.b16 %v3169, %v3151
        %v4376 = vpack.c.b16 %v3170, %v3152
        %v4377 = vpack.c.b16 %v3171, %v3153
        %v4378 = vpack.c.b16 %v3172, %v3154
        %v4379 = vpack.c.b16 %v3173, %v3155
        %v4380 = vpack.c.b16 %v3174, %v3156
        %v4381 = vpack.c.b16 %v3175, %v3157
        %v4382 = vpack.c.b16 %v3176, %v3158
        %v4383 = vpack.c.b16 %v3177, %v3159
        %v4384 = vpack.c.b16 %v3178, %v3160
        %v4385 = vpack.c.b16 %v3179, %v3161
        %v4386 = vpack.c.b16 %v3180, %v3162
        %v4387 = vpack.c.b16 %v3181, %v3163
        %v4388 = vpack.c.b16 %v3182, %v3164
        %v4389 = vpack.c.b16 %v3201, %v3183
        %v4390 = vpack.c.b16 %v3202, %v3184
        %v4391 = vpack.c.b16 %v3203, %v3185
        %v4392 = vpack.c.b16 %v3204, %v3186
        %v4393 = vpack.c.b16 %v3205, %v3187
        %v4394 = vpack.c.b16 %v3206, %v3188
        %v4395 = vpack.c.b16 %v3207, %v3189
        %v4396 = vpack.c.b16 %v3208, %v3190
        %v4397 = vpack.c.b16 %v3209, %v3191
        %v4398 = vpack.c.b16 %v3210, %v3192
        %v4399 = vpack.c.b16 %v3211, %v3193
        %v4400 = vpack.c.b16 %v3212, %v3194
        %v4401 = vpack.c.b16 %v3213, %v3195
        %v4402 = vpack.c.b16 %v3214, %v3196
        %v4403 = vpack.c.b16 %v3215, %v3197
        %v4404 = vpack.c.b16 %v3216, %v3198
        %v4405 = vpack.c.b16 %v3217, %v3199
        %v4406 = vpack.c.b16 %v3218, %v3200
        %v4407 = vpack.c.b16 %v3237, %v3219
        %v4408 = vpack.c.b16 %v3238, %v3220
        %v4409 = vpack.c.b16 %v3239, %v3221
        %v4410 = vpack.c.b16 %v3240, %v3222
        %v4411 = vpack.c.b16 %v3241, %v3223
        %v4412 = vpack.c.b16 %v3242, %v3224
        %v4413 = vpack.c.b16 %v3243, %v3225
        %v4414 = vpack.c.b16 %v3244, %v3226
        %v4415 = vpack.c.b16 %v3245, %v3227
        %v4416 = vpack.c.b16 %v3246, %v3228
        %v4417 = vpack.c.b16 %v3247, %v3229
        %v4418 = vpack.c.b16 %v3248, %v3230
        %v4419 = vpack.c.b16 %v3249, %v3231
        %v4420 = vpack.c.b16 %v3250, %v3232
        %v4421 = vpack.c.b16 %v3251, %v3233
        %v4422 = vpack.c.b16 %v3252, %v3234
        %v4423 = vpack.c.b16 %v3253, %v3235
        %v4424 = vpack.c.b16 %v3254, %v3236
        %v4425 = vpack.c.b16 %v3273, %v3255
        %v4426 = vpack.c.b16 %v3274, %v3256
        %v4427 = vpack.c.b16 %v3275, %v3257
        %v4428 = vpack.c.b16 %v3276, %v3258
        %v4429 = vpack.c.b16 %v3277, %v3259
        %v4430 = vpack.c.b16 %v3278, %v3260
        %v4431 = vpack.c.b16 %v3279, %v3261
        %v4432 = vpack.c.b16 %v3280, %v3262
        %v4433 = vpack.c.b16 %v3281, %v3263
        %v4434 = vpack.c.b16 %v3282, %v3264
        %v4435 = vpack.c.b16 %v3283, %v3265
        %v4436 = vpack.c.b16 %v3284, %v3266
        %v4437 = vpack.c.b16 %v3285, %v3267
        %v4438 = vpack.c.b16 %v3286, %v3268
        %v4439 = vpack.c.b16 %v3287, %v3269
        %v4440 = vpack.c.b16 %v3288, %v3270
        %v4441 = vpack.c.b16 %v3289, %v3271
        %v4442 = vpack.c.b16 %v3290, %v3272
        %v4443 = vpack.c.b16 %v3309, %v3291
        %v4444 = vpack.c.b16 %v3310, %v3292
        %v4445 = vpack.c.b16 %v3311, %v3293
        %v4446 = vpack.c.b16 %v3312, %v3294
        %v4447 = vpack.c.b16 %v3313, %v3295
        %v4448 = vpack.c.b16 %v3314, %v3296
        %v4449 = vpack.c.b16 %v3315, %v3297
        %v4450 = vpack.c.b16 %v3316, %v3298
        %v4451 = vpack.c.b16 %v3317, %v3299
        %v4452 = vpack.c.b16 %v3318, %v3300
        %v4453 = vpack.c.b16 %v3319, %v3301
        %v4454 = vpack.c.b16 %v3320, %v3302
        %v4455 = vpack.c.b16 %v3321, %v3303
        %v4456 = vpack.c.b16 %v3322, %v3304
        %v4457 = vpack.c.b16 %v3323, %v3305
        %v4458 = vpack.c.b16 %v3324, %v3306
        %v4459 = vpack.c.b16 %v3325, %v3307
        %v4460 = vpack.c.b16 %v3326, %v3308
        %v4461 = vpack.c.b16 %v3345, %v3327
        %v4462 = vpack.c.b16 %v3346, %v3328
        %v4463 = vpack.c.b16 %v3347, %v3329
        %v4464 = vpack.c.b16 %v3348, %v3330
        %v4465 = vpack.c.b16 %v3349, %v3331
        %v4466 = vpack.c.b16 %v3350, %v3332
        %v4467 = vpack.c.b16 %v3351, %v3333
        %v4468 = vpack.c.b16 %v3352, %v3334
        %v4469 = vpack.c.b16 %v3353, %v3335
        %v4470 = vpack.c.b16 %v3354, %v3336
        %v4471 = vpack.c.b16 %v3355, %v3337
        %v4472 = vpack.c.b16 %v3356, %v3338
        %v4473 = vpack.c.b16 %v3357, %v3339
        %v4474 = vpack.c.b16 %v3358, %v3340
        %v4475 = vpack.c.b16 %v3359, %v3341
        %v4476 = vpack.c.b16 %v3360, %v3342
        %v4477 = vpack.c.b16 %v3361, %v3343
        %v4478 = vpack.c.b16 %v3362, %v3344
        %v4479 = vpack.c.b16 %v3381, %v3363
        %v4480 = vpack.c.b16 %v3382, %v3364
        %v4481 = vpack.c.b16 %v3383, %v3365
        %v4482 = vpack.c.b16 %v3384, %v3366
        %v4483 = vpack.c.b16 %v3385, %v3367
        %v4484 = vpack.c.b16 %v3386, %v3368
        %v4485 = vpack.c.b16 %v3387, %v3369
        %v4486 = vpack.c.b16 %v3388, %v3370
        %v4487 = vpack.c.b16 %v3389, %v3371
        %v4488 = vpack.c.b16 %v3390, %v3372
        %v4489 = vpack.c.b16 %v3391, %v3373
        %v4490 = vpack.c.b16 %v3392, %v3374
        %v4491 = vpack.c.b16 %v3393, %v3375
        %v4492 = vpack.c.b16 %v3394, %v3376
        %v4493 = vpack.c.b16 %v3395, %v3377
        %v4494 = vpack.c.b16 %v3396, %v3378
        %v4495 = vpack.c.b16 %v3397, %v3379
        %v4496 = vpack.c.b16 %v3398, %v3380
        %v4497 = vpack.c.b16 %v3417, %v3399
        %v4498 = vpack.c.b16 %v3418, %v3400
        %v4499 = vpack.c.b16 %v3419, %v3401
        %v4500 = vpack.c.b16 %v3420, %v3402
        %v4501 = vpack.c.b16 %v3421, %v3403
        %v4502 = vpack.c.b16 %v3422, %v3404
        %v4503 = vpack.c.b16 %v3423, %v3405
        %v4504 = vpack.c.b16 %v3424, %v3406
        %v4505 = vpack.c.b16 %v3425, %v3407
        %v4506 = vpack.c.b16 %v3426, %v3408
        %v4507 = vpack.c.b16 %v3427, %v3409
        %v4508 = vpack.c.b16 %v3428, %v3410
        %v4509 = vpack.c.b16 %v3429, %v3411
        %v4510 = vpack.c.b16 %v3430, %v3412
        %v4511 = vpack.c.b16 %v3431, %v3413
        %v4512 = vpack.c.b16 %v3432, %v3414
        %v4513 = vpack.c.b16 %v3433, %v3415
        %v4514 = vpack.c.b16 %v3434, %v3416
        %v4515 = vpack.c.b16 %v3453, %v3435
        %v4516 = vpack.c.b16 %v3454, %v3436
        %v4517 = vpack.c.b16 %v3455, %v3437
        %v4518 = vpack.c.b16 %v3456, %v3438
        %v4519 = vpack.c.b16 %v3457, %v3439
        %v4520 = vpack.c.b16 %v3458, %v3440
        %v4521 = vpack.c.b16 %v3459, %v3441
        %v4522 = vpack.c.b16 %v3460, %v3442
        %v4523 = vpack.c.b16 %v3461, %v3443
        %v4524 = vpack.c.b16 %v3462, %v3444
        %v4525 = vpack.c.b16 %v3463, %v3445
        %v4526 = vpack.c.b16 %v3464, %v3446
        %v4527 = vpack.c.b16 %v3465, %v3447
        %v4528 = vpack.c.b16 %v3466, %v3448
        %v4529 = vpack.c.b16 %v3467, %v3449
        %v4530 = vpack.c.b16 %v3468, %v3450
        %v4531 = vpack.c.b16 %v3469, %v3451
        %v4532 = vpack.c.b16 %v3470, %v3452
        %v4533 = vpack.c.b16 %v3489, %v3471
        %v4534 = vpack.c.b16 %v3490, %v3472
        %v4535 = vpack.c.b16 %v3491, %v3473
        %v4536 = vpack.c.b16 %v3492, %v3474
        %v4537 = vpack.c.b16 %v3493, %v3475
        %v4538 = vpack.c.b16 %v3494, %v3476
        %v4539 = vpack.c.b16 %v3495, %v3477
        %v4540 = vpack.c.b16 %v3496, %v3478
        %v4541 = vpack.c.b16 %v3497, %v3479
        %v4542 = vpack.c.b16 %v3498, %v3480
        %v4543 = vpack.c.b16 %v3499, %v3481
        %v4544 = vpack.c.b16 %v3500, %v3482
        %v4545 = vpack.c.b16 %v3501, %v3483
        %v4546 = vpack.c.b16 %v3502, %v3484
        %v4547 = vpack.c.b16 %v3503, %v3485
        %v4548 = vpack.c.b16 %v3504, %v3486
        %v4549 = vpack.c.b16 %v3505, %v3487
        %v4550 = vpack.c.b16 %v3506, %v3488
        %v4551 = vpack.c.b16 %v3525, %v3507
        %v4552 = vpack.c.b16 %v3526, %v3508
        %v4553 = vpack.c.b16 %v3527, %v3509
        %v4554 = vpack.c.b16 %v3528, %v3510
        %v4555 = vpack.c.b16 %v3529, %v3511
        %v4556 = vpack.c.b16 %v3530, %v3512
        %v4557 = vpack.c.b16 %v3531, %v3513
        %v4558 = vpack.c.b16 %v3532, %v3514
        %v4559 = vpack.c.b16 %v3533, %v3515
        %v4560 = vpack.c.b16 %v3534, %v3516
        %v4561 = vpack.c.b16 %v3535, %v3517
        %v4562 = vpack.c.b16 %v3536, %v3518
        %v4563 = vpack.c.b16 %v3537, %v3519
        %v4564 = vpack.c.b16 %v3538, %v3520
        %v4565 = vpack.c.b16 %v3539, %v3521
        %v4566 = vpack.c.b16 %v3540, %v3522
        %v4567 = vpack.c.b16 %v3541, %v3523
        %v4568 = vpack.c.b16 %v3542, %v3524
        %v4569 = vpack.c.b16 %v3561, %v3543
        %v4570 = vpack.c.b16 %v3562, %v3544
        %v4571 = vpack.c.b16 %v3563, %v3545
        %v4572 = vpack.c.b16 %v3564, %v3546
        %v4573 = vpack.c.b16 %v3565, %v3547
        %v4574 = vpack.c.b16 %v3566, %v3548
        %v4575 = vpack.c.b16 %v3567, %v3549
        %v4576 = vpack.c.b16 %v3568, %v3550
        %v4577 = vpack.c.b16 %v3569, %v3551
        %v4578 = vpack.c.b16 %v3570, %v3552
        %v4579 = vpack.c.b16 %v3571, %v3553
        %v4580 = vpack.c.b16 %v3572, %v3554
        %v4581 = vpack.c.b16 %v3573, %v3555
        %v4582 = vpack.c.b16 %v3574, %v3556
        %v4583 = vpack.c.b16 %v3575, %v3557
        %v4584 = vpack.c.b16 %v3576, %v3558
        %v4585 = vpack.c.b16 %v3577, %v3559
        %v4586 = vpack.c.b16 %v3578, %v3560
        %v4587 = vpack.c.b16 %v3597, %v3579
        %v4588 = vpack.c.b16 %v3598, %v3580
        %v4589 = vpack.c.b16 %v3599, %v3581
        %v4590 = vpack.c.b16 %v3600, %v3582
        %v4591 = vpack.c.b16 %v3601, %v3583
        %v4592 = vpack.c.b16 %v3602, %v3584
        %v4593 = vpack.c.b16 %v3603, %v3585
        %v4594 = vpack.c.b16 %v3604, %v3586
        %v4595 = vpack.c.b16 %v3605, %v3587
        %v4596 = vpack.c.b16 %v3606, %v3588
        %v4597 = vpack.c.b16 %v3607, %v3589
        %v4598 = vpack.c.b16 %v3608, %v3590
        %v4599 = vpack.c.b16 %v3609, %v3591
        %v4600 = vpack.c.b16 %v3610, %v3592
        %v4601 = vpack.c.b16 %v3611, %v3593
        %v4602 = vpack.c.b16 %v3612, %v3594
        %v4603 = vpack.c.b16 %v3613, %v3595
        %v4604 = vpack.c.b16 %v3614, %v3596
        %v4605 = vpack.c.b16 %v3633, %v3615
        %v4606 = vpack.c.b16 %v3634, %v3616
        %v4607 = vpack.c.b16 %v3635, %v3617
        %v4608 = vpack.c.b16 %v3636, %v3618
        %v4609 = vpack.c.b16 %v3637, %v3619
        %v4610 = vpack.c.b16 %v3638, %v3620
        %v4611 = vpack.c.b16 %v3639, %v3621
        %v4612 = vpack.c.b16 %v3640, %v3622
        %v4613 = vpack.c.b16 %v3641, %v3623
        %v4614 = vpack.c.b16 %v3642, %v3624
        %v4615 = vpack.c.b16 %v3643, %v3625
        %v4616 = vpack.c.b16 %v3644, %v3626
        %v4617 = vpack.c.b16 %v3645, %v3627
        %v4618 = vpack.c.b16 %v3646, %v3628
        %v4619 = vpack.c.b16 %v3647, %v3629
        %v4620 = vpack.c.b16 %v3648, %v3630
        %v4621 = vpack.c.b16 %v3649, %v3631
        %v4622 = vpack.c.b16 %v3650, %v3632
        %v4623 = vpack.c.b16 %v3669, %v3651
        %v4624 = vpack.c.b16 %v3670, %v3652
        %v4625 = vpack.c.b16 %v3671, %v3653
        %v4626 = vpack.c.b16 %v3672, %v3654
        %v4627 = vpack.c.b16 %v3673, %v3655
        %v4628 = vpack.c.b16 %v3674, %v3656
        %v4629 = vpack.c.b16 %v3675, %v3657
        %v4630 = vpack.c.b16 %v3676, %v3658
        %v4631 = vpack.c.b16 %v3677, %v3659
        %v4632 = vpack.c.b16 %v3678, %v3660
        %v4633 = vpack.c.b16 %v3679, %v3661
        %v4634 = vpack.c.b16 %v3680, %v3662
        %v4635 = vpack.c.b16 %v3681, %v3663
        %v4636 = vpack.c.b16 %v3682, %v3664
        %v4637 = vpack.c.b16 %v3683, %v3665
        %v4638 = vpack.c.b16 %v3684, %v3666
        %v4639 = vpack.c.b16 %v3685, %v3667
        %v4640 = vpack.c.b16 %v3686, %v3668
        %v4641 = vpack.c.b16 %v3705, %v3687
        %v4642 = vpack.c.b16 %v3706, %v3688
        %v4643 = vpack.c.b16 %v3707, %v3689
        %v4644 = vpack.c.b16 %v3708, %v3690
        %v4645 = vpack.c.b16 %v3709, %v3691
        %v4646 = vpack.c.b16 %v3710, %v3692
        %v4647 = vpack.c.b16 %v3711, %v3693
        %v4648 = vpack.c.b16 %v3712, %v3694
        %v4649 = vpack.c.b16 %v3713, %v3695
        %v4650 = vpack.c.b16 %v3714, %v3696
        %v4651 = vpack.c.b16 %v3715, %v3697
        %v4652 = vpack.c.b16 %v3716, %v3698
        %v4653 = vpack.c.b16 %v3717, %v3699
        %v4654 = vpack.c.b16 %v3718, %v3700
        %v4655 = vpack.c.b16 %v3719, %v3701
        %v4656 = vpack.c.b16 %v3720, %v3702
        %v4657 = vpack.c.b16 %v3721, %v3703
        %v4658 = vpack.c.b16 %v3722, %v3704
        %v4659 = vpack.c.b16 %v3741, %v3723
        %v4660 = vpack.c.b16 %v3742, %v3724
        %v4661 = vpack.c.b16 %v3743, %v3725
        %v4662 = vpack.c.b16 %v3744, %v3726
        %v4663 = vpack.c.b16 %v3745, %v3727
        %v4664 = vpack.c.b16 %v3746, %v3728
        %v4665 = vpack.c.b16 %v3747, %v3729
        %v4666 = vpack.c.b16 %v3748, %v3730
        %v4667 = vpack.c.b16 %v3749, %v3731
        %v4668 = vpack.c.b16 %v3750, %v3732
        %v4669 = vpack.c.b16 %v3751, %v3733
        %v4670 = vpack.c.b16 %v3752, %v3734
        %v4671 = vpack.c.b16 %v3753, %v3735
        %v4672 = vpack.c.b16 %v3754, %v3736
        %v4673 = vpack.c.b16 %v3755, %v3737
        %v4674 = vpack.c.b16 %v3756, %v3738
        %v4675 = vpack.c.b16 %v3757, %v3739
        %v4676 = vpack.c.b16 %v3758, %v3740
        %v4677 = vpack.c.b16 %v3777, %v3759
        %v4678 = vpack.c.b16 %v3778, %v3760
        %v4679 = vpack.c.b16 %v3779, %v3761
        %v4680 = vpack.c.b16 %v3780, %v3762
        %v4681 = vpack.c.b16 %v3781, %v3763
        %v4682 = vpack.c.b16 %v3782, %v3764
        %v4683 = vpack.c.b16 %v3783, %v3765
        %v4684 = vpack.c.b16 %v3784, %v3766
        %v4685 = vpack.c.b16 %v3785, %v3767
        %v4686 = vpack.c.b16 %v3786, %v3768
        %v4687 = vpack.c.b16 %v3787, %v3769
        %v4688 = vpack.c.b16 %v3788, %v3770
        %v4689 = vpack.c.b16 %v3789, %v3771
        %v4690 = vpack.c.b16 %v3790, %v3772
        %v4691 = vpack.c.b16 %v3791, %v3773
        %v4692 = vpack.c.b16 %v3792, %v3774
        %v4693 = vpack.c.b16 %v3793, %v3775
        %v4694 = vpack.c.b16 %v3794, %v3776
        %v4695 = vpack.c.b16 %v3813, %v3795
        %v4696 = vpack.c.b16 %v3814, %v3796
        %v4697 = vpack.c.b16 %v3815, %v3797
        %v4698 = vpack.c.b16 %v3816, %v3798
        %v4699 = vpack.c.b16 %v3817, %v3799
        %v4700 = vpack.c.b16 %v3818, %v3800
        %v4701 = vpack.c.b16 %v3819, %v3801
        %v4702 = vpack.c.b16 %v3820, %v3802
        %v4703 = vpack.c.b16 %v3821, %v3803
        %v4704 = vpack.c.b16 %v3822, %v3804
        %v4705 = vpack.c.b16 %v3823, %v3805
        %v4706 = vpack.c.b16 %v3824, %v3806
        %v4707 = vpack.c.b16 %v3825, %v3807
        %v4708 = vpack.c.b16 %v3826, %v3808
        %v4709 = vpack.c.b16 %v3827, %v3809
        %v4710 = vpack.c.b16 %v3828, %v3810
        %v4711 = vpack.c.b16 %v3829, %v3811
        %v4712 = vpack.c.b16 %v3830, %v3812
        %v4713 = vpack.c.b16 %v3849, %v3831
        %v4714 = vpack.c.b16 %v3850, %v3832
        %v4715 = vpack.c.b16 %v3851, %v3833
        %v4716 = vpack.c.b16 %v3852, %v3834
        %v4717 = vpack.c.b16 %v3853, %v3835
        %v4718 = vpack.c.b16 %v3854, %v3836
        %v4719 = vpack.c.b16 %v3855, %v3837
        %v4720 = vpack.c.b16 %v3856, %v3838
        %v4721 = vpack.c.b16 %v3857, %v3839
        %v4722 = vpack.c.b16 %v3858, %v3840
        %v4723 = vpack.c.b16 %v3859, %v3841
        %v4724 = vpack.c.b16 %v3860, %v3842
        %v4725 = vpack.c.b16 %v3861, %v3843
        %v4726 = vpack.c.b16 %v3862, %v3844
        %v4727 = vpack.c.b16 %v3863, %v3845
        %v4728 = vpack.c.b16 %v3864, %v3846
        %v4729 = vpack.c.b16 %v3865, %v3847
        %v4730 = vpack.c.b16 %v3866, %v3848
        %5595 = vmatpush.bf16.msra.mxu0 %v3993
        %5596 = vmatpush.bf16.msra.mxu0 %v3975
        %5597 = vmatpush.bf16.msra.mxu0 %v3957
        %5598 = vmatpush.bf16.msra.mxu0 %v3939
        %5599 = vmatpush.bf16.msra.mxu0 %v3921
        %5600 = vmatpush.bf16.msra.mxu0 %v3903
        %5601 = vmatpush.bf16.msra.mxu0 %v3885
        %5602 = vmatpush.bf16.msra.mxu0 %v3867
        %5603 = vmatmul.bf16.gmra.mxu0 %v1263
        %v5604 = vpop.f32.mrf.mxu0
        %v5605 = vadd.f32 %v1218, %v5604
        %v5606 = vpop.f32.mrf.mxu0
        %5607 = vdwg.mxu0
        %5608 = vmatpush.bf16.msra.mxu0 %v4137
        %5609 = vmatpush.bf16.msra.mxu0 %v4119
        %5610 = vmatpush.bf16.msra.mxu0 %v4101
        %5611 = vmatpush.bf16.msra.mxu0 %v4083
        %5612 = vmatpush.bf16.msra.mxu0 %v4065
        %5613 = vmatpush.bf16.msra.mxu0 %v4047
        %5614 = vmatpush.bf16.msra.mxu0 %v4029
        %5615 = vmatpush.bf16.msra.mxu0 %v4011
        %5616 = vmatmul.bf16.gmra.mxu0 %v1264
        %v5617 = vpop.f32.mrf.mxu0
        %v5618 = vadd.f32 %v5605, %v5617
        %v5619 = vpop.f32.mrf.mxu0
        %5620 = vdwg.mxu0
        %5621 = vmatpush.bf16.msra.mxu0 %v4281
        %5622 = vmatpush.bf16.msra.mxu0 %v4263
        %5623 = vmatpush.bf16.msra.mxu0 %v4245
        %5624 = vmatpush.bf16.msra.mxu0 %v4227
        %5625 = vmatpush.bf16.msra.mxu0 %v4209
        %5626 = vmatpush.bf16.msra.mxu0 %v4191
        %5627 = vmatpush.bf16.msra.mxu0 %v4173
        %5628 = vmatpush.bf16.msra.mxu0 %v4155
        %5629 = vmatmul.bf16.gmra.mxu0 %v1265
        %v5630 = vpop.f32.mrf.mxu0
        %v5631 = vadd.f32 %v5618, %v5630
        %v5632 = vpop.f32.mrf.mxu0
        %5633 = vdwg.mxu0
        %5634 = vmatpush.bf16.msra.mxu0 %v4425
        %5635 = vmatpush.bf16.msra.mxu0 %v4407
        %5636 = vmatpush.bf16.msra.mxu0 %v4389
        %5637 = vmatpush.bf16.msra.mxu0 %v4371
        %5638 = vmatpush.bf16.msra.mxu0 %v4353
        %5639 = vmatpush.bf16.msra.mxu0 %v4335
        %5640 = vmatpush.bf16.msra.mxu0 %v4317
        %5641 = vmatpush.bf16.msra.mxu0 %v4299
        %5642 = vmatmul.bf16.gmra.mxu0 %v1266
        %v5643 = vpop.f32.mrf.mxu0
        %v5644 = vadd.f32 %v5631, %v5643
        %v5645 = vpop.f32.mrf.mxu0
        %5646 = vdwg.mxu0
        %5647 = vmatpush.bf16.msra.mxu0 %v4569
        %5648 = vmatpush.bf16.msra.mxu0 %v4551
        %5649 = vmatpush.bf16.msra.mxu0 %v4533
        %5650 = vmatpush.bf16.msra.mxu0 %v4515
        %5651 = vmatpush.bf16.msra.mxu0 %v4497
        %5652 = vmatpush.bf16.msra.mxu0 %v4479
        %5653 = vmatpush.bf16.msra.mxu0 %v4461
        %5654 = vmatpush.bf16.msra.mxu0 %v4443
        %5655 = vmatmul.bf16.gmra.mxu0 %v1267
        %v5656 = vpop.f32.mrf.mxu0
        %v5657 = vadd.f32 %v5644, %v5656
        %v5658 = vpop.f32.mrf.mxu0
        %5659 = vdwg.mxu0
        %5660 = vmatpush.bf16.msra.mxu0 %v4713
        %5661 = vmatpush.bf16.msra.mxu0 %v4695
        %5662 = vmatpush.bf16.msra.mxu0 %v4677
        %5663 = vmatpush.bf16.msra.mxu0 %v4659
        %5664 = vmatpush.bf16.msra.mxu0 %v4641
        %5665 = vmatpush.bf16.msra.mxu0 %v4623
        %5666 = vmatpush.bf16.msra.mxu0 %v4605
        %5667 = vmatpush.bf16.msra.mxu0 %v4587
        %5668 = vmatmul.bf16.gmra.mxu0 %v1268
        %v5669 = vpop.f32.mrf.mxu0
        %v5670 = vadd.f32 %v5657, %v5669
        %v5671 = vpop.f32.mrf.mxu0
        %5672 = vdwg.mxu0
        %5673 = vmatpush.bf16.msra.mxu0 %v3994
        %5674 = vmatpush.bf16.msra.mxu0 %v3976
        %5675 = vmatpush.bf16.msra.mxu0 %v3958
        %5676 = vmatpush.bf16.msra.mxu0 %v3940
        %5677 = vmatpush.bf16.msra.mxu0 %v3922
        %5678 = vmatpush.bf16.msra.mxu0 %v3904
        %5679 = vmatpush.bf16.msra.mxu0 %v3886
        %5680 = vmatpush.bf16.msra.mxu0 %v3868
        %5681 = vmatmul.bf16.gmra.mxu0 %v1263
        %v5682 = vpop.f32.mrf.mxu0
        %v5683 = vadd.f32 %v1219, %v5682
        %v5684 = vpop.f32.mrf.mxu0
        %5685 = vdwg.mxu0
        %5686 = vmatpush.bf16.msra.mxu0 %v4138
        %5687 = vmatpush.bf16.msra.mxu0 %v4120
        %5688 = vmatpush.bf16.msra.mxu0 %v4102
        %5689 = vmatpush.bf16.msra.mxu0 %v4084
        %5690 = vmatpush.bf16.msra.mxu0 %v4066
        %5691 = vmatpush.bf16.msra.mxu0 %v4048
        %5692 = vmatpush.bf16.msra.mxu0 %v4030
        %5693 = vmatpush.bf16.msra.mxu0 %v4012
        %5694 = vmatmul.bf16.gmra.mxu0 %v1264
        %v5695 = vpop.f32.mrf.mxu0
        %v5696 = vadd.f32 %v5683, %v5695
        %v5697 = vpop.f32.mrf.mxu0
        %5698 = vdwg.mxu0
        %5699 = vmatpush.bf16.msra.mxu0 %v4282
        %5700 = vmatpush.bf16.msra.mxu0 %v4264
        %5701 = vmatpush.bf16.msra.mxu0 %v4246
        %5702 = vmatpush.bf16.msra.mxu0 %v4228
        %5703 = vmatpush.bf16.msra.mxu0 %v4210
        %5704 = vmatpush.bf16.msra.mxu0 %v4192
        %5705 = vmatpush.bf16.msra.mxu0 %v4174
        %5706 = vmatpush.bf16.msra.mxu0 %v4156
        %5707 = vmatmul.bf16.gmra.mxu0 %v1265
        %v5708 = vpop.f32.mrf.mxu0
        %v5709 = vadd.f32 %v5696, %v5708
        %v5710 = vpop.f32.mrf.mxu0
        %5711 = vdwg.mxu0
        %5712 = vmatpush.bf16.msra.mxu0 %v4426
        %5713 = vmatpush.bf16.msra.mxu0 %v4408
        %5714 = vmatpush.bf16.msra.mxu0 %v4390
        %5715 = vmatpush.bf16.msra.mxu0 %v4372
        %5716 = vmatpush.bf16.msra.mxu0 %v4354
        %5717 = vmatpush.bf16.msra.mxu0 %v4336
        %5718 = vmatpush.bf16.msra.mxu0 %v4318
        %5719 = vmatpush.bf16.msra.mxu0 %v4300
        %5720 = vmatmul.bf16.gmra.mxu0 %v1266
        %v5721 = vpop.f32.mrf.mxu0
        %v5722 = vadd.f32 %v5709, %v5721
        %v5723 = vpop.f32.mrf.mxu0
        %5724 = vdwg.mxu0
        %5725 = vmatpush.bf16.msra.mxu0 %v4570
        %5726 = vmatpush.bf16.msra.mxu0 %v4552
        %5727 = vmatpush.bf16.msra.mxu0 %v4534
        %5728 = vmatpush.bf16.msra.mxu0 %v4516
        %5729 = vmatpush.bf16.msra.mxu0 %v4498
        %5730 = vmatpush.bf16.msra.mxu0 %v4480
        %5731 = vmatpush.bf16.msra.mxu0 %v4462
        %5732 = vmatpush.bf16.msra.mxu0 %v4444
        %5733 = vmatmul.bf16.gmra.mxu0 %v1267
        %v5734 = vpop.f32.mrf.mxu0
        %v5735 = vadd.f32 %v5722, %v5734
        %v5736 = vpop.f32.mrf.mxu0
        %5737 = vdwg.mxu0
        %5738 = vmatpush.bf16.msra.mxu0 %v4714
        %5739 = vmatpush.bf16.msra.mxu0 %v4696
        %5740 = vmatpush.bf16.msra.mxu0 %v4678
        %5741 = vmatpush.bf16.msra.mxu0 %v4660
        %5742 = vmatpush.bf16.msra.mxu0 %v4642
        %5743 = vmatpush.bf16.msra.mxu0 %v4624
        %5744 = vmatpush.bf16.msra.mxu0 %v4606
        %5745 = vmatpush.bf16.msra.mxu0 %v4588
        %5746 = vmatmul.bf16.gmra.mxu0 %v1268
        %v5747 = vpop.f32.mrf.mxu0
        %v5748 = vadd.f32 %v5735, %v5747
        %v5749 = vpop.f32.mrf.mxu0
        %5750 = vdwg.mxu0
        %5751 = vmatpush.bf16.msra.mxu0 %v3995
        %5752 = vmatpush.bf16.msra.mxu0 %v3977
        %5753 = vmatpush.bf16.msra.mxu0 %v3959
        %5754 = vmatpush.bf16.msra.mxu0 %v3941
        %5755 = vmatpush.bf16.msra.mxu0 %v3923
        %5756 = vmatpush.bf16.msra.mxu0 %v3905
        %5757 = vmatpush.bf16.msra.mxu0 %v3887
        %5758 = vmatpush.bf16.msra.mxu0 %v3869
        %5759 = vmatmul.bf16.gmra.mxu0 %v1263
        %v5760 = vpop.f32.mrf.mxu0
        %v5761 = vadd.f32 %v1220, %v5760
        %v5762 = vpop.f32.mrf.mxu0
        %5763 = vdwg.mxu0
        %5764 = vmatpush.bf16.msra.mxu0 %v4139
        %5765 = vmatpush.bf16.msra.mxu0 %v4121
        %5766 = vmatpush.bf16.msra.mxu0 %v4103
        %5767 = vmatpush.bf16.msra.mxu0 %v4085
        %5768 = vmatpush.bf16.msra.mxu0 %v4067
        %5769 = vmatpush.bf16.msra.mxu0 %v4049
        %5770 = vmatpush.bf16.msra.mxu0 %v4031
        %5771 = vmatpush.bf16.msra.mxu0 %v4013
        %5772 = vmatmul.bf16.gmra.mxu0 %v1264
        %v5773 = vpop.f32.mrf.mxu0
        %v5774 = vadd.f32 %v5761, %v5773
        %v5775 = vpop.f32.mrf.mxu0
        %5776 = vdwg.mxu0
        %5777 = vmatpush.bf16.msra.mxu0 %v4283
        %5778 = vmatpush.bf16.msra.mxu0 %v4265
        %5779 = vmatpush.bf16.msra.mxu0 %v4247
        %5780 = vmatpush.bf16.msra.mxu0 %v4229
        %5781 = vmatpush.bf16.msra.mxu0 %v4211
        %5782 = vmatpush.bf16.msra.mxu0 %v4193
        %5783 = vmatpush.bf16.msra.mxu0 %v4175
        %5784 = vmatpush.bf16.msra.mxu0 %v4157
        %5785 = vmatmul.bf16.gmra.mxu0 %v1265
        %v5786 = vpop.f32.mrf.mxu0
        %v5787 = vadd.f32 %v5774, %v5786
        %v5788 = vpop.f32.mrf.mxu0
        %5789 = vdwg.mxu0
        %5790 = vmatpush.bf16.msra.mxu0 %v4427
        %5791 = vmatpush.bf16.msra.mxu0 %v4409
        %5792 = vmatpush.bf16.msra.mxu0 %v4391
        %5793 = vmatpush.bf16.msra.mxu0 %v4373
        %5794 = vmatpush.bf16.msra.mxu0 %v4355
        %5795 = vmatpush.bf16.msra.mxu0 %v4337
        %5796 = vmatpush.bf16.msra.mxu0 %v4319
        %5797 = vmatpush.bf16.msra.mxu0 %v4301
        %5798 = vmatmul.bf16.gmra.mxu0 %v1266
        %v5799 = vpop.f32.mrf.mxu0
        %v5800 = vadd.f32 %v5787, %v5799
        %v5801 = vpop.f32.mrf.mxu0
        %5802 = vdwg.mxu0
        %5803 = vmatpush.bf16.msra.mxu0 %v4571
        %5804 = vmatpush.bf16.msra.mxu0 %v4553
        %5805 = vmatpush.bf16.msra.mxu0 %v4535
        %5806 = vmatpush.bf16.msra.mxu0 %v4517
        %5807 = vmatpush.bf16.msra.mxu0 %v4499
        %5808 = vmatpush.bf16.msra.mxu0 %v4481
        %5809 = vmatpush.bf16.msra.mxu0 %v4463
        %5810 = vmatpush.bf16.msra.mxu0 %v4445
        %5811 = vmatmul.bf16.gmra.mxu0 %v1267
        %v5812 = vpop.f32.mrf.mxu0
        %v5813 = vadd.f32 %v5800, %v5812
        %v5814 = vpop.f32.mrf.mxu0
        %5815 = vdwg.mxu0
        %5816 = vmatpush.bf16.msra.mxu0 %v4715
        %5817 = vmatpush.bf16.msra.mxu0 %v4697
        %5818 = vmatpush.bf16.msra.mxu0 %v4679
        %5819 = vmatpush.bf16.msra.mxu0 %v4661
        %5820 = vmatpush.bf16.msra.mxu0 %v4643
        %5821 = vmatpush.bf16.msra.mxu0 %v4625
        %5822 = vmatpush.bf16.msra.mxu0 %v4607
        %5823 = vmatpush.bf16.msra.mxu0 %v4589
        %5824 = vmatmul.bf16.gmra.mxu0 %v1268
        %v5825 = vpop.f32.mrf.mxu0
        %v5826 = vadd.f32 %v5813, %v5825
        %v5827 = vpop.f32.mrf.mxu0
        %5828 = vdwg.mxu0
        %5829 = vmatpush.bf16.msra.mxu0 %v3996
        %5830 = vmatpush.bf16.msra.mxu0 %v3978
        %5831 = vmatpush.bf16.msra.mxu0 %v3960
        %5832 = vmatpush.bf16.msra.mxu0 %v3942
        %5833 = vmatpush.bf16.msra.mxu0 %v3924
        %5834 = vmatpush.bf16.msra.mxu0 %v3906
        %5835 = vmatpush.bf16.msra.mxu0 %v3888
        %5836 = vmatpush.bf16.msra.mxu0 %v3870
        %5837 = vmatmul.bf16.gmra.mxu0 %v1263
        %v5838 = vpop.f32.mrf.mxu0
        %v5839 = vadd.f32 %v1221, %v5838
        %v5840 = vpop.f32.mrf.mxu0
        %5841 = vdwg.mxu0
        %5842 = vmatpush.bf16.msra.mxu0 %v4140
        %5843 = vmatpush.bf16.msra.mxu0 %v4122
        %5844 = vmatpush.bf16.msra.mxu0 %v4104
        %5845 = vmatpush.bf16.msra.mxu0 %v4086
        %5846 = vmatpush.bf16.msra.mxu0 %v4068
        %5847 = vmatpush.bf16.msra.mxu0 %v4050
        %5848 = vmatpush.bf16.msra.mxu0 %v4032
        %5849 = vmatpush.bf16.msra.mxu0 %v4014
        %5850 = vmatmul.bf16.gmra.mxu0 %v1264
        %v5851 = vpop.f32.mrf.mxu0
        %v5852 = vadd.f32 %v5839, %v5851
        %v5853 = vpop.f32.mrf.mxu0
        %5854 = vdwg.mxu0
        %5855 = vmatpush.bf16.msra.mxu0 %v4284
        %5856 = vmatpush.bf16.msra.mxu0 %v4266
        %5857 = vmatpush.bf16.msra.mxu0 %v4248
        %5858 = vmatpush.bf16.msra.mxu0 %v4230
        %5859 = vmatpush.bf16.msra.mxu0 %v4212
        %5860 = vmatpush.bf16.msra.mxu0 %v4194
        %5861 = vmatpush.bf16.msra.mxu0 %v4176
        %5862 = vmatpush.bf16.msra.mxu0 %v4158
        %5863 = vmatmul.bf16.gmra.mxu0 %v1265
        %v5864 = vpop.f32.mrf.mxu0
        %v5865 = vadd.f32 %v5852, %v5864
        %v5866 = vpop.f32.mrf.mxu0
        %5867 = vdwg.mxu0
        %5868 = vmatpush.bf16.msra.mxu0 %v4428
        %5869 = vmatpush.bf16.msra.mxu0 %v4410
        %5870 = vmatpush.bf16.msra.mxu0 %v4392
        %5871 = vmatpush.bf16.msra.mxu0 %v4374
        %5872 = vmatpush.bf16.msra.mxu0 %v4356
        %5873 = vmatpush.bf16.msra.mxu0 %v4338
        %5874 = vmatpush.bf16.msra.mxu0 %v4320
        %5875 = vmatpush.bf16.msra.mxu0 %v4302
        %5876 = vmatmul.bf16.gmra.mxu0 %v1266
        %v5877 = vpop.f32.mrf.mxu0
        %v5878 = vadd.f32 %v5865, %v5877
        %v5879 = vpop.f32.mrf.mxu0
        %5880 = vdwg.mxu0
        %5881 = vmatpush.bf16.msra.mxu0 %v4572
        %5882 = vmatpush.bf16.msra.mxu0 %v4554
        %5883 = vmatpush.bf16.msra.mxu0 %v4536
        %5884 = vmatpush.bf16.msra.mxu0 %v4518
        %5885 = vmatpush.bf16.msra.mxu0 %v4500
        %5886 = vmatpush.bf16.msra.mxu0 %v4482
        %5887 = vmatpush.bf16.msra.mxu0 %v4464
        %5888 = vmatpush.bf16.msra.mxu0 %v4446
        %5889 = vmatmul.bf16.gmra.mxu0 %v1267
        %v5890 = vpop.f32.mrf.mxu0
        %v5891 = vadd.f32 %v5878, %v5890
        %v5892 = vpop.f32.mrf.mxu0
        %5893 = vdwg.mxu0
        %5894 = vmatpush.bf16.msra.mxu0 %v4716
        %5895 = vmatpush.bf16.msra.mxu0 %v4698
        %5896 = vmatpush.bf16.msra.mxu0 %v4680
        %5897 = vmatpush.bf16.msra.mxu0 %v4662
        %5898 = vmatpush.bf16.msra.mxu0 %v4644
        %5899 = vmatpush.bf16.msra.mxu0 %v4626
        %5900 = vmatpush.bf16.msra.mxu0 %v4608
        %5901 = vmatpush.bf16.msra.mxu0 %v4590
        %5902 = vmatmul.bf16.gmra.mxu0 %v1268
        %v5903 = vpop.f32.mrf.mxu0
        %v5904 = vadd.f32 %v5891, %v5903
        %v5905 = vpop.f32.mrf.mxu0
        %5906 = vdwg.mxu0
        %5907 = vmatpush.bf16.msra.mxu0 %v3997
        %5908 = vmatpush.bf16.msra.mxu0 %v3979
        %5909 = vmatpush.bf16.msra.mxu0 %v3961
        %5910 = vmatpush.bf16.msra.mxu0 %v3943
        %5911 = vmatpush.bf16.msra.mxu0 %v3925
        %5912 = vmatpush.bf16.msra.mxu0 %v3907
        %5913 = vmatpush.bf16.msra.mxu0 %v3889
        %5914 = vmatpush.bf16.msra.mxu0 %v3871
        %5915 = vmatmul.bf16.gmra.mxu0 %v1263
        %v5916 = vpop.f32.mrf.mxu0
        %v5917 = vadd.f32 %v1222, %v5916
        %v5918 = vpop.f32.mrf.mxu0
        %5919 = vdwg.mxu0
        %5920 = vmatpush.bf16.msra.mxu0 %v4141
        %5921 = vmatpush.bf16.msra.mxu0 %v4123
        %5922 = vmatpush.bf16.msra.mxu0 %v4105
        %5923 = vmatpush.bf16.msra.mxu0 %v4087
        %5924 = vmatpush.bf16.msra.mxu0 %v4069
        %5925 = vmatpush.bf16.msra.mxu0 %v4051
        %5926 = vmatpush.bf16.msra.mxu0 %v4033
        %5927 = vmatpush.bf16.msra.mxu0 %v4015
        %5928 = vmatmul.bf16.gmra.mxu0 %v1264
        %v5929 = vpop.f32.mrf.mxu0
        %v5930 = vadd.f32 %v5917, %v5929
        %v5931 = vpop.f32.mrf.mxu0
        %5932 = vdwg.mxu0
        %5933 = vmatpush.bf16.msra.mxu0 %v4285
        %5934 = vmatpush.bf16.msra.mxu0 %v4267
        %5935 = vmatpush.bf16.msra.mxu0 %v4249
        %5936 = vmatpush.bf16.msra.mxu0 %v4231
        %5937 = vmatpush.bf16.msra.mxu0 %v4213
        %5938 = vmatpush.bf16.msra.mxu0 %v4195
        %5939 = vmatpush.bf16.msra.mxu0 %v4177
        %5940 = vmatpush.bf16.msra.mxu0 %v4159
        %5941 = vmatmul.bf16.gmra.mxu0 %v1265
        %v5942 = vpop.f32.mrf.mxu0
        %v5943 = vadd.f32 %v5930, %v5942
        %v5944 = vpop.f32.mrf.mxu0
        %5945 = vdwg.mxu0
        %5946 = vmatpush.bf16.msra.mxu0 %v4429
        %5947 = vmatpush.bf16.msra.mxu0 %v4411
        %5948 = vmatpush.bf16.msra.mxu0 %v4393
        %5949 = vmatpush.bf16.msra.mxu0 %v4375
        %5950 = vmatpush.bf16.msra.mxu0 %v4357
        %5951 = vmatpush.bf16.msra.mxu0 %v4339
        %5952 = vmatpush.bf16.msra.mxu0 %v4321
        %5953 = vmatpush.bf16.msra.mxu0 %v4303
        %5954 = vmatmul.bf16.gmra.mxu0 %v1266
        %v5955 = vpop.f32.mrf.mxu0
        %v5956 = vadd.f32 %v5943, %v5955
        %v5957 = vpop.f32.mrf.mxu0
        %5958 = vdwg.mxu0
        %5959 = vmatpush.bf16.msra.mxu0 %v4573
        %5960 = vmatpush.bf16.msra.mxu0 %v4555
        %5961 = vmatpush.bf16.msra.mxu0 %v4537
        %5962 = vmatpush.bf16.msra.mxu0 %v4519
        %5963 = vmatpush.bf16.msra.mxu0 %v4501
        %5964 = vmatpush.bf16.msra.mxu0 %v4483
        %5965 = vmatpush.bf16.msra.mxu0 %v4465
        %5966 = vmatpush.bf16.msra.mxu0 %v4447
        %5967 = vmatmul.bf16.gmra.mxu0 %v1267
        %v5968 = vpop.f32.mrf.mxu0
        %v5969 = vadd.f32 %v5956, %v5968
        %v5970 = vpop.f32.mrf.mxu0
        %5971 = vdwg.mxu0
        %5972 = vmatpush.bf16.msra.mxu0 %v4717
        %5973 = vmatpush.bf16.msra.mxu0 %v4699
        %5974 = vmatpush.bf16.msra.mxu0 %v4681
        %5975 = vmatpush.bf16.msra.mxu0 %v4663
        %5976 = vmatpush.bf16.msra.mxu0 %v4645
        %5977 = vmatpush.bf16.msra.mxu0 %v4627
        %5978 = vmatpush.bf16.msra.mxu0 %v4609
        %5979 = vmatpush.bf16.msra.mxu0 %v4591
        %5980 = vmatmul.bf16.gmra.mxu0 %v1268
        %v5981 = vpop.f32.mrf.mxu0
        %v5982 = vadd.f32 %v5969, %v5981
        %v5983 = vpop.f32.mrf.mxu0
        %5984 = vdwg.mxu0
        %5985 = vmatpush.bf16.msra.mxu0 %v3998
        %5986 = vmatpush.bf16.msra.mxu0 %v3980
        %5987 = vmatpush.bf16.msra.mxu0 %v3962
        %5988 = vmatpush.bf16.msra.mxu0 %v3944
        %5989 = vmatpush.bf16.msra.mxu0 %v3926
        %5990 = vmatpush.bf16.msra.mxu0 %v3908
        %5991 = vmatpush.bf16.msra.mxu0 %v3890
        %5992 = vmatpush.bf16.msra.mxu0 %v3872
        %5993 = vmatmul.bf16.gmra.mxu0 %v1263
        %v5994 = vpop.f32.mrf.mxu0
        %v5995 = vadd.f32 %v1223, %v5994
        %v5996 = vpop.f32.mrf.mxu0
        %5997 = vdwg.mxu0
        %5998 = vmatpush.bf16.msra.mxu0 %v4142
        %5999 = vmatpush.bf16.msra.mxu0 %v4124
        %6000 = vmatpush.bf16.msra.mxu0 %v4106
        %6001 = vmatpush.bf16.msra.mxu0 %v4088
        %6002 = vmatpush.bf16.msra.mxu0 %v4070
        %6003 = vmatpush.bf16.msra.mxu0 %v4052
        %6004 = vmatpush.bf16.msra.mxu0 %v4034
        %6005 = vmatpush.bf16.msra.mxu0 %v4016
        %6006 = vmatmul.bf16.gmra.mxu0 %v1264
        %v6007 = vpop.f32.mrf.mxu0
        %v6008 = vadd.f32 %v5995, %v6007
        %v6009 = vpop.f32.mrf.mxu0
        %6010 = vdwg.mxu0
        %6011 = vmatpush.bf16.msra.mxu0 %v4286
        %6012 = vmatpush.bf16.msra.mxu0 %v4268
        %6013 = vmatpush.bf16.msra.mxu0 %v4250
        %6014 = vmatpush.bf16.msra.mxu0 %v4232
        %6015 = vmatpush.bf16.msra.mxu0 %v4214
        %6016 = vmatpush.bf16.msra.mxu0 %v4196
        %6017 = vmatpush.bf16.msra.mxu0 %v4178
        %6018 = vmatpush.bf16.msra.mxu0 %v4160
        %6019 = vmatmul.bf16.gmra.mxu0 %v1265
        %v6020 = vpop.f32.mrf.mxu0
        %v6021 = vadd.f32 %v6008, %v6020
        %v6022 = vpop.f32.mrf.mxu0
        %6023 = vdwg.mxu0
        %6024 = vmatpush.bf16.msra.mxu0 %v4430
        %6025 = vmatpush.bf16.msra.mxu0 %v4412
        %6026 = vmatpush.bf16.msra.mxu0 %v4394
        %6027 = vmatpush.bf16.msra.mxu0 %v4376
        %6028 = vmatpush.bf16.msra.mxu0 %v4358
        %6029 = vmatpush.bf16.msra.mxu0 %v4340
        %6030 = vmatpush.bf16.msra.mxu0 %v4322
        %6031 = vmatpush.bf16.msra.mxu0 %v4304
        %6032 = vmatmul.bf16.gmra.mxu0 %v1266
        %v6033 = vpop.f32.mrf.mxu0
        %v6034 = vadd.f32 %v6021, %v6033
        %v6035 = vpop.f32.mrf.mxu0
        %6036 = vdwg.mxu0
        %6037 = vmatpush.bf16.msra.mxu0 %v4574
        %6038 = vmatpush.bf16.msra.mxu0 %v4556
        %6039 = vmatpush.bf16.msra.mxu0 %v4538
        %6040 = vmatpush.bf16.msra.mxu0 %v4520
        %6041 = vmatpush.bf16.msra.mxu0 %v4502
        %6042 = vmatpush.bf16.msra.mxu0 %v4484
        %6043 = vmatpush.bf16.msra.mxu0 %v4466
        %6044 = vmatpush.bf16.msra.mxu0 %v4448
        %6045 = vmatmul.bf16.gmra.mxu0 %v1267
        %v6046 = vpop.f32.mrf.mxu0
        %v6047 = vadd.f32 %v6034, %v6046
        %v6048 = vpop.f32.mrf.mxu0
        %6049 = vdwg.mxu0
        %6050 = vmatpush.bf16.msra.mxu0 %v4718
        %6051 = vmatpush.bf16.msra.mxu0 %v4700
        %6052 = vmatpush.bf16.msra.mxu0 %v4682
        %6053 = vmatpush.bf16.msra.mxu0 %v4664
        %6054 = vmatpush.bf16.msra.mxu0 %v4646
        %6055 = vmatpush.bf16.msra.mxu0 %v4628
        %6056 = vmatpush.bf16.msra.mxu0 %v4610
        %6057 = vmatpush.bf16.msra.mxu0 %v4592
        %6058 = vmatmul.bf16.gmra.mxu0 %v1268
        %v6059 = vpop.f32.mrf.mxu0
        %v6060 = vadd.f32 %v6047, %v6059
        %v6061 = vpop.f32.mrf.mxu0
        %6062 = vdwg.mxu0
        %6063 = vmatpush.bf16.msra.mxu0 %v3999
        %6064 = vmatpush.bf16.msra.mxu0 %v3981
        %6065 = vmatpush.bf16.msra.mxu0 %v3963
        %6066 = vmatpush.bf16.msra.mxu0 %v3945
        %6067 = vmatpush.bf16.msra.mxu0 %v3927
        %6068 = vmatpush.bf16.msra.mxu0 %v3909
        %6069 = vmatpush.bf16.msra.mxu0 %v3891
        %6070 = vmatpush.bf16.msra.mxu0 %v3873
        %6071 = vmatmul.bf16.gmra.mxu0 %v1263
        %v6072 = vpop.f32.mrf.mxu0
        %v6073 = vadd.f32 %v1224, %v6072
        %v6074 = vpop.f32.mrf.mxu0
        %6075 = vdwg.mxu0
        %6076 = vmatpush.bf16.msra.mxu0 %v4143
        %6077 = vmatpush.bf16.msra.mxu0 %v4125
        %6078 = vmatpush.bf16.msra.mxu0 %v4107
        %6079 = vmatpush.bf16.msra.mxu0 %v4089
        %6080 = vmatpush.bf16.msra.mxu0 %v4071
        %6081 = vmatpush.bf16.msra.mxu0 %v4053
        %6082 = vmatpush.bf16.msra.mxu0 %v4035
        %6083 = vmatpush.bf16.msra.mxu0 %v4017
        %6084 = vmatmul.bf16.gmra.mxu0 %v1264
        %v6085 = vpop.f32.mrf.mxu0
        %v6086 = vadd.f32 %v6073, %v6085
        %v6087 = vpop.f32.mrf.mxu0
        %6088 = vdwg.mxu0
        %6089 = vmatpush.bf16.msra.mxu0 %v4287
        %6090 = vmatpush.bf16.msra.mxu0 %v4269
        %6091 = vmatpush.bf16.msra.mxu0 %v4251
        %6092 = vmatpush.bf16.msra.mxu0 %v4233
        %6093 = vmatpush.bf16.msra.mxu0 %v4215
        %6094 = vmatpush.bf16.msra.mxu0 %v4197
        %6095 = vmatpush.bf16.msra.mxu0 %v4179
        %6096 = vmatpush.bf16.msra.mxu0 %v4161
        %6097 = vmatmul.bf16.gmra.mxu0 %v1265
        %v6098 = vpop.f32.mrf.mxu0
        %v6099 = vadd.f32 %v6086, %v6098
        %v6100 = vpop.f32.mrf.mxu0
        %6101 = vdwg.mxu0
        %6102 = vmatpush.bf16.msra.mxu0 %v4431
        %6103 = vmatpush.bf16.msra.mxu0 %v4413
        %6104 = vmatpush.bf16.msra.mxu0 %v4395
        %6105 = vmatpush.bf16.msra.mxu0 %v4377
        %6106 = vmatpush.bf16.msra.mxu0 %v4359
        %6107 = vmatpush.bf16.msra.mxu0 %v4341
        %6108 = vmatpush.bf16.msra.mxu0 %v4323
        %6109 = vmatpush.bf16.msra.mxu0 %v4305
        %6110 = vmatmul.bf16.gmra.mxu0 %v1266
        %v6111 = vpop.f32.mrf.mxu0
        %v6112 = vadd.f32 %v6099, %v6111
        %v6113 = vpop.f32.mrf.mxu0
        %6114 = vdwg.mxu0
        %6115 = vmatpush.bf16.msra.mxu0 %v4575
        %6116 = vmatpush.bf16.msra.mxu0 %v4557
        %6117 = vmatpush.bf16.msra.mxu0 %v4539
        %6118 = vmatpush.bf16.msra.mxu0 %v4521
        %6119 = vmatpush.bf16.msra.mxu0 %v4503
        %6120 = vmatpush.bf16.msra.mxu0 %v4485
        %6121 = vmatpush.bf16.msra.mxu0 %v4467
        %6122 = vmatpush.bf16.msra.mxu0 %v4449
        %6123 = vmatmul.bf16.gmra.mxu0 %v1267
        %v6124 = vpop.f32.mrf.mxu0
        %v6125 = vadd.f32 %v6112, %v6124
        %v6126 = vpop.f32.mrf.mxu0
        %6127 = vdwg.mxu0
        %6128 = vmatpush.bf16.msra.mxu0 %v4719
        %6129 = vmatpush.bf16.msra.mxu0 %v4701
        %6130 = vmatpush.bf16.msra.mxu0 %v4683
        %6131 = vmatpush.bf16.msra.mxu0 %v4665
        %6132 = vmatpush.bf16.msra.mxu0 %v4647
        %6133 = vmatpush.bf16.msra.mxu0 %v4629
        %6134 = vmatpush.bf16.msra.mxu0 %v4611
        %6135 = vmatpush.bf16.msra.mxu0 %v4593
        %6136 = vmatmul.bf16.gmra.mxu0 %v1268
        %v6137 = vpop.f32.mrf.mxu0
        %v6138 = vadd.f32 %v6125, %v6137
        %v6139 = vpop.f32.mrf.mxu0
        %6140 = vdwg.mxu0
        %6141 = vmatpush.bf16.msra.mxu0 %v4000
        %6142 = vmatpush.bf16.msra.mxu0 %v3982
        %6143 = vmatpush.bf16.msra.mxu0 %v3964
        %6144 = vmatpush.bf16.msra.mxu0 %v3946
        %6145 = vmatpush.bf16.msra.mxu0 %v3928
        %6146 = vmatpush.bf16.msra.mxu0 %v3910
        %6147 = vmatpush.bf16.msra.mxu0 %v3892
        %6148 = vmatpush.bf16.msra.mxu0 %v3874
        %6149 = vmatmul.bf16.gmra.mxu0 %v1263
        %v6150 = vpop.f32.mrf.mxu0
        %v6151 = vadd.f32 %v1225, %v6150
        %v6152 = vpop.f32.mrf.mxu0
        %6153 = vdwg.mxu0
        %6154 = vmatpush.bf16.msra.mxu0 %v4144
        %6155 = vmatpush.bf16.msra.mxu0 %v4126
        %6156 = vmatpush.bf16.msra.mxu0 %v4108
        %6157 = vmatpush.bf16.msra.mxu0 %v4090
        %6158 = vmatpush.bf16.msra.mxu0 %v4072
        %6159 = vmatpush.bf16.msra.mxu0 %v4054
        %6160 = vmatpush.bf16.msra.mxu0 %v4036
        %6161 = vmatpush.bf16.msra.mxu0 %v4018
        %6162 = vmatmul.bf16.gmra.mxu0 %v1264
        %v6163 = vpop.f32.mrf.mxu0
        %v6164 = vadd.f32 %v6151, %v6163
        %v6165 = vpop.f32.mrf.mxu0
        %6166 = vdwg.mxu0
        %6167 = vmatpush.bf16.msra.mxu0 %v4288
        %6168 = vmatpush.bf16.msra.mxu0 %v4270
        %6169 = vmatpush.bf16.msra.mxu0 %v4252
        %6170 = vmatpush.bf16.msra.mxu0 %v4234
        %6171 = vmatpush.bf16.msra.mxu0 %v4216
        %6172 = vmatpush.bf16.msra.mxu0 %v4198
        %6173 = vmatpush.bf16.msra.mxu0 %v4180
        %6174 = vmatpush.bf16.msra.mxu0 %v4162
        %6175 = vmatmul.bf16.gmra.mxu0 %v1265
        %v6176 = vpop.f32.mrf.mxu0
        %v6177 = vadd.f32 %v6164, %v6176
        %v6178 = vpop.f32.mrf.mxu0
        %6179 = vdwg.mxu0
        %6180 = vmatpush.bf16.msra.mxu0 %v4432
        %6181 = vmatpush.bf16.msra.mxu0 %v4414
        %6182 = vmatpush.bf16.msra.mxu0 %v4396
        %6183 = vmatpush.bf16.msra.mxu0 %v4378
        %6184 = vmatpush.bf16.msra.mxu0 %v4360
        %6185 = vmatpush.bf16.msra.mxu0 %v4342
        %6186 = vmatpush.bf16.msra.mxu0 %v4324
        %6187 = vmatpush.bf16.msra.mxu0 %v4306
        %6188 = vmatmul.bf16.gmra.mxu0 %v1266
        %v6189 = vpop.f32.mrf.mxu0
        %v6190 = vadd.f32 %v6177, %v6189
        %v6191 = vpop.f32.mrf.mxu0
        %6192 = vdwg.mxu0
        %6193 = vmatpush.bf16.msra.mxu0 %v4576
        %6194 = vmatpush.bf16.msra.mxu0 %v4558
        %6195 = vmatpush.bf16.msra.mxu0 %v4540
        %6196 = vmatpush.bf16.msra.mxu0 %v4522
        %6197 = vmatpush.bf16.msra.mxu0 %v4504
        %6198 = vmatpush.bf16.msra.mxu0 %v4486
        %6199 = vmatpush.bf16.msra.mxu0 %v4468
        %6200 = vmatpush.bf16.msra.mxu0 %v4450
        %6201 = vmatmul.bf16.gmra.mxu0 %v1267
        %v6202 = vpop.f32.mrf.mxu0
        %v6203 = vadd.f32 %v6190, %v6202
        %v6204 = vpop.f32.mrf.mxu0
        %6205 = vdwg.mxu0
        %6206 = vmatpush.bf16.msra.mxu0 %v4720
        %6207 = vmatpush.bf16.msra.mxu0 %v4702
        %6208 = vmatpush.bf16.msra.mxu0 %v4684
        %6209 = vmatpush.bf16.msra.mxu0 %v4666
        %6210 = vmatpush.bf16.msra.mxu0 %v4648
        %6211 = vmatpush.bf16.msra.mxu0 %v4630
        %6212 = vmatpush.bf16.msra.mxu0 %v4612
        %6213 = vmatpush.bf16.msra.mxu0 %v4594
        %6214 = vmatmul.bf16.gmra.mxu0 %v1268
        %v6215 = vpop.f32.mrf.mxu0
        %v6216 = vadd.f32 %v6203, %v6215
        %v6217 = vpop.f32.mrf.mxu0
        %6218 = vdwg.mxu0
        %6219 = vmatpush.bf16.msra.mxu0 %v4001
        %6220 = vmatpush.bf16.msra.mxu0 %v3983
        %6221 = vmatpush.bf16.msra.mxu0 %v3965
        %6222 = vmatpush.bf16.msra.mxu0 %v3947
        %6223 = vmatpush.bf16.msra.mxu0 %v3929
        %6224 = vmatpush.bf16.msra.mxu0 %v3911
        %6225 = vmatpush.bf16.msra.mxu0 %v3893
        %6226 = vmatpush.bf16.msra.mxu0 %v3875
        %6227 = vmatmul.bf16.gmra.mxu0 %v1263
        %v6228 = vpop.f32.mrf.mxu0
        %v6229 = vadd.f32 %v1226, %v6228
        %v6230 = vpop.f32.mrf.mxu0
        %6231 = vdwg.mxu0
        %6232 = vmatpush.bf16.msra.mxu0 %v4145
        %6233 = vmatpush.bf16.msra.mxu0 %v4127
        %6234 = vmatpush.bf16.msra.mxu0 %v4109
        %6235 = vmatpush.bf16.msra.mxu0 %v4091
        %6236 = vmatpush.bf16.msra.mxu0 %v4073
        %6237 = vmatpush.bf16.msra.mxu0 %v4055
        %6238 = vmatpush.bf16.msra.mxu0 %v4037
        %6239 = vmatpush.bf16.msra.mxu0 %v4019
        %6240 = vmatmul.bf16.gmra.mxu0 %v1264
        %v6241 = vpop.f32.mrf.mxu0
        %v6242 = vadd.f32 %v6229, %v6241
        %v6243 = vpop.f32.mrf.mxu0
        %6244 = vdwg.mxu0
        %6245 = vmatpush.bf16.msra.mxu0 %v4289
        %6246 = vmatpush.bf16.msra.mxu0 %v4271
        %6247 = vmatpush.bf16.msra.mxu0 %v4253
        %6248 = vmatpush.bf16.msra.mxu0 %v4235
        %6249 = vmatpush.bf16.msra.mxu0 %v4217
        %6250 = vmatpush.bf16.msra.mxu0 %v4199
        %6251 = vmatpush.bf16.msra.mxu0 %v4181
        %6252 = vmatpush.bf16.msra.mxu0 %v4163
        %6253 = vmatmul.bf16.gmra.mxu0 %v1265
        %v6254 = vpop.f32.mrf.mxu0
        %v6255 = vadd.f32 %v6242, %v6254
        %v6256 = vpop.f32.mrf.mxu0
        %6257 = vdwg.mxu0
        %6258 = vmatpush.bf16.msra.mxu0 %v4433
        %6259 = vmatpush.bf16.msra.mxu0 %v4415
        %6260 = vmatpush.bf16.msra.mxu0 %v4397
        %6261 = vmatpush.bf16.msra.mxu0 %v4379
        %6262 = vmatpush.bf16.msra.mxu0 %v4361
        %6263 = vmatpush.bf16.msra.mxu0 %v4343
        %6264 = vmatpush.bf16.msra.mxu0 %v4325
        %6265 = vmatpush.bf16.msra.mxu0 %v4307
        %6266 = vmatmul.bf16.gmra.mxu0 %v1266
        %v6267 = vpop.f32.mrf.mxu0
        %v6268 = vadd.f32 %v6255, %v6267
        %v6269 = vpop.f32.mrf.mxu0
        %6270 = vdwg.mxu0
        %6271 = vmatpush.bf16.msra.mxu0 %v4577
        %6272 = vmatpush.bf16.msra.mxu0 %v4559
        %6273 = vmatpush.bf16.msra.mxu0 %v4541
        %6274 = vmatpush.bf16.msra.mxu0 %v4523
        %6275 = vmatpush.bf16.msra.mxu0 %v4505
        %6276 = vmatpush.bf16.msra.mxu0 %v4487
        %6277 = vmatpush.bf16.msra.mxu0 %v4469
        %6278 = vmatpush.bf16.msra.mxu0 %v4451
        %6279 = vmatmul.bf16.gmra.mxu0 %v1267
        %v6280 = vpop.f32.mrf.mxu0
        %v6281 = vadd.f32 %v6268, %v6280
        %v6282 = vpop.f32.mrf.mxu0
        %6283 = vdwg.mxu0
        %6284 = vmatpush.bf16.msra.mxu0 %v4721
        %6285 = vmatpush.bf16.msra.mxu0 %v4703
        %6286 = vmatpush.bf16.msra.mxu0 %v4685
        %6287 = vmatpush.bf16.msra.mxu0 %v4667
        %6288 = vmatpush.bf16.msra.mxu0 %v4649
        %6289 = vmatpush.bf16.msra.mxu0 %v4631
        %6290 = vmatpush.bf16.msra.mxu0 %v4613
        %6291 = vmatpush.bf16.msra.mxu0 %v4595
        %6292 = vmatmul.bf16.gmra.mxu0 %v1268
        %v6293 = vpop.f32.mrf.mxu0
        %v6294 = vadd.f32 %v6281, %v6293
        %v6295 = vpop.f32.mrf.mxu0
        %6296 = vdwg.mxu0
        %6297 = vmatpush.bf16.msra.mxu0 %v4002
        %6298 = vmatpush.bf16.msra.mxu0 %v3984
        %6299 = vmatpush.bf16.msra.mxu0 %v3966
        %6300 = vmatpush.bf16.msra.mxu0 %v3948
        %6301 = vmatpush.bf16.msra.mxu0 %v3930
        %6302 = vmatpush.bf16.msra.mxu0 %v3912
        %6303 = vmatpush.bf16.msra.mxu0 %v3894
        %6304 = vmatpush.bf16.msra.mxu0 %v3876
        %6305 = vmatmul.bf16.gmra.mxu0 %v1263
        %v6306 = vpop.f32.mrf.mxu0
        %v6307 = vadd.f32 %v1227, %v6306
        %v6308 = vpop.f32.mrf.mxu0
        %6309 = vdwg.mxu0
        %6310 = vmatpush.bf16.msra.mxu0 %v4146
        %6311 = vmatpush.bf16.msra.mxu0 %v4128
        %6312 = vmatpush.bf16.msra.mxu0 %v4110
        %6313 = vmatpush.bf16.msra.mxu0 %v4092
        %6314 = vmatpush.bf16.msra.mxu0 %v4074
        %6315 = vmatpush.bf16.msra.mxu0 %v4056
        %6316 = vmatpush.bf16.msra.mxu0 %v4038
        %6317 = vmatpush.bf16.msra.mxu0 %v4020
        %6318 = vmatmul.bf16.gmra.mxu0 %v1264
        %v6319 = vpop.f32.mrf.mxu0
        %v6320 = vadd.f32 %v6307, %v6319
        %v6321 = vpop.f32.mrf.mxu0
        %6322 = vdwg.mxu0
        %6323 = vmatpush.bf16.msra.mxu0 %v4290
        %6324 = vmatpush.bf16.msra.mxu0 %v4272
        %6325 = vmatpush.bf16.msra.mxu0 %v4254
        %6326 = vmatpush.bf16.msra.mxu0 %v4236
        %6327 = vmatpush.bf16.msra.mxu0 %v4218
        %6328 = vmatpush.bf16.msra.mxu0 %v4200
        %6329 = vmatpush.bf16.msra.mxu0 %v4182
        %6330 = vmatpush.bf16.msra.mxu0 %v4164
        %6331 = vmatmul.bf16.gmra.mxu0 %v1265
        %v6332 = vpop.f32.mrf.mxu0
        %v6333 = vadd.f32 %v6320, %v6332
        %v6334 = vpop.f32.mrf.mxu0
        %6335 = vdwg.mxu0
        %6336 = vmatpush.bf16.msra.mxu0 %v4434
        %6337 = vmatpush.bf16.msra.mxu0 %v4416
        %6338 = vmatpush.bf16.msra.mxu0 %v4398
        %6339 = vmatpush.bf16.msra.mxu0 %v4380
        %6340 = vmatpush.bf16.msra.mxu0 %v4362
        %6341 = vmatpush.bf16.msra.mxu0 %v4344
        %6342 = vmatpush.bf16.msra.mxu0 %v4326
        %6343 = vmatpush.bf16.msra.mxu0 %v4308
        %6344 = vmatmul.bf16.gmra.mxu0 %v1266
        %v6345 = vpop.f32.mrf.mxu0
        %v6346 = vadd.f32 %v6333, %v6345
        %v6347 = vpop.f32.mrf.mxu0
        %6348 = vdwg.mxu0
        %6349 = vmatpush.bf16.msra.mxu0 %v4578
        %6350 = vmatpush.bf16.msra.mxu0 %v4560
        %6351 = vmatpush.bf16.msra.mxu0 %v4542
        %6352 = vmatpush.bf16.msra.mxu0 %v4524
        %6353 = vmatpush.bf16.msra.mxu0 %v4506
        %6354 = vmatpush.bf16.msra.mxu0 %v4488
        %6355 = vmatpush.bf16.msra.mxu0 %v4470
        %6356 = vmatpush.bf16.msra.mxu0 %v4452
        %6357 = vmatmul.bf16.gmra.mxu0 %v1267
        %v6358 = vpop.f32.mrf.mxu0
        %v6359 = vadd.f32 %v6346, %v6358
        %v6360 = vpop.f32.mrf.mxu0
        %6361 = vdwg.mxu0
        %6362 = vmatpush.bf16.msra.mxu0 %v4722
        %6363 = vmatpush.bf16.msra.mxu0 %v4704
        %6364 = vmatpush.bf16.msra.mxu0 %v4686
        %6365 = vmatpush.bf16.msra.mxu0 %v4668
        %6366 = vmatpush.bf16.msra.mxu0 %v4650
        %6367 = vmatpush.bf16.msra.mxu0 %v4632
        %6368 = vmatpush.bf16.msra.mxu0 %v4614
        %6369 = vmatpush.bf16.msra.mxu0 %v4596
        %6370 = vmatmul.bf16.gmra.mxu0 %v1268
        %v6371 = vpop.f32.mrf.mxu0
        %v6372 = vadd.f32 %v6359, %v6371
        %v6373 = vpop.f32.mrf.mxu0
        %6374 = vdwg.mxu0
        %6375 = vmatpush.bf16.msra.mxu0 %v4003
        %6376 = vmatpush.bf16.msra.mxu0 %v3985
        %6377 = vmatpush.bf16.msra.mxu0 %v3967
        %6378 = vmatpush.bf16.msra.mxu0 %v3949
        %6379 = vmatpush.bf16.msra.mxu0 %v3931
        %6380 = vmatpush.bf16.msra.mxu0 %v3913
        %6381 = vmatpush.bf16.msra.mxu0 %v3895
        %6382 = vmatpush.bf16.msra.mxu0 %v3877
        %6383 = vmatmul.bf16.gmra.mxu0 %v1263
        %v6384 = vpop.f32.mrf.mxu0
        %v6385 = vadd.f32 %v1228, %v6384
        %v6386 = vpop.f32.mrf.mxu0
        %6387 = vdwg.mxu0
        %6388 = vmatpush.bf16.msra.mxu0 %v4147
        %6389 = vmatpush.bf16.msra.mxu0 %v4129
        %6390 = vmatpush.bf16.msra.mxu0 %v4111
        %6391 = vmatpush.bf16.msra.mxu0 %v4093
        %6392 = vmatpush.bf16.msra.mxu0 %v4075
        %6393 = vmatpush.bf16.msra.mxu0 %v4057
        %6394 = vmatpush.bf16.msra.mxu0 %v4039
        %6395 = vmatpush.bf16.msra.mxu0 %v4021
        %6396 = vmatmul.bf16.gmra.mxu0 %v1264
        %v6397 = vpop.f32.mrf.mxu0
        %v6398 = vadd.f32 %v6385, %v6397
        %v6399 = vpop.f32.mrf.mxu0
        %6400 = vdwg.mxu0
        %6401 = vmatpush.bf16.msra.mxu0 %v4291
        %6402 = vmatpush.bf16.msra.mxu0 %v4273
        %6403 = vmatpush.bf16.msra.mxu0 %v4255
        %6404 = vmatpush.bf16.msra.mxu0 %v4237
        %6405 = vmatpush.bf16.msra.mxu0 %v4219
        %6406 = vmatpush.bf16.msra.mxu0 %v4201
        %6407 = vmatpush.bf16.msra.mxu0 %v4183
        %6408 = vmatpush.bf16.msra.mxu0 %v4165
        %6409 = vmatmul.bf16.gmra.mxu0 %v1265
        %v6410 = vpop.f32.mrf.mxu0
        %v6411 = vadd.f32 %v6398, %v6410
        %v6412 = vpop.f32.mrf.mxu0
        %6413 = vdwg.mxu0
        %6414 = vmatpush.bf16.msra.mxu0 %v4435
        %6415 = vmatpush.bf16.msra.mxu0 %v4417
        %6416 = vmatpush.bf16.msra.mxu0 %v4399
        %6417 = vmatpush.bf16.msra.mxu0 %v4381
        %6418 = vmatpush.bf16.msra.mxu0 %v4363
        %6419 = vmatpush.bf16.msra.mxu0 %v4345
        %6420 = vmatpush.bf16.msra.mxu0 %v4327
        %6421 = vmatpush.bf16.msra.mxu0 %v4309
        %6422 = vmatmul.bf16.gmra.mxu0 %v1266
        %v6423 = vpop.f32.mrf.mxu0
        %v6424 = vadd.f32 %v6411, %v6423
        %v6425 = vpop.f32.mrf.mxu0
        %6426 = vdwg.mxu0
        %6427 = vmatpush.bf16.msra.mxu0 %v4579
        %6428 = vmatpush.bf16.msra.mxu0 %v4561
        %6429 = vmatpush.bf16.msra.mxu0 %v4543
        %6430 = vmatpush.bf16.msra.mxu0 %v4525
        %6431 = vmatpush.bf16.msra.mxu0 %v4507
        %6432 = vmatpush.bf16.msra.mxu0 %v4489
        %6433 = vmatpush.bf16.msra.mxu0 %v4471
        %6434 = vmatpush.bf16.msra.mxu0 %v4453
        %6435 = vmatmul.bf16.gmra.mxu0 %v1267
        %v6436 = vpop.f32.mrf.mxu0
        %v6437 = vadd.f32 %v6424, %v6436
        %v6438 = vpop.f32.mrf.mxu0
        %6439 = vdwg.mxu0
        %6440 = vmatpush.bf16.msra.mxu0 %v4723
        %6441 = vmatpush.bf16.msra.mxu0 %v4705
        %6442 = vmatpush.bf16.msra.mxu0 %v4687
        %6443 = vmatpush.bf16.msra.mxu0 %v4669
        %6444 = vmatpush.bf16.msra.mxu0 %v4651
        %6445 = vmatpush.bf16.msra.mxu0 %v4633
        %6446 = vmatpush.bf16.msra.mxu0 %v4615
        %6447 = vmatpush.bf16.msra.mxu0 %v4597
        %6448 = vmatmul.bf16.gmra.mxu0 %v1268
        %v6449 = vpop.f32.mrf.mxu0
        %v6450 = vadd.f32 %v6437, %v6449
        %v6451 = vpop.f32.mrf.mxu0
        %6452 = vdwg.mxu0
        %6453 = vmatpush.bf16.msra.mxu0 %v4004
        %6454 = vmatpush.bf16.msra.mxu0 %v3986
        %6455 = vmatpush.bf16.msra.mxu0 %v3968
        %6456 = vmatpush.bf16.msra.mxu0 %v3950
        %6457 = vmatpush.bf16.msra.mxu0 %v3932
        %6458 = vmatpush.bf16.msra.mxu0 %v3914
        %6459 = vmatpush.bf16.msra.mxu0 %v3896
        %6460 = vmatpush.bf16.msra.mxu0 %v3878
        %6461 = vmatmul.bf16.gmra.mxu0 %v1263
        %v6462 = vpop.f32.mrf.mxu0
        %v6463 = vadd.f32 %v1229, %v6462
        %v6464 = vpop.f32.mrf.mxu0
        %6465 = vdwg.mxu0
        %6466 = vmatpush.bf16.msra.mxu0 %v4148
        %6467 = vmatpush.bf16.msra.mxu0 %v4130
        %6468 = vmatpush.bf16.msra.mxu0 %v4112
        %6469 = vmatpush.bf16.msra.mxu0 %v4094
        %6470 = vmatpush.bf16.msra.mxu0 %v4076
        %6471 = vmatpush.bf16.msra.mxu0 %v4058
        %6472 = vmatpush.bf16.msra.mxu0 %v4040
        %6473 = vmatpush.bf16.msra.mxu0 %v4022
        %6474 = vmatmul.bf16.gmra.mxu0 %v1264
        %v6475 = vpop.f32.mrf.mxu0
        %v6476 = vadd.f32 %v6463, %v6475
        %v6477 = vpop.f32.mrf.mxu0
        %6478 = vdwg.mxu0
        %6479 = vmatpush.bf16.msra.mxu0 %v4292
        %6480 = vmatpush.bf16.msra.mxu0 %v4274
        %6481 = vmatpush.bf16.msra.mxu0 %v4256
        %6482 = vmatpush.bf16.msra.mxu0 %v4238
        %6483 = vmatpush.bf16.msra.mxu0 %v4220
        %6484 = vmatpush.bf16.msra.mxu0 %v4202
        %6485 = vmatpush.bf16.msra.mxu0 %v4184
        %6486 = vmatpush.bf16.msra.mxu0 %v4166
        %6487 = vmatmul.bf16.gmra.mxu0 %v1265
        %v6488 = vpop.f32.mrf.mxu0
        %v6489 = vadd.f32 %v6476, %v6488
        %v6490 = vpop.f32.mrf.mxu0
        %6491 = vdwg.mxu0
        %6492 = vmatpush.bf16.msra.mxu0 %v4436
        %6493 = vmatpush.bf16.msra.mxu0 %v4418
        %6494 = vmatpush.bf16.msra.mxu0 %v4400
        %6495 = vmatpush.bf16.msra.mxu0 %v4382
        %6496 = vmatpush.bf16.msra.mxu0 %v4364
        %6497 = vmatpush.bf16.msra.mxu0 %v4346
        %6498 = vmatpush.bf16.msra.mxu0 %v4328
        %6499 = vmatpush.bf16.msra.mxu0 %v4310
        %6500 = vmatmul.bf16.gmra.mxu0 %v1266
        %v6501 = vpop.f32.mrf.mxu0
        %v6502 = vadd.f32 %v6489, %v6501
        %v6503 = vpop.f32.mrf.mxu0
        %6504 = vdwg.mxu0
        %6505 = vmatpush.bf16.msra.mxu0 %v4580
        %6506 = vmatpush.bf16.msra.mxu0 %v4562
        %6507 = vmatpush.bf16.msra.mxu0 %v4544
        %6508 = vmatpush.bf16.msra.mxu0 %v4526
        %6509 = vmatpush.bf16.msra.mxu0 %v4508
        %6510 = vmatpush.bf16.msra.mxu0 %v4490
        %6511 = vmatpush.bf16.msra.mxu0 %v4472
        %6512 = vmatpush.bf16.msra.mxu0 %v4454
        %6513 = vmatmul.bf16.gmra.mxu0 %v1267
        %v6514 = vpop.f32.mrf.mxu0
        %v6515 = vadd.f32 %v6502, %v6514
        %v6516 = vpop.f32.mrf.mxu0
        %6517 = vdwg.mxu0
        %6518 = vmatpush.bf16.msra.mxu0 %v4724
        %6519 = vmatpush.bf16.msra.mxu0 %v4706
        %6520 = vmatpush.bf16.msra.mxu0 %v4688
        %6521 = vmatpush.bf16.msra.mxu0 %v4670
        %6522 = vmatpush.bf16.msra.mxu0 %v4652
        %6523 = vmatpush.bf16.msra.mxu0 %v4634
        %6524 = vmatpush.bf16.msra.mxu0 %v4616
        %6525 = vmatpush.bf16.msra.mxu0 %v4598
        %6526 = vmatmul.bf16.gmra.mxu0 %v1268
        %v6527 = vpop.f32.mrf.mxu0
        %v6528 = vadd.f32 %v6515, %v6527
        %v6529 = vpop.f32.mrf.mxu0
        %6530 = vdwg.mxu0
        %6531 = vmatpush.bf16.msra.mxu0 %v4005
        %6532 = vmatpush.bf16.msra.mxu0 %v3987
        %6533 = vmatpush.bf16.msra.mxu0 %v3969
        %6534 = vmatpush.bf16.msra.mxu0 %v3951
        %6535 = vmatpush.bf16.msra.mxu0 %v3933
        %6536 = vmatpush.bf16.msra.mxu0 %v3915
        %6537 = vmatpush.bf16.msra.mxu0 %v3897
        %6538 = vmatpush.bf16.msra.mxu0 %v3879
        %6539 = vmatmul.bf16.gmra.mxu0 %v1263
        %v6540 = vpop.f32.mrf.mxu0
        %v6541 = vadd.f32 %v1230, %v6540
        %v6542 = vpop.f32.mrf.mxu0
        %6543 = vdwg.mxu0
        %6544 = vmatpush.bf16.msra.mxu0 %v4149
        %6545 = vmatpush.bf16.msra.mxu0 %v4131
        %6546 = vmatpush.bf16.msra.mxu0 %v4113
        %6547 = vmatpush.bf16.msra.mxu0 %v4095
        %6548 = vmatpush.bf16.msra.mxu0 %v4077
        %6549 = vmatpush.bf16.msra.mxu0 %v4059
        %6550 = vmatpush.bf16.msra.mxu0 %v4041
        %6551 = vmatpush.bf16.msra.mxu0 %v4023
        %6552 = vmatmul.bf16.gmra.mxu0 %v1264
        %v6553 = vpop.f32.mrf.mxu0
        %v6554 = vadd.f32 %v6541, %v6553
        %v6555 = vpop.f32.mrf.mxu0
        %6556 = vdwg.mxu0
        %6557 = vmatpush.bf16.msra.mxu0 %v4293
        %6558 = vmatpush.bf16.msra.mxu0 %v4275
        %6559 = vmatpush.bf16.msra.mxu0 %v4257
        %6560 = vmatpush.bf16.msra.mxu0 %v4239
        %6561 = vmatpush.bf16.msra.mxu0 %v4221
        %6562 = vmatpush.bf16.msra.mxu0 %v4203
        %6563 = vmatpush.bf16.msra.mxu0 %v4185
        %6564 = vmatpush.bf16.msra.mxu0 %v4167
        %6565 = vmatmul.bf16.gmra.mxu0 %v1265
        %v6566 = vpop.f32.mrf.mxu0
        %v6567 = vadd.f32 %v6554, %v6566
        %v6568 = vpop.f32.mrf.mxu0
        %6569 = vdwg.mxu0
        %6570 = vmatpush.bf16.msra.mxu0 %v4437
        %6571 = vmatpush.bf16.msra.mxu0 %v4419
        %6572 = vmatpush.bf16.msra.mxu0 %v4401
        %6573 = vmatpush.bf16.msra.mxu0 %v4383
        %6574 = vmatpush.bf16.msra.mxu0 %v4365
        %6575 = vmatpush.bf16.msra.mxu0 %v4347
        %6576 = vmatpush.bf16.msra.mxu0 %v4329
        %6577 = vmatpush.bf16.msra.mxu0 %v4311
        %6578 = vmatmul.bf16.gmra.mxu0 %v1266
        %v6579 = vpop.f32.mrf.mxu0
        %v6580 = vadd.f32 %v6567, %v6579
        %v6581 = vpop.f32.mrf.mxu0
        %6582 = vdwg.mxu0
        %6583 = vmatpush.bf16.msra.mxu0 %v4581
        %6584 = vmatpush.bf16.msra.mxu0 %v4563
        %6585 = vmatpush.bf16.msra.mxu0 %v4545
        %6586 = vmatpush.bf16.msra.mxu0 %v4527
        %6587 = vmatpush.bf16.msra.mxu0 %v4509
        %6588 = vmatpush.bf16.msra.mxu0 %v4491
        %6589 = vmatpush.bf16.msra.mxu0 %v4473
        %6590 = vmatpush.bf16.msra.mxu0 %v4455
        %6591 = vmatmul.bf16.gmra.mxu0 %v1267
        %v6592 = vpop.f32.mrf.mxu0
        %v6593 = vadd.f32 %v6580, %v6592
        %v6594 = vpop.f32.mrf.mxu0
        %6595 = vdwg.mxu0
        %6596 = vmatpush.bf16.msra.mxu0 %v4725
        %6597 = vmatpush.bf16.msra.mxu0 %v4707
        %6598 = vmatpush.bf16.msra.mxu0 %v4689
        %6599 = vmatpush.bf16.msra.mxu0 %v4671
        %6600 = vmatpush.bf16.msra.mxu0 %v4653
        %6601 = vmatpush.bf16.msra.mxu0 %v4635
        %6602 = vmatpush.bf16.msra.mxu0 %v4617
        %6603 = vmatpush.bf16.msra.mxu0 %v4599
        %6604 = vmatmul.bf16.gmra.mxu0 %v1268
        %v6605 = vpop.f32.mrf.mxu0
        %v6606 = vadd.f32 %v6593, %v6605
        %v6607 = vpop.f32.mrf.mxu0
        %6608 = vdwg.mxu0
        %6609 = vmatpush.bf16.msra.mxu0 %v4006
        %6610 = vmatpush.bf16.msra.mxu0 %v3988
        %6611 = vmatpush.bf16.msra.mxu0 %v3970
        %6612 = vmatpush.bf16.msra.mxu0 %v3952
        %6613 = vmatpush.bf16.msra.mxu0 %v3934
        %6614 = vmatpush.bf16.msra.mxu0 %v3916
        %6615 = vmatpush.bf16.msra.mxu0 %v3898
        %6616 = vmatpush.bf16.msra.mxu0 %v3880
        %6617 = vmatmul.bf16.gmra.mxu0 %v1263
        %v6618 = vpop.f32.mrf.mxu0
        %v6619 = vadd.f32 %v1231, %v6618
        %v6620 = vpop.f32.mrf.mxu0
        %6621 = vdwg.mxu0
        %6622 = vmatpush.bf16.msra.mxu0 %v4150
        %6623 = vmatpush.bf16.msra.mxu0 %v4132
        %6624 = vmatpush.bf16.msra.mxu0 %v4114
        %6625 = vmatpush.bf16.msra.mxu0 %v4096
        %6626 = vmatpush.bf16.msra.mxu0 %v4078
        %6627 = vmatpush.bf16.msra.mxu0 %v4060
        %6628 = vmatpush.bf16.msra.mxu0 %v4042
        %6629 = vmatpush.bf16.msra.mxu0 %v4024
        %6630 = vmatmul.bf16.gmra.mxu0 %v1264
        %v6631 = vpop.f32.mrf.mxu0
        %v6632 = vadd.f32 %v6619, %v6631
        %v6633 = vpop.f32.mrf.mxu0
        %6634 = vdwg.mxu0
        %6635 = vmatpush.bf16.msra.mxu0 %v4294
        %6636 = vmatpush.bf16.msra.mxu0 %v4276
        %6637 = vmatpush.bf16.msra.mxu0 %v4258
        %6638 = vmatpush.bf16.msra.mxu0 %v4240
        %6639 = vmatpush.bf16.msra.mxu0 %v4222
        %6640 = vmatpush.bf16.msra.mxu0 %v4204
        %6641 = vmatpush.bf16.msra.mxu0 %v4186
        %6642 = vmatpush.bf16.msra.mxu0 %v4168
        %6643 = vmatmul.bf16.gmra.mxu0 %v1265
        %v6644 = vpop.f32.mrf.mxu0
        %v6645 = vadd.f32 %v6632, %v6644
        %v6646 = vpop.f32.mrf.mxu0
        %6647 = vdwg.mxu0
        %6648 = vmatpush.bf16.msra.mxu0 %v4438
        %6649 = vmatpush.bf16.msra.mxu0 %v4420
        %6650 = vmatpush.bf16.msra.mxu0 %v4402
        %6651 = vmatpush.bf16.msra.mxu0 %v4384
        %6652 = vmatpush.bf16.msra.mxu0 %v4366
        %6653 = vmatpush.bf16.msra.mxu0 %v4348
        %6654 = vmatpush.bf16.msra.mxu0 %v4330
        %6655 = vmatpush.bf16.msra.mxu0 %v4312
        %6656 = vmatmul.bf16.gmra.mxu0 %v1266
        %v6657 = vpop.f32.mrf.mxu0
        %v6658 = vadd.f32 %v6645, %v6657
        %v6659 = vpop.f32.mrf.mxu0
        %6660 = vdwg.mxu0
        %6661 = vmatpush.bf16.msra.mxu0 %v4582
        %6662 = vmatpush.bf16.msra.mxu0 %v4564
        %6663 = vmatpush.bf16.msra.mxu0 %v4546
        %6664 = vmatpush.bf16.msra.mxu0 %v4528
        %6665 = vmatpush.bf16.msra.mxu0 %v4510
        %6666 = vmatpush.bf16.msra.mxu0 %v4492
        %6667 = vmatpush.bf16.msra.mxu0 %v4474
        %6668 = vmatpush.bf16.msra.mxu0 %v4456
        %6669 = vmatmul.bf16.gmra.mxu0 %v1267
        %v6670 = vpop.f32.mrf.mxu0
        %v6671 = vadd.f32 %v6658, %v6670
        %v6672 = vpop.f32.mrf.mxu0
        %6673 = vdwg.mxu0
        %6674 = vmatpush.bf16.msra.mxu0 %v4726
        %6675 = vmatpush.bf16.msra.mxu0 %v4708
        %6676 = vmatpush.bf16.msra.mxu0 %v4690
        %6677 = vmatpush.bf16.msra.mxu0 %v4672
        %6678 = vmatpush.bf16.msra.mxu0 %v4654
        %6679 = vmatpush.bf16.msra.mxu0 %v4636
        %6680 = vmatpush.bf16.msra.mxu0 %v4618
        %6681 = vmatpush.bf16.msra.mxu0 %v4600
        %6682 = vmatmul.bf16.gmra.mxu0 %v1268
        %v6683 = vpop.f32.mrf.mxu0
        %v6684 = vadd.f32 %v6671, %v6683
        %v6685 = vpop.f32.mrf.mxu0
        %6686 = vdwg.mxu0
        %6687 = vmatpush.bf16.msra.mxu0 %v4007
        %6688 = vmatpush.bf16.msra.mxu0 %v3989
        %6689 = vmatpush.bf16.msra.mxu0 %v3971
        %6690 = vmatpush.bf16.msra.mxu0 %v3953
        %6691 = vmatpush.bf16.msra.mxu0 %v3935
        %6692 = vmatpush.bf16.msra.mxu0 %v3917
        %6693 = vmatpush.bf16.msra.mxu0 %v3899
        %6694 = vmatpush.bf16.msra.mxu0 %v3881
        %6695 = vmatmul.bf16.gmra.mxu0 %v1263
        %v6696 = vpop.f32.mrf.mxu0
        %v6697 = vadd.f32 %v1232, %v6696
        %v6698 = vpop.f32.mrf.mxu0
        %6699 = vdwg.mxu0
        %6700 = vmatpush.bf16.msra.mxu0 %v4151
        %6701 = vmatpush.bf16.msra.mxu0 %v4133
        %6702 = vmatpush.bf16.msra.mxu0 %v4115
        %6703 = vmatpush.bf16.msra.mxu0 %v4097
        %6704 = vmatpush.bf16.msra.mxu0 %v4079
        %6705 = vmatpush.bf16.msra.mxu0 %v4061
        %6706 = vmatpush.bf16.msra.mxu0 %v4043
        %6707 = vmatpush.bf16.msra.mxu0 %v4025
        %6708 = vmatmul.bf16.gmra.mxu0 %v1264
        %v6709 = vpop.f32.mrf.mxu0
        %v6710 = vadd.f32 %v6697, %v6709
        %v6711 = vpop.f32.mrf.mxu0
        %6712 = vdwg.mxu0
        %6713 = vmatpush.bf16.msra.mxu0 %v4295
        %6714 = vmatpush.bf16.msra.mxu0 %v4277
        %6715 = vmatpush.bf16.msra.mxu0 %v4259
        %6716 = vmatpush.bf16.msra.mxu0 %v4241
        %6717 = vmatpush.bf16.msra.mxu0 %v4223
        %6718 = vmatpush.bf16.msra.mxu0 %v4205
        %6719 = vmatpush.bf16.msra.mxu0 %v4187
        %6720 = vmatpush.bf16.msra.mxu0 %v4169
        %6721 = vmatmul.bf16.gmra.mxu0 %v1265
        %v6722 = vpop.f32.mrf.mxu0
        %v6723 = vadd.f32 %v6710, %v6722
        %v6724 = vpop.f32.mrf.mxu0
        %6725 = vdwg.mxu0
        %6726 = vmatpush.bf16.msra.mxu0 %v4439
        %6727 = vmatpush.bf16.msra.mxu0 %v4421
        %6728 = vmatpush.bf16.msra.mxu0 %v4403
        %6729 = vmatpush.bf16.msra.mxu0 %v4385
        %6730 = vmatpush.bf16.msra.mxu0 %v4367
        %6731 = vmatpush.bf16.msra.mxu0 %v4349
        %6732 = vmatpush.bf16.msra.mxu0 %v4331
        %6733 = vmatpush.bf16.msra.mxu0 %v4313
        %6734 = vmatmul.bf16.gmra.mxu0 %v1266
        %v6735 = vpop.f32.mrf.mxu0
        %v6736 = vadd.f32 %v6723, %v6735
        %v6737 = vpop.f32.mrf.mxu0
        %6738 = vdwg.mxu0
        %6739 = vmatpush.bf16.msra.mxu0 %v4583
        %6740 = vmatpush.bf16.msra.mxu0 %v4565
        %6741 = vmatpush.bf16.msra.mxu0 %v4547
        %6742 = vmatpush.bf16.msra.mxu0 %v4529
        %6743 = vmatpush.bf16.msra.mxu0 %v4511
        %6744 = vmatpush.bf16.msra.mxu0 %v4493
        %6745 = vmatpush.bf16.msra.mxu0 %v4475
        %6746 = vmatpush.bf16.msra.mxu0 %v4457
        %6747 = vmatmul.bf16.gmra.mxu0 %v1267
        %v6748 = vpop.f32.mrf.mxu0
        %v6749 = vadd.f32 %v6736, %v6748
        %v6750 = vpop.f32.mrf.mxu0
        %6751 = vdwg.mxu0
        %6752 = vmatpush.bf16.msra.mxu0 %v4727
        %6753 = vmatpush.bf16.msra.mxu0 %v4709
        %6754 = vmatpush.bf16.msra.mxu0 %v4691
        %6755 = vmatpush.bf16.msra.mxu0 %v4673
        %6756 = vmatpush.bf16.msra.mxu0 %v4655
        %6757 = vmatpush.bf16.msra.mxu0 %v4637
        %6758 = vmatpush.bf16.msra.mxu0 %v4619
        %6759 = vmatpush.bf16.msra.mxu0 %v4601
        %6760 = vmatmul.bf16.gmra.mxu0 %v1268
        %v6761 = vpop.f32.mrf.mxu0
        %v6762 = vadd.f32 %v6749, %v6761
        %v6763 = vpop.f32.mrf.mxu0
        %6764 = vdwg.mxu0
        %6765 = vmatpush.bf16.msra.mxu0 %v4008
        %6766 = vmatpush.bf16.msra.mxu0 %v3990
        %6767 = vmatpush.bf16.msra.mxu0 %v3972
        %6768 = vmatpush.bf16.msra.mxu0 %v3954
        %6769 = vmatpush.bf16.msra.mxu0 %v3936
        %6770 = vmatpush.bf16.msra.mxu0 %v3918
        %6771 = vmatpush.bf16.msra.mxu0 %v3900
        %6772 = vmatpush.bf16.msra.mxu0 %v3882
        %6773 = vmatmul.bf16.gmra.mxu0 %v1263
        %v6774 = vpop.f32.mrf.mxu0
        %v6775 = vadd.f32 %v1233, %v6774
        %v6776 = vpop.f32.mrf.mxu0
        %6777 = vdwg.mxu0
        %6778 = vmatpush.bf16.msra.mxu0 %v4152
        %6779 = vmatpush.bf16.msra.mxu0 %v4134
        %6780 = vmatpush.bf16.msra.mxu0 %v4116
        %6781 = vmatpush.bf16.msra.mxu0 %v4098
        %6782 = vmatpush.bf16.msra.mxu0 %v4080
        %6783 = vmatpush.bf16.msra.mxu0 %v4062
        %6784 = vmatpush.bf16.msra.mxu0 %v4044
        %6785 = vmatpush.bf16.msra.mxu0 %v4026
        %6786 = vmatmul.bf16.gmra.mxu0 %v1264
        %v6787 = vpop.f32.mrf.mxu0
        %v6788 = vadd.f32 %v6775, %v6787
        %v6789 = vpop.f32.mrf.mxu0
        %6790 = vdwg.mxu0
        %6791 = vmatpush.bf16.msra.mxu0 %v4296
        %6792 = vmatpush.bf16.msra.mxu0 %v4278
        %6793 = vmatpush.bf16.msra.mxu0 %v4260
        %6794 = vmatpush.bf16.msra.mxu0 %v4242
        %6795 = vmatpush.bf16.msra.mxu0 %v4224
        %6796 = vmatpush.bf16.msra.mxu0 %v4206
        %6797 = vmatpush.bf16.msra.mxu0 %v4188
        %6798 = vmatpush.bf16.msra.mxu0 %v4170
        %6799 = vmatmul.bf16.gmra.mxu0 %v1265
        %v6800 = vpop.f32.mrf.mxu0
        %v6801 = vadd.f32 %v6788, %v6800
        %v6802 = vpop.f32.mrf.mxu0
        %6803 = vdwg.mxu0
        %6804 = vmatpush.bf16.msra.mxu0 %v4440
        %6805 = vmatpush.bf16.msra.mxu0 %v4422
        %6806 = vmatpush.bf16.msra.mxu0 %v4404
        %6807 = vmatpush.bf16.msra.mxu0 %v4386
        %6808 = vmatpush.bf16.msra.mxu0 %v4368
        %6809 = vmatpush.bf16.msra.mxu0 %v4350
        %6810 = vmatpush.bf16.msra.mxu0 %v4332
        %6811 = vmatpush.bf16.msra.mxu0 %v4314
        %6812 = vmatmul.bf16.gmra.mxu0 %v1266
        %v6813 = vpop.f32.mrf.mxu0
        %v6814 = vadd.f32 %v6801, %v6813
        %v6815 = vpop.f32.mrf.mxu0
        %6816 = vdwg.mxu0
        %6817 = vmatpush.bf16.msra.mxu0 %v4584
        %6818 = vmatpush.bf16.msra.mxu0 %v4566
        %6819 = vmatpush.bf16.msra.mxu0 %v4548
        %6820 = vmatpush.bf16.msra.mxu0 %v4530
        %6821 = vmatpush.bf16.msra.mxu0 %v4512
        %6822 = vmatpush.bf16.msra.mxu0 %v4494
        %6823 = vmatpush.bf16.msra.mxu0 %v4476
        %6824 = vmatpush.bf16.msra.mxu0 %v4458
        %6825 = vmatmul.bf16.gmra.mxu0 %v1267
        %v6826 = vpop.f32.mrf.mxu0
        %v6827 = vadd.f32 %v6814, %v6826
        %v6828 = vpop.f32.mrf.mxu0
        %6829 = vdwg.mxu0
        %6830 = vmatpush.bf16.msra.mxu0 %v4728
        %6831 = vmatpush.bf16.msra.mxu0 %v4710
        %6832 = vmatpush.bf16.msra.mxu0 %v4692
        %6833 = vmatpush.bf16.msra.mxu0 %v4674
        %6834 = vmatpush.bf16.msra.mxu0 %v4656
        %6835 = vmatpush.bf16.msra.mxu0 %v4638
        %6836 = vmatpush.bf16.msra.mxu0 %v4620
        %6837 = vmatpush.bf16.msra.mxu0 %v4602
        %6838 = vmatmul.bf16.gmra.mxu0 %v1268
        %v6839 = vpop.f32.mrf.mxu0
        %v6840 = vadd.f32 %v6827, %v6839
        %v6841 = vpop.f32.mrf.mxu0
        %6842 = vdwg.mxu0
        %6843 = vmatpush.bf16.msra.mxu0 %v4009
        %6844 = vmatpush.bf16.msra.mxu0 %v3991
        %6845 = vmatpush.bf16.msra.mxu0 %v3973
        %6846 = vmatpush.bf16.msra.mxu0 %v3955
        %6847 = vmatpush.bf16.msra.mxu0 %v3937
        %6848 = vmatpush.bf16.msra.mxu0 %v3919
        %6849 = vmatpush.bf16.msra.mxu0 %v3901
        %6850 = vmatpush.bf16.msra.mxu0 %v3883
        %6851 = vmatmul.bf16.gmra.mxu0 %v1263
        %v6852 = vpop.f32.mrf.mxu0
        %v6853 = vadd.f32 %v1234, %v6852
        %v6854 = vpop.f32.mrf.mxu0
        %6855 = vdwg.mxu0
        %6856 = vmatpush.bf16.msra.mxu0 %v4153
        %6857 = vmatpush.bf16.msra.mxu0 %v4135
        %6858 = vmatpush.bf16.msra.mxu0 %v4117
        %6859 = vmatpush.bf16.msra.mxu0 %v4099
        %6860 = vmatpush.bf16.msra.mxu0 %v4081
        %6861 = vmatpush.bf16.msra.mxu0 %v4063
        %6862 = vmatpush.bf16.msra.mxu0 %v4045
        %6863 = vmatpush.bf16.msra.mxu0 %v4027
        %6864 = vmatmul.bf16.gmra.mxu0 %v1264
        %v6865 = vpop.f32.mrf.mxu0
        %v6866 = vadd.f32 %v6853, %v6865
        %v6867 = vpop.f32.mrf.mxu0
        %6868 = vdwg.mxu0
        %6869 = vmatpush.bf16.msra.mxu0 %v4297
        %6870 = vmatpush.bf16.msra.mxu0 %v4279
        %6871 = vmatpush.bf16.msra.mxu0 %v4261
        %6872 = vmatpush.bf16.msra.mxu0 %v4243
        %6873 = vmatpush.bf16.msra.mxu0 %v4225
        %6874 = vmatpush.bf16.msra.mxu0 %v4207
        %6875 = vmatpush.bf16.msra.mxu0 %v4189
        %6876 = vmatpush.bf16.msra.mxu0 %v4171
        %6877 = vmatmul.bf16.gmra.mxu0 %v1265
        %v6878 = vpop.f32.mrf.mxu0
        %v6879 = vadd.f32 %v6866, %v6878
        %v6880 = vpop.f32.mrf.mxu0
        %6881 = vdwg.mxu0
        %6882 = vmatpush.bf16.msra.mxu0 %v4441
        %6883 = vmatpush.bf16.msra.mxu0 %v4423
        %6884 = vmatpush.bf16.msra.mxu0 %v4405
        %6885 = vmatpush.bf16.msra.mxu0 %v4387
        %6886 = vmatpush.bf16.msra.mxu0 %v4369
        %6887 = vmatpush.bf16.msra.mxu0 %v4351
        %6888 = vmatpush.bf16.msra.mxu0 %v4333
        %6889 = vmatpush.bf16.msra.mxu0 %v4315
        %6890 = vmatmul.bf16.gmra.mxu0 %v1266
        %v6891 = vpop.f32.mrf.mxu0
        %v6892 = vadd.f32 %v6879, %v6891
        %v6893 = vpop.f32.mrf.mxu0
        %6894 = vdwg.mxu0
        %6895 = vmatpush.bf16.msra.mxu0 %v4585
        %6896 = vmatpush.bf16.msra.mxu0 %v4567
        %6897 = vmatpush.bf16.msra.mxu0 %v4549
        %6898 = vmatpush.bf16.msra.mxu0 %v4531
        %6899 = vmatpush.bf16.msra.mxu0 %v4513
        %6900 = vmatpush.bf16.msra.mxu0 %v4495
        %6901 = vmatpush.bf16.msra.mxu0 %v4477
        %6902 = vmatpush.bf16.msra.mxu0 %v4459
        %6903 = vmatmul.bf16.gmra.mxu0 %v1267
        %v6904 = vpop.f32.mrf.mxu0
        %v6905 = vadd.f32 %v6892, %v6904
        %v6906 = vpop.f32.mrf.mxu0
        %6907 = vdwg.mxu0
        %6908 = vmatpush.bf16.msra.mxu0 %v4729
        %6909 = vmatpush.bf16.msra.mxu0 %v4711
        %6910 = vmatpush.bf16.msra.mxu0 %v4693
        %6911 = vmatpush.bf16.msra.mxu0 %v4675
        %6912 = vmatpush.bf16.msra.mxu0 %v4657
        %6913 = vmatpush.bf16.msra.mxu0 %v4639
        %6914 = vmatpush.bf16.msra.mxu0 %v4621
        %6915 = vmatpush.bf16.msra.mxu0 %v4603
        %6916 = vmatmul.bf16.gmra.mxu0 %v1268
        %v6917 = vpop.f32.mrf.mxu0
        %v6918 = vadd.f32 %v6905, %v6917
        %v6919 = vpop.f32.mrf.mxu0
        %6920 = vdwg.mxu0
        %6921 = vmatpush.bf16.msra.mxu0 %v4010
        %6922 = vmatpush.bf16.msra.mxu0 %v3992
        %6923 = vmatpush.bf16.msra.mxu0 %v3974
        %6924 = vmatpush.bf16.msra.mxu0 %v3956
        %6925 = vmatpush.bf16.msra.mxu0 %v3938
        %6926 = vmatpush.bf16.msra.mxu0 %v3920
        %6927 = vmatpush.bf16.msra.mxu0 %v3902
        %6928 = vmatpush.bf16.msra.mxu0 %v3884
        %6929 = vmatmul.bf16.gmra.mxu0 %v1263
        %v6930 = vpop.f32.mrf.mxu0
        %v6931 = vadd.f32 %v1235, %v6930
        %v6932 = vpop.f32.mrf.mxu0
        %6933 = vdwg.mxu0
        %6934 = vmatpush.bf16.msra.mxu0 %v4154
        %6935 = vmatpush.bf16.msra.mxu0 %v4136
        %6936 = vmatpush.bf16.msra.mxu0 %v4118
        %6937 = vmatpush.bf16.msra.mxu0 %v4100
        %6938 = vmatpush.bf16.msra.mxu0 %v4082
        %6939 = vmatpush.bf16.msra.mxu0 %v4064
        %6940 = vmatpush.bf16.msra.mxu0 %v4046
        %6941 = vmatpush.bf16.msra.mxu0 %v4028
        %6942 = vmatmul.bf16.gmra.mxu0 %v1264
        %v6943 = vpop.f32.mrf.mxu0
        %v6944 = vadd.f32 %v6931, %v6943
        %v6945 = vpop.f32.mrf.mxu0
        %6946 = vdwg.mxu0
        %6947 = vmatpush.bf16.msra.mxu0 %v4298
        %6948 = vmatpush.bf16.msra.mxu0 %v4280
        %6949 = vmatpush.bf16.msra.mxu0 %v4262
        %6950 = vmatpush.bf16.msra.mxu0 %v4244
        %6951 = vmatpush.bf16.msra.mxu0 %v4226
        %6952 = vmatpush.bf16.msra.mxu0 %v4208
        %6953 = vmatpush.bf16.msra.mxu0 %v4190
        %6954 = vmatpush.bf16.msra.mxu0 %v4172
        %6955 = vmatmul.bf16.gmra.mxu0 %v1265
        %v6956 = vpop.f32.mrf.mxu0
        %v6957 = vadd.f32 %v6944, %v6956
        %v6958 = vpop.f32.mrf.mxu0
        %6959 = vdwg.mxu0
        %6960 = vmatpush.bf16.msra.mxu0 %v4442
        %6961 = vmatpush.bf16.msra.mxu0 %v4424
        %6962 = vmatpush.bf16.msra.mxu0 %v4406
        %6963 = vmatpush.bf16.msra.mxu0 %v4388
        %6964 = vmatpush.bf16.msra.mxu0 %v4370
        %6965 = vmatpush.bf16.msra.mxu0 %v4352
        %6966 = vmatpush.bf16.msra.mxu0 %v4334
        %6967 = vmatpush.bf16.msra.mxu0 %v4316
        %6968 = vmatmul.bf16.gmra.mxu0 %v1266
        %v6969 = vpop.f32.mrf.mxu0
        %v6970 = vadd.f32 %v6957, %v6969
        %v6971 = vpop.f32.mrf.mxu0
        %6972 = vdwg.mxu0
        %6973 = vmatpush.bf16.msra.mxu0 %v4586
        %6974 = vmatpush.bf16.msra.mxu0 %v4568
        %6975 = vmatpush.bf16.msra.mxu0 %v4550
        %6976 = vmatpush.bf16.msra.mxu0 %v4532
        %6977 = vmatpush.bf16.msra.mxu0 %v4514
        %6978 = vmatpush.bf16.msra.mxu0 %v4496
        %6979 = vmatpush.bf16.msra.mxu0 %v4478
        %6980 = vmatpush.bf16.msra.mxu0 %v4460
        %6981 = vmatmul.bf16.gmra.mxu0 %v1267
        %v6982 = vpop.f32.mrf.mxu0
        %v6983 = vadd.f32 %v6970, %v6982
        %v6984 = vpop.f32.mrf.mxu0
        %6985 = vdwg.mxu0
        %6986 = vmatpush.bf16.msra.mxu0 %v4730
        %6987 = vmatpush.bf16.msra.mxu0 %v4712
        %6988 = vmatpush.bf16.msra.mxu0 %v4694
        %6989 = vmatpush.bf16.msra.mxu0 %v4676
        %6990 = vmatpush.bf16.msra.mxu0 %v4658
        %6991 = vmatpush.bf16.msra.mxu0 %v4640
        %6992 = vmatpush.bf16.msra.mxu0 %v4622
        %6993 = vmatpush.bf16.msra.mxu0 %v4604
        %6994 = vmatmul.bf16.gmra.mxu0 %v1268
        %v6995 = vpop.f32.mrf.mxu0
        %v6996 = vadd.f32 %v6983, %v6995
        %v6997 = vpop.f32.mrf.mxu0
        %6998 = vdwg.mxu0
        %v6999 = vpack.c.bf16 %v5670, %v5670
        %v7000 = vpack.c.bf16 %v5748, %v5748
        %v7001 = vpack.c.bf16 %v5826, %v5826
        %v7002 = vpack.c.bf16 %v5904, %v5904
        %v7003 = vpack.c.bf16 %v5982, %v5982
        %v7004 = vpack.c.bf16 %v6060, %v6060
        %v7005 = vpack.c.bf16 %v6138, %v6138
        %v7006 = vpack.c.bf16 %v6216, %v6216
        %v7007 = vpack.c.bf16 %v6294, %v6294
        %v7008 = vpack.c.bf16 %v6372, %v6372
        %v7009 = vpack.c.bf16 %v6450, %v6450
        %v7010 = vpack.c.bf16 %v6528, %v6528
        %7011 = vmatpush.bf16.xpose.msra.mxu0 0
        %7012 = vmatpush.bf16.xpose.msra.mxu0 0
        %7013 = vmatpush.bf16.xpose.msra.mxu0 0
        %7014 = vmatpush.bf16.xpose.msra.mxu0 0
        %7015 = vmatpush.bf16.xpose.msra.mxu0 0
        %7016 = vmatpush.bf16.xpose.msra.mxu0 0
        %7017 = vmatpush.bf16.xpose.msra.mxu0 0
        %7018 = vmatpush.bf16.xpose.msra.mxu0 %v7005
        %7019 = vmatmul.bf16.gmra.mxu0 %v6999
        %v7020 = vpop.f32.mrf.mxu0
        %v7021 = vadd.f32 0.0, %v7020
        %v7022 = vpop.f32.mrf.mxu0
        %7023 = vdwg.mxu0
        %7024 = vmatpush.bf16.xpose.msra.mxu0 0
        %7025 = vmatpush.bf16.xpose.msra.mxu0 0
        %7026 = vmatpush.bf16.xpose.msra.mxu0 0
        %7027 = vmatpush.bf16.xpose.msra.mxu0 0
        %7028 = vmatpush.bf16.xpose.msra.mxu0 0
        %7029 = vmatpush.bf16.xpose.msra.mxu0 0
        %7030 = vmatpush.bf16.xpose.msra.mxu0 0
        %7031 = vmatpush.bf16.xpose.msra.mxu0 %v7006
        %7032 = vmatmul.bf16.gmra.mxu0 %v7000
        %v7033 = vpop.f32.mrf.mxu0
        %v7034 = vadd.f32 %v7021, %v7033
        %v7035 = vpop.f32.mrf.mxu0
        %7036 = vdwg.mxu0
        %7037 = vmatpush.bf16.xpose.msra.mxu0 0
        %7038 = vmatpush.bf16.xpose.msra.mxu0 0
        %7039 = vmatpush.bf16.xpose.msra.mxu0 0
        %7040 = vmatpush.bf16.xpose.msra.mxu0 0
        %7041 = vmatpush.bf16.xpose.msra.mxu0 0
        %7042 = vmatpush.bf16.xpose.msra.mxu0 0
        %7043 = vmatpush.bf16.xpose.msra.mxu0 0
        %7044 = vmatpush.bf16.xpose.msra.mxu0 %v7007
        %7045 = vmatmul.bf16.gmra.mxu0 %v7001
        %v7046 = vpop.f32.mrf.mxu0
        %v7047 = vadd.f32 %v7034, %v7046
        %v7048 = vpop.f32.mrf.mxu0
        %7049 = vdwg.mxu0
        %7050 = vmatpush.bf16.xpose.msra.mxu0 0
        %7051 = vmatpush.bf16.xpose.msra.mxu0 0
        %7052 = vmatpush.bf16.xpose.msra.mxu0 0
        %7053 = vmatpush.bf16.xpose.msra.mxu0 0
        %7054 = vmatpush.bf16.xpose.msra.mxu0 0
        %7055 = vmatpush.bf16.xpose.msra.mxu0 0
        %7056 = vmatpush.bf16.xpose.msra.mxu0 0
        %7057 = vmatpush.bf16.xpose.msra.mxu0 %v7008
        %7058 = vmatmul.bf16.gmra.mxu0 %v7002
        %v7059 = vpop.f32.mrf.mxu0
        %v7060 = vadd.f32 %v7047, %v7059
        %v7061 = vpop.f32.mrf.mxu0
        %7062 = vdwg.mxu0
        %7063 = vmatpush.bf16.xpose.msra.mxu0 0
        %7064 = vmatpush.bf16.xpose.msra.mxu0 0
        %7065 = vmatpush.bf16.xpose.msra.mxu0 0
        %7066 = vmatpush.bf16.xpose.msra.mxu0 0
        %7067 = vmatpush.bf16.xpose.msra.mxu0 0
        %7068 = vmatpush.bf16.xpose.msra.mxu0 0
        %7069 = vmatpush.bf16.xpose.msra.mxu0 0
        %7070 = vmatpush.bf16.xpose.msra.mxu0 %v7009
        %7071 = vmatmul.bf16.gmra.mxu0 %v7003
        %v7072 = vpop.f32.mrf.mxu0
        %v7073 = vadd.f32 %v7060, %v7072
        %v7074 = vpop.f32.mrf.mxu0
        %7075 = vdwg.mxu0
        %7076 = vmatpush.bf16.xpose.msra.mxu0 0
        %7077 = vmatpush.bf16.xpose.msra.mxu0 0
        %7078 = vmatpush.bf16.xpose.msra.mxu0 0
        %7079 = vmatpush.bf16.xpose.msra.mxu0 0
        %7080 = vmatpush.bf16.xpose.msra.mxu0 0
        %7081 = vmatpush.bf16.xpose.msra.mxu0 0
        %7082 = vmatpush.bf16.xpose.msra.mxu0 0
        %7083 = vmatpush.bf16.xpose.msra.mxu0 %v7010
        %7084 = vmatmul.bf16.gmra.mxu0 %v7004
        %v7085 = vpop.f32.mrf.mxu0
        %v7086 = vadd.f32 %v7073, %v7085
        %v7087 = vpop.f32.mrf.mxu0
        %7088 = vdwg.mxu0
        %v7089 = vmul.f32 %v7086, 0.35355338
        %v7090 = vld [vmem:[%s283] sm:$0x1]
        %vm7091 = vcmp.eq.f32.partialorder %v7090, 0.0
        %v7092 = vsel %vm7091, 1, 0
        %v7093 = vperm.slane %v7092, 0
        %vm7094 = vcmp.eq.s32.totalorder %v7093, 1
        %v7095 = vsel %vm7094, -1e+09, %v7089
        %vm7096 = vcmask 64512
        %v7097 = vsel %vm7096, %v7095, -inf
        %7098 = vmax.xlane.f32.xlu0 %v7097
        %v7099 = vpop.xlane.xlu0 %7098
        %v7100 = vsub.f32 %v7095, %v7099
        %v7101 = vmul.f32 %v7100, 1.442695
        %v7102 = vpow.pop %v7101
        %v7103 = vsel %vm7096, %v7102, 0.0
        %7104 = vadd.xlane.f32.xlu0 %v7103
        %v7105 = vpop.xlane.xlu0 %7104
        %v7106 = vrcp.pop %v7105
        %v7107 = vmul.f32 %v7102, %v7106
        %v7108 = vpack.c.bf16 %v7107, %v7107
        %v7109 = vpack.c.bf16 %v6606, %v6606
        %v7110 = vpack.c.bf16 %v6684, %v6684
        %v7111 = vpack.c.bf16 %v6762, %v6762
        %v7112 = vpack.c.bf16 %v6840, %v6840
        %v7113 = vpack.c.bf16 %v6918, %v6918
        %v7114 = vpack.c.bf16 %v6996, %v6996
        %v7116 = vsel %vm7096, %v7108, 0
        %vm7118 = vcmask 1043456
        %v7120 = vsel %vm7118, %v7109, 0
        %v7123 = vsel %vm7118, %v7110, 0
        %v7126 = vsel %vm7118, %v7111, 0
        %v7129 = vsel %vm7118, %v7112, 0
        %v7132 = vsel %vm7118, %v7113, 0
        %v7135 = vsel %vm7118, %v7114, 0
        %7137 = vmatpush.bf16.msra.mxu0 0
        %7138 = vmatpush.bf16.msra.mxu0 0
        %7139 = vmatpush.bf16.msra.mxu0 0
        %7140 = vmatpush.bf16.msra.mxu0 0
        %7141 = vmatpush.bf16.msra.mxu0 0
        %7142 = vmatpush.bf16.msra.mxu0 0
        %7143 = vmatpush.bf16.msra.mxu0 0
        %7144 = vmatpush.bf16.msra.mxu0 %v7120
        %7145 = vmatmul.bf16.gmra.mxu0 %v7116
        %v7146 = vpop.f32.mrf.mxu0
        %v7147 = vadd.f32 0.0, %v7146
        %v7148 = vpop.f32.mrf.mxu0
        %7149 = vdwg.mxu0
        %7150 = vmatpush.bf16.msra.mxu0 0
        %7151 = vmatpush.bf16.msra.mxu0 0
        %7152 = vmatpush.bf16.msra.mxu0 0
        %7153 = vmatpush.bf16.msra.mxu0 0
        %7154 = vmatpush.bf16.msra.mxu0 0
        %7155 = vmatpush.bf16.msra.mxu0 0
        %7156 = vmatpush.bf16.msra.mxu0 0
        %7157 = vmatpush.bf16.msra.mxu0 %v7123
        %7158 = vmatmul.bf16.gmra.mxu0 %v7116
        %v7159 = vpop.f32.mrf.mxu0
        %v7160 = vadd.f32 0.0, %v7159
        %v7161 = vpop.f32.mrf.mxu0
        %7162 = vdwg.mxu0
        %7163 = vmatpush.bf16.msra.mxu0 0
        %7164 = vmatpush.bf16.msra.mxu0 0
        %7165 = vmatpush.bf16.msra.mxu0 0
        %7166 = vmatpush.bf16.msra.mxu0 0
        %7167 = vmatpush.bf16.msra.mxu0 0
        %7168 = vmatpush.bf16.msra.mxu0 0
        %7169 = vmatpush.bf16.msra.mxu0 0
        %7170 = vmatpush.bf16.msra.mxu0 %v7126
        %7171 = vmatmul.bf16.gmra.mxu0 %v7116
        %v7172 = vpop.f32.mrf.mxu0
        %v7173 = vadd.f32 0.0, %v7172
        %v7174 = vpop.f32.mrf.mxu0
        %7175 = vdwg.mxu0
        %7176 = vmatpush.bf16.msra.mxu0 0
        %7177 = vmatpush.bf16.msra.mxu0 0
        %7178 = vmatpush.bf16.msra.mxu0 0
        %7179 = vmatpush.bf16.msra.mxu0 0
        %7180 = vmatpush.bf16.msra.mxu0 0
        %7181 = vmatpush.bf16.msra.mxu0 0
        %7182 = vmatpush.bf16.msra.mxu0 0
        %7183 = vmatpush.bf16.msra.mxu0 %v7129
        %7184 = vmatmul.bf16.gmra.mxu0 %v7116
        %v7185 = vpop.f32.mrf.mxu0
        %v7186 = vadd.f32 0.0, %v7185
        %v7187 = vpop.f32.mrf.mxu0
        %7188 = vdwg.mxu0
        %7189 = vmatpush.bf16.msra.mxu0 0
        %7190 = vmatpush.bf16.msra.mxu0 0
        %7191 = vmatpush.bf16.msra.mxu0 0
        %7192 = vmatpush.bf16.msra.mxu0 0
        %7193 = vmatpush.bf16.msra.mxu0 0
        %7194 = vmatpush.bf16.msra.mxu0 0
        %7195 = vmatpush.bf16.msra.mxu0 0
        %7196 = vmatpush.bf16.msra.mxu0 %v7132
        %7197 = vmatmul.bf16.gmra.mxu0 %v7116
        %v7198 = vpop.f32.mrf.mxu0
        %v7199 = vadd.f32 0.0, %v7198
        %v7200 = vpop.f32.mrf.mxu0
        %7201 = vdwg.mxu0
        %7202 = vmatpush.bf16.msra.mxu0 0
        %7203 = vmatpush.bf16.msra.mxu0 0
        %7204 = vmatpush.bf16.msra.mxu0 0
        %7205 = vmatpush.bf16.msra.mxu0 0
        %7206 = vmatpush.bf16.msra.mxu0 0
        %7207 = vmatpush.bf16.msra.mxu0 0
        %7208 = vmatpush.bf16.msra.mxu0 0
        %7209 = vmatpush.bf16.msra.mxu0 %v7135
        %7210 = vmatmul.bf16.gmra.mxu0 %v7116
        %v7211 = vpop.f32.mrf.mxu0
        %v7212 = vadd.f32 0.0, %v7211
        %v7213 = vpop.f32.mrf.mxu0
        %7214 = vdwg.mxu0
        %v7215 = vpack.c.bf16 %v7160, %v7147
        %v7216 = vpack.c.bf16 %v7186, %v7173
        %v7217 = vpack.c.bf16 %v7212, %v7199
        %7218 = vst [vmem:[%s342] sm:$0xff] %v7215
        %7219 = vst [vmem:[%s342 + $0x8] sm:$0xff] %v7216
        %7220 = vst [vmem:[%s342 + $0x10] sm:$0xff] %v7217
        %s7221 = sand.u32 %s153, 1
        %s7222 = scalar_lea.sflag [#allocation4], %s7221
        %s7223 = sand.u32 %s153, 1
        %s7224 = smul.addr %s7223, 24
        %s7225 = scalar_lea.vmem [#allocation10], %s7224
        // Predicated region
        $region53: #{tpu_custom_call.1} parent=35 // pred_check
          %p7226 = pneg %p163
        $region54: #{tpu_custom_call.1} parent=35 // pred_check_branch
          %7228 = sbr.rel (%p7226) target = $region56
        $region55: #{tpu_custom_call.1} parent=35 // pred_region
          %s7229 = smul.u32 6, %s31
          %7231 = vsyncadd %s7222, 0
          %s7232 = smul.addr %s32, 24
          %s7233 = sadd.s32 %s7229, %s7232
          %s7234 = smul.addr %s7233, 4
          %s7235 = scalar_lea.hbm %s4, %s7234
          %s7237 = sshll.u32 %s7225, 4
          %s7238 = int_to_ptr.vmem [resolvable:$true] %s7237
          %s7239 = sshll.u32 %s7235, 4
          %s7240 = int_to_ptr.hbm [resolvable:$true] %s7239
          %7242 = dma.vmem_to_hbm [thread:$0]  %s7238, 384, %s7240, %s7222
        $region56: #{tpu_custom_call.1} parent=35 // pred_fallthru
          _
      $region36: #{tpu_custom_call.1} parent=5 // pred_fallthru
        _
      %p7243 = scmp.le.s32.totalorder 2, %s22
      // Predicated region
      $region57: #{tpu_custom_call.1} parent=5 // pred_check
        %p7244 = pneg %p7243
      $region58: #{tpu_custom_call.1} parent=5 // pred_check_branch
        %7246 = sbr.rel (%p7244) target = $region60
      $region59: #{tpu_custom_call.1} parent=5 // pred_region
        %s7247 = ssub.s32 %s22, 2
        // Predicated region
        $region61: #{tpu_custom_call.1} parent=59 // pred_check
          %p7248 = pneg %p169
        $region62: #{tpu_custom_call.1} parent=59 // pred_check_branch
          %7250 = sbr.rel (%p7248) target = $region64
        $region63: #{tpu_custom_call.1} parent=59 // pred_region
          %s7251 = sand.u32 %s154, 1
          %s7252 = scalar_lea.sflag [#allocation4], %s7251
          %s7253 = sand.u32 %s154, 1
          %s7254 = smul.addr %s7253, 24
          %s7255 = scalar_lea.vmem [#allocation10], %s7254
          %7257 = dma.done %s7252, 384
        $region64: #{tpu_custom_call.1} parent=59 // pred_fallthru
          _
      $region60: #{tpu_custom_call.1} parent=5 // pred_fallthru
        _
    $region6: #{tpu_custom_call.1} parent=1 // loop_footer
      %s26 = sadd.s32 1, %s22
    $region7: #{tpu_custom_call.1} parent=1 // loop_footer_branch
      %21 = sbr.rel target = $region3
    $region8: #{tpu_custom_call.1} parent=1 // loop_exit
      _
    %7258 = vsyncpa [#allocation3], 1
    %s7259 = scalar_lea.sflag [#allocation3], 1
    %7260 = vsyncpa %s7259, 1
    %7261 = vsyncpa [#allocation6], 1
    %s7262 = scalar_lea.sflag [#allocation6], 1
    %7263 = vsyncpa %s7262, 1
    %7264 = vsyncpa [#allocation9], 1
    %s7265 = scalar_lea.sflag [#allocation9], 1
    %7266 = vsyncpa %s7265, 1
    %7267 = vsyncpa [#allocation4], 1
    %s7268 = scalar_lea.sflag [#allocation4], 1
    %7269 = vsyncpa %s7268, 1

</llo_original>
